<compile_context>
chip_gen: v7x
topology: tpu7x:2x2x1
jax: 0.10.0
libtpu: 0.0.40
codegen_flags: <defaults>
</compile_context>

<pallas_src>
import functools

import jax
import jax.numpy as jnp
import numpy as np
from jax import lax
from jax.experimental import pallas as pl
from jax.experimental.pallas import tpu as pltpu


def _layernorm(x, gamma, beta, eps=1e-5):
    mean = jnp.mean(x, axis=-1, keepdims=True)
    var = jnp.mean(jnp.square(x - mean), axis=-1, keepdims=True)
    return (x - mean) * lax.rsqrt(var + eps) * gamma + beta


def transformer_block_kernel(
    q_ref, k_ref, mq_ref, mk_ref,
    wq_ref, wkv_ref, wu_ref, bu_ref,
    g1_ref, be1_ref, g2_ref, be2_ref,
    w1_ref, bb1_ref, w2_ref, bb2_ref,
    out_ref,
    *, heads, emb, causal):
    tq = q_ref.shape[1]
    tk = k_ref.shape[1]
    he = heads * emb

    q_f32 = q_ref[0].astype(jnp.float32)                       # (tq, E) residual path
    # Fold the 1/sqrt(emb) score scale into q before the projection.
    q_bf = (q_f32 * jnp.float32(1.0 / float(emb) ** 0.5)).astype(jnp.bfloat16)
    k_bf = k_ref[0].astype(jnp.bfloat16)

    # ---- fused lane-dense projections, f32 accumulation on the MXU ----
    q_all = jnp.dot(q_bf, wq_ref[...], preferred_element_type=jnp.float32)    # (tq, H*E)
    kv_all = jnp.dot(k_bf, wkv_ref[...], preferred_element_type=jnp.float32)  # (tk, 2*H*E)

    # Head split: (t, H*E) -> (t, H, E); heads are the batch axis of the attention
    # einsums (no per-head Python loops / concatenates).
    q_h = q_all.astype(jnp.bfloat16).reshape(tq, heads, emb)
    k_h = kv_all[:, :he].astype(jnp.bfloat16).reshape(tk, heads, emb)
    v_h = kv_all[:, he:].astype(jnp.bfloat16).reshape(tk, heads, emb)

    # ---- batched per-head scores: (H, tq, tk) ----
    scores = jnp.einsum('qhe,khe->hqk', q_h, k_h,
                        preferred_element_type=jnp.float32)

    if causal:
        q0 = pl.program_id(1) * tq                              # global query offset
        row = q0 + lax.broadcasted_iota(jnp.int32, (tq, tk), 0)
        col = lax.broadcasted_iota(jnp.int32, (tq, tk), 1)
        # large finite value instead of -inf: identical softmax output, NaN-safe
        scores = jnp.where((col > row)[None, :, :], jnp.float32(-1e30), scores)

    # Padding mask: (tq,1)*(1,tk) outer product, broadcast over heads (never
    # materialized H times). Mask entries are exactly 0/1, so == 0.0 is safe.
    pad = (mq_ref[0].astype(jnp.float32) * mk_ref[0].astype(jnp.float32)) == 0.0
    scores = jnp.where(pad[None, :, :], jnp.float32(-1e9), scores)

    # ---- one softmax over all heads; reciprocal goes to the EUP slot ----
    scores = scores - jnp.max(scores, axis=-1, keepdims=True)
    p = jnp.exp(scores)
    p = p * pl.reciprocal(jnp.sum(p, axis=-1, keepdims=True), approx=True)

    # ---- batched PV -> (tq, H, E), merged for a single K=H*E unify matmul ----
    ctx = jnp.einsum('hqk,khe->qhe', p.astype(jnp.bfloat16), v_h,
                     preferred_element_type=jnp.float32)
    ctx = ctx.reshape(tq, he).astype(jnp.bfloat16)
    attended = jnp.dot(ctx, wu_ref[...],
                       preferred_element_type=jnp.float32) + bu_ref[...]      # (tq, E)

    # ---- residual + LN1, FFN (dropout p=0.0 is identity), residual + LN2 (f32) ----
    x = _layernorm(attended + q_f32, g1_ref[...], be1_ref[...])
    h1 = jnp.dot(x.astype(jnp.bfloat16), w1_ref[...],
                 preferred_element_type=jnp.float32) + bb1_ref[...]
    h1 = jnp.maximum(h1, 0.0)
    ffo = jnp.dot(h1.astype(jnp.bfloat16), w2_ref[...],
                  preferred_element_type=jnp.float32) + bb2_ref[...]
    y = _layernorm(ffo + x, g2_ref[...], be2_ref[...])

    out_ref[0] = y.astype(out_ref.dtype)


def prepare_params(params):
    """One-time host-side weight prep: fuse K/V projections, cast MXU operands to bf16.

    Done once (not per call) so the kernel never pays extra f32 weight HBM traffic.
    """
    (wq, wk, wv, wu, bu, g1, be1, g2, be2, w1, bb1, w2, bb2) = params
    bf = lambda a: a.astype(jnp.bfloat16)
    wkv = jnp.concatenate([wk, wv], axis=1)                     # (E, 2*H*E)
    return (bf(wq), bf(wkv), bf(wu), bu, g1, be1, g2, be2, bf(w1), bb1, bf(w2), bb2)


def transformer_block(q, k, mask, prepared, *, heads, causal=False, q_tile=None):
    """Returns (x, k, mask) exactly like TransformerBlock.forward((q, k, mask))."""
    B, Tq, E = q.shape
    Bk, Tk, Ek = k.shape
    assert B == Bk and E == Ek
    assert Tq == Tk, "TransformerBlock's mask bmm requires t_q == t_k"
    (wq_b, wkv_b, wu_b, bu, g1, be1, g2, be2, w1_b, bb1, w2_b, bb2) = prepared

    if q_tile is None:
        q_tile = Tq if Tq <= 128 else 128
    assert Tq % q_tile == 0
    n_qt = Tq // q_tile

    mask_row = jnp.transpose(mask, (0, 2, 1))                   # (B, 1, Tk) key-side mask

    kernel = functools.partial(transformer_block_kernel,
                               heads=heads, emb=E, causal=causal)

    def const_spec(arr):
        nd = arr.ndim
        # Grid-invariant weights/biases: single-buffer so they don't pay the default
        # 2x double-buffer VMEM footprint (matters most on v7x's 64 MiB VMEM).
        return pl.BlockSpec(arr.shape, lambda b, qi, nd=nd: (0,) * nd,
                            pipeline_mode=pl.Buffered(1))

    grid_spec = pltpu.PrefetchScalarGridSpec(
        num_scalar_prefetch=0,
        grid=(B, n_qt),
        in_specs=[
            pl.BlockSpec((1, q_tile, E), lambda b, qi: (b, qi, 0)),   # q tile
            pl.BlockSpec((1, Tk, E), lambda b, qi: (b, 0, 0)),        # full K/V source
            pl.BlockSpec((1, q_tile, 1), lambda b, qi: (b, qi, 0)),   # mask (query rows)
            pl.BlockSpec((1, 1, Tk), lambda b, qi: (b, 0, 0)),        # mask (key cols)
            const_spec(wq_b), const_spec(wkv_b), const_spec(wu_b), const_spec(bu),
            const_spec(g1), const_spec(be1), const_spec(g2), const_spec(be2),
            const_spec(w1_b), const_spec(bb1), const_spec(w2_b), const_spec(bb2),
        ],
        out_specs=pl.BlockSpec((1, q_tile, E), lambda b, qi: (b, qi, 0)),
    )

    x = pl.pallas_call(
        kernel,
        out_shape=jax.ShapeDtypeStruct((B, Tq, E), q.dtype),
        grid_spec=grid_spec,
        # Every grid step writes a disjoint output block -> both axes can shard
        # across TensorCores (v7x megacore); harmless on v5e/v6e.
        compiler_params=pltpu.CompilerParams(
            dimension_semantics=("parallel", "parallel"),
            # TODO(synk): raise per-chip (e.g. 96<<20 on v6e) once weights/score slabs
            # grow past the scoped default; the demo footprint is well under 1 MiB.
            vmem_limit_bytes=32 * 1024 * 1024),
    )(q, k, mask, mask_row,
      wq_b, wkv_b, wu_b, bu, g1, be1, g2, be2, w1_b, bb1, w2_b, bb2)
    return x, k, mask


def reference_transformer_block(q, k, mask, params, *, heads, causal=False):
    """Pure-JAX (f32) replica of the PyTorch forward, for correctness checking."""
    (wq, wk, wv, wu, bu, g1, be1, g2, be2, w1, bb1, w2, bb2) = params
    b, tq, e = q.shape
    _, tk, _ = k.shape
    h = heads
    scale = e ** 0.25

    keys = (k @ wk).reshape(b, tk, h, e).transpose(0, 2, 1, 3)
    queries = (q @ wq).reshape(b, tq, h, e).transpose(0, 2, 1, 3)
    values = (k @ wv).reshape(b, tk, h, e).transpose(0, 2, 1, 3)

    dot = jnp.einsum('bhqe,bhke->bhqk', queries / scale, keys / scale)
    if causal:
        row = jnp.arange(tq)[:, None]
        col = jnp.arange(tk)[None, :]
        dot = jnp.where(col > row, -1e30, dot)       # -inf equivalent, NaN-safe
    mm = jnp.einsum('bti,bsi->bts', mask, mask)[:, None, :, :]
    dot = jnp.where(mm == 0, -1e9, dot)
    p = jax.nn.softmax(dot, axis=-1)
    out = jnp.einsum('bhqk,bhke->bhqe', p, values)
    out = out.transpose(0, 2, 1, 3).reshape(b, tq, h * e)
    attended = out @ wu + bu.reshape(-1)

    x = _layernorm(attended + q, g1.reshape(-1), be1.reshape(-1))
    ff = jnp.maximum(x @ w1 + bb1.reshape(-1), 0.0) @ w2 + bb2.reshape(-1)
    x = _layernorm(ff + x, g2.reshape(-1), be2.reshape(-1))
    return x


def make_params(key, emb, heads, ff_hidden_mult=4):
    ks = jax.random.split(key, 12)
    s = 0.1
    wq = s * jax.random.normal(ks[0], (emb, emb * heads), jnp.float32)
    wk = s * jax.random.normal(ks[1], (emb, emb * heads), jnp.float32)
    wv = s * jax.random.normal(ks[2], (emb, emb * heads), jnp.float32)
    wu = s * jax.random.normal(ks[3], (heads * emb, emb), jnp.float32)
    bu = s * jax.random.normal(ks[4], (1, emb), jnp.float32)
    g1 = 1.0 + s * jax.random.normal(ks[5], (1, emb), jnp.float32)
    be1 = s * jax.random.normal(ks[6], (1, emb), jnp.float32)
    g2 = 1.0 + s * jax.random.normal(ks[7], (1, emb), jnp.float32)
    be2 = s * jax.random.normal(ks[8], (1, emb), jnp.float32)
    w1 = s * jax.random.normal(ks[9], (emb, ff_hidden_mult * emb), jnp.float32)
    bb1 = s * jax.random.normal(ks[10], (1, ff_hidden_mult * emb), jnp.float32)
    w2 = s * jax.random.normal(ks[11], (ff_hidden_mult * emb, emb), jnp.float32)
    bb2 = jnp.zeros((1, emb), jnp.float32)
    return (wq, wk, wv, wu, bu, g1, be1, g2, be2, w1, bb1, w2, bb2)


if __name__ == "__main__":
    B, T, EMB, HEADS = 2, 8, 32, 8   # t_q == t_k (required by the module's mask bmm)
    CAUSAL = False                   # corresponds to TransformerBlock(..., mask=False)

    key = jax.random.PRNGKey(0)
    k_params, k_q, k_k = jax.random.split(key, 3)

    params = make_params(k_params, EMB, HEADS)
    prepared = prepare_params(params)          # one-time bf16 cast + K/V weight fusion
    q = jax.random.normal(k_q, (B, T, EMB), jnp.float32)
    k = jax.random.normal(k_k, (B, T, EMB), jnp.float32)
    mask = jnp.ones((B, T, 1), jnp.float32).at[0, T - 1, 0].set(0.0)

    x_out, k_out, mask_out = transformer_block(q, k, mask, prepared,
                                               heads=HEADS, causal=CAUSAL)
    jax.block_until_ready(x_out)

    x_ref = reference_transformer_block(q, k, mask, params,
                                        heads=HEADS, causal=CAUSAL)
    # Tolerance relaxed vs. the pure-f32 reference because MXU operands are bf16
    # (all accumulation is f32; softmax/layernorm/residuals are f32).
    np.testing.assert_allclose(np.asarray(x_out), np.asarray(x_ref),
                               rtol=2e-2, atol=2e-2)

    print("KERNEL_OK")
</pallas_src>

<mosaic_0001>
module attributes {stable_mosaic.version = 11 : i64} {
  func.func @transformer_block_kernel(%arg0: i32, %arg1: i32, %arg2: memref<1x8x32xf32, #tpu.memory_space<vmem>>, %arg3: memref<1x8x32xf32, #tpu.memory_space<vmem>>, %arg4: memref<1x8x1xf32, #tpu.memory_space<vmem>>, %arg5: memref<1x1x8xf32, #tpu.memory_space<vmem>>, %arg6: memref<32x256xbf16, #tpu.memory_space<vmem>>, %arg7: memref<32x512xbf16, #tpu.memory_space<vmem>>, %arg8: memref<256x32xbf16, #tpu.memory_space<vmem>>, %arg9: memref<1x32xf32, #tpu.memory_space<vmem>>, %arg10: memref<1x32xf32, #tpu.memory_space<vmem>>, %arg11: memref<1x32xf32, #tpu.memory_space<vmem>>, %arg12: memref<1x32xf32, #tpu.memory_space<vmem>>, %arg13: memref<1x32xf32, #tpu.memory_space<vmem>>, %arg14: memref<32x128xbf16, #tpu.memory_space<vmem>>, %arg15: memref<1x128xf32, #tpu.memory_space<vmem>>, %arg16: memref<128x32xbf16, #tpu.memory_space<vmem>>, %arg17: memref<1x32xf32, #tpu.memory_space<vmem>>, %arg18: memref<1x8x32xf32, #tpu.memory_space<vmem>>) attributes {dimension_semantics = [#tpu.dimension_semantics<parallel>, #tpu.dimension_semantics<parallel>], iteration_bounds = array<i64: 2, 1>, scalar_prefetch = 0 : i64, scratch_operands = 0 : i64, tpu.core_type = #tpu.core_type<tc>, window_params = [{transform_indices = @transform_0, window_bounds = array<i64: 1, 8, 32>}, {transform_indices = @transform_1, window_bounds = array<i64: 1, 8, 32>}, {transform_indices = @transform_2, window_bounds = array<i64: 1, 8, 1>}, {transform_indices = @transform_3, window_bounds = array<i64: 1, 1, 8>}, {pipeline_mode = #tpu.pipeline_mode<synchronous>, transform_indices = @transform_4, window_bounds = array<i64: 32, 256>}, {pipeline_mode = #tpu.pipeline_mode<synchronous>, transform_indices = @transform_5, window_bounds = array<i64: 32, 512>}, {pipeline_mode = #tpu.pipeline_mode<synchronous>, transform_indices = @transform_6, window_bounds = array<i64: 256, 32>}, {pipeline_mode = #tpu.pipeline_mode<synchronous>, transform_indices = @transform_7, window_bounds = array<i64: 1, 32>}, {pipeline_mode = #tpu.pipeline_mode<synchronous>, transform_indices = @transform_8, window_bounds = array<i64: 1, 32>}, {pipeline_mode = #tpu.pipeline_mode<synchronous>, transform_indices = @transform_9, window_bounds = array<i64: 1, 32>}, {pipeline_mode = #tpu.pipeline_mode<synchronous>, transform_indices = @transform_10, window_bounds = array<i64: 1, 32>}, {pipeline_mode = #tpu.pipeline_mode<synchronous>, transform_indices = @transform_11, window_bounds = array<i64: 1, 32>}, {pipeline_mode = #tpu.pipeline_mode<synchronous>, transform_indices = @transform_12, window_bounds = array<i64: 32, 128>}, {pipeline_mode = #tpu.pipeline_mode<synchronous>, transform_indices = @transform_13, window_bounds = array<i64: 1, 128>}, {pipeline_mode = #tpu.pipeline_mode<synchronous>, transform_indices = @transform_14, window_bounds = array<i64: 128, 32>}, {pipeline_mode = #tpu.pipeline_mode<synchronous>, transform_indices = @transform_15, window_bounds = array<i64: 1, 32>}, {transform_indices = @transform_16, window_bounds = array<i64: 1, 8, 32>}]} {
    %c0 = arith.constant 0 : index
    %c0_0 = arith.constant 0 : index
    %c0_1 = arith.constant 0 : index
    %0 = vector.load %arg2[%c0, %c0_0, %c0_1] : memref<1x8x32xf32, #tpu.memory_space<vmem>>, vector<1x8x32xf32>
    %1 = vector.shape_cast %0 : vector<1x8x32xf32> to vector<8x32xf32>
    %cst = arith.constant 0.176776692 : f32
    %2 = vector.broadcast %cst : f32 to vector<8x32xf32>
    %3 = arith.mulf %1, %2 : vector<8x32xf32>
    %4 = arith.truncf %3 : vector<8x32xf32> to vector<8x32xbf16>
    %c0_2 = arith.constant 0 : index
    %c0_3 = arith.constant 0 : index
    %c0_4 = arith.constant 0 : index
    %5 = vector.load %arg3[%c0_2, %c0_3, %c0_4] : memref<1x8x32xf32, #tpu.memory_space<vmem>>, vector<1x8x32xf32>
    %6 = vector.shape_cast %5 : vector<1x8x32xf32> to vector<8x32xf32>
    %7 = arith.truncf %6 : vector<8x32xf32> to vector<8x32xbf16>
    %c0_5 = arith.constant 0 : index
    %c0_6 = arith.constant 0 : index
    %8 = vector.load %arg6[%c0_5, %c0_6] : memref<32x256xbf16, #tpu.memory_space<vmem>>, vector<32x256xbf16>
    %cst_7 = arith.constant dense<0.000000e+00> : vector<8x256xf32>
    %9 = tpu.matmul %4, %8, %cst_7 {dimension_numbers = #tpu.dot_dimension_numbers<[1], [0], [0], [1], [0, 0, 1, 1], [], []>} : vector<8x32xbf16>, vector<32x256xbf16>, vector<8x256xf32> -> vector<8x256xf32>
    %c0_8 = arith.constant 0 : index
    %c0_9 = arith.constant 0 : index
    %10 = vector.load %arg7[%c0_8, %c0_9] : memref<32x512xbf16, #tpu.memory_space<vmem>>, vector<32x512xbf16>
    %cst_10 = arith.constant dense<0.000000e+00> : vector<8x512xf32>
    %11 = tpu.matmul %7, %10, %cst_10 {dimension_numbers = #tpu.dot_dimension_numbers<[1], [0], [0], [1], [0, 0, 1, 1], [], []>} : vector<8x32xbf16>, vector<32x512xbf16>, vector<8x512xf32> -> vector<8x512xf32>
    %12 = arith.truncf %9 : vector<8x256xf32> to vector<8x256xbf16>
    %13 = vector.shape_cast %12 : vector<8x256xbf16> to vector<8x8x32xbf16>
    %14 = vector.extract_strided_slice %11 {offsets = [0, 0], sizes = [8, 256], strides = [1, 1]} : vector<8x512xf32> to vector<8x256xf32>
    %15 = arith.truncf %14 : vector<8x256xf32> to vector<8x256xbf16>
    %16 = vector.shape_cast %15 : vector<8x256xbf16> to vector<8x8x32xbf16>
    %17 = vector.extract_strided_slice %11 {offsets = [0, 256], sizes = [8, 256], strides = [1, 1]} : vector<8x512xf32> to vector<8x256xf32>
    %18 = arith.truncf %17 : vector<8x256xf32> to vector<8x256xbf16>
    %19 = vector.shape_cast %18 : vector<8x256xbf16> to vector<8x8x32xbf16>
    "tpu.trace_start"() <{level = 10 : i32, message = "qhe,khe->hqk"}> : () -> ()
    %cst_11 = arith.constant dense<0.000000e+00> : vector<8x8x8xf32>
    %20 = tpu.matmul %13, %16, %cst_11 {dimension_numbers = #tpu.dot_dimension_numbers<[2], [2], [0], [0], [0, 1, 0, 0, 1, 0], [1], [1]>} : vector<8x8x32xbf16>, vector<8x8x32xbf16>, vector<8x8x8xf32> -> vector<8x8x8xf32>
    "tpu.trace_stop"() : () -> ()
    %c0_12 = arith.constant 0 : index
    %c0_13 = arith.constant 0 : index
    %c0_14 = arith.constant 0 : index
    %21 = vector.load %arg4[%c0_12, %c0_13, %c0_14] : memref<1x8x1xf32, #tpu.memory_space<vmem>>, vector<1x8x1xf32>
    %22 = vector.shape_cast %21 : vector<1x8x1xf32> to vector<8x1xf32>
    %c0_15 = arith.constant 0 : index
    %c0_16 = arith.constant 0 : index
    %c0_17 = arith.constant 0 : index
    %23 = vector.load %arg5[%c0_15, %c0_16, %c0_17] : memref<1x1x8xf32, #tpu.memory_space<vmem>>, vector<1x1x8xf32>
    %24 = vector.shape_cast %23 : vector<1x1x8xf32> to vector<1x8xf32>
    %25 = vector.broadcast %22 : vector<8x1xf32> to vector<8x8xf32>
    %26 = vector.broadcast %24 : vector<1x8xf32> to vector<8x8xf32>
    %27 = arith.mulf %25, %26 : vector<8x8xf32>
    %cst_18 = arith.constant 0.000000e+00 : f32
    %28 = vector.broadcast %cst_18 : f32 to vector<8x8xf32>
    %29 = arith.cmpf oeq, %27, %28 : vector<8x8xf32>
    %30 = vector.shape_cast %29 : vector<8x8xi1> to vector<1x8x8xi1>
    %cst_19 = arith.constant -1.000000e+09 : f32
    %31 = vector.shape_cast %30 : vector<1x8x8xi1> to vector<1x8x8xi1>
    %32 = vector.broadcast %31 : vector<1x8x8xi1> to vector<8x8x8xi1>
    %33 = vector.broadcast %cst_19 : f32 to vector<8x8x8xf32>
    %34 = arith.select %32, %33, %20 : vector<8x8x8xi1>, vector<8x8x8xf32>
    %cst_20 = arith.constant dense<0xFF800000> : vector<8x8xf32>
    %35 = vector.multi_reduction <maximumf>, %34, %cst_20 [2] : vector<8x8x8xf32> to vector<8x8xf32>
    %36 = vector.shape_cast %35 : vector<8x8xf32> to vector<8x8x1xf32>
    %37 = vector.broadcast %36 : vector<8x8x1xf32> to vector<8x8x8xf32>
    %38 = arith.subf %34, %37 : vector<8x8x8xf32>
    %39 = math.exp %38 : vector<8x8x8xf32>
    %cst_21 = arith.constant dense<0.000000e+00> : vector<8x8xf32>
    %40 = vector.multi_reduction <add>, %39, %cst_21 [2] : vector<8x8x8xf32> to vector<8x8xf32>
    %41 = vector.shape_cast %40 : vector<8x8xf32> to vector<8x8x1xf32>
    %42 = tpu.reciprocal %41 {approx = true} : vector<8x8x1xf32> -> vector<8x8x1xf32>
    %43 = vector.broadcast %42 : vector<8x8x1xf32> to vector<8x8x8xf32>
    %44 = arith.mulf %39, %43 : vector<8x8x8xf32>
    %45 = arith.truncf %44 : vector<8x8x8xf32> to vector<8x8x8xbf16>
    "tpu.trace_start"() <{level = 10 : i32, message = "hqk,khe->qhe"}> : () -> ()
    %cst_22 = arith.constant dense<0.000000e+00> : vector<8x32x8xf32>
    %46 = tpu.matmul %19, %45, %cst_22 {dimension_numbers = #tpu.dot_dimension_numbers<[0], [2], [2], [1], [0, 1, 0, 2, 1, 1], [1], [0]>} : vector<8x8x32xbf16>, vector<8x8x8xbf16>, vector<8x32x8xf32> -> vector<8x32x8xf32>
    %47 = tpu.transpose %46, [2, 0, 1] : vector<8x32x8xf32> -> vector<8x8x32xf32>
    "tpu.trace_stop"() : () -> ()
    %48 = vector.shape_cast %47 : vector<8x8x32xf32> to vector<8x256xf32>
    %49 = arith.truncf %48 : vector<8x256xf32> to vector<8x256xbf16>
    %c0_23 = arith.constant 0 : index
    %c0_24 = arith.constant 0 : index
    %50 = vector.load %arg8[%c0_23, %c0_24] : memref<256x32xbf16, #tpu.memory_space<vmem>>, vector<256x32xbf16>
    %cst_25 = arith.constant dense<0.000000e+00> : vector<8x32xf32>
    %51 = tpu.matmul %49, %50, %cst_25 {dimension_numbers = #tpu.dot_dimension_numbers<[1], [0], [0], [1], [0, 0, 1, 1], [], []>} : vector<8x256xbf16>, vector<256x32xbf16>, vector<8x32xf32> -> vector<8x32xf32>
    %c0_26 = arith.constant 0 : index
    %c0_27 = arith.constant 0 : index
    %52 = vector.load %arg9[%c0_26, %c0_27] : memref<1x32xf32, #tpu.memory_space<vmem>>, vector<1x32xf32>
    %53 = vector.broadcast %52 : vector<1x32xf32> to vector<8x32xf32>
    %54 = arith.addf %51, %53 : vector<8x32xf32>
    %55 = arith.addf %54, %1 : vector<8x32xf32>
    %c0_28 = arith.constant 0 : index
    %c0_29 = arith.constant 0 : index
    %56 = vector.load %arg10[%c0_28, %c0_29] : memref<1x32xf32, #tpu.memory_space<vmem>>, vector<1x32xf32>
    %c0_30 = arith.constant 0 : index
    %c0_31 = arith.constant 0 : index
    %57 = vector.load %arg11[%c0_30, %c0_31] : memref<1x32xf32, #tpu.memory_space<vmem>>, vector<1x32xf32>
    %cst_32 = arith.constant dense<0.000000e+00> : vector<8xf32>
    %58 = vector.multi_reduction <add>, %55, %cst_32 [1] : vector<8x32xf32> to vector<8xf32>
    %59 = vector.shape_cast %58 : vector<8xf32> to vector<8x1xf32>
    %cst_33 = arith.constant 3.200000e+01 : f32
    %60 = vector.broadcast %cst_33 : f32 to vector<8x1xf32>
    %61 = arith.divf %59, %60 : vector<8x1xf32>
    %62 = vector.broadcast %61 : vector<8x1xf32> to vector<8x32xf32>
    %63 = arith.subf %55, %62 : vector<8x32xf32>
    %64 = arith.mulf %63, %63 : vector<8x32xf32>
    %cst_34 = arith.constant dense<0.000000e+00> : vector<8xf32>
    %65 = vector.multi_reduction <add>, %64, %cst_34 [1] : vector<8x32xf32> to vector<8xf32>
    %66 = vector.shape_cast %65 : vector<8xf32> to vector<8x1xf32>
    %cst_35 = arith.constant 3.200000e+01 : f32
    %67 = vector.broadcast %cst_35 : f32 to vector<8x1xf32>
    %68 = arith.divf %66, %67 : vector<8x1xf32>
    %69 = vector.broadcast %61 : vector<8x1xf32> to vector<8x32xf32>
    %70 = arith.subf %55, %69 : vector<8x32xf32>
    %cst_36 = arith.constant 9.99999974E-6 : f32
    %71 = vector.broadcast %cst_36 : f32 to vector<8x1xf32>
    %72 = arith.addf %68, %71 : vector<8x1xf32>
    %73 = math.rsqrt %72 : vector<8x1xf32>
    %74 = vector.broadcast %73 : vector<8x1xf32> to vector<8x32xf32>
    %75 = arith.mulf %70, %74 : vector<8x32xf32>
    %76 = vector.broadcast %56 : vector<1x32xf32> to vector<8x32xf32>
    %77 = arith.mulf %75, %76 : vector<8x32xf32>
    %78 = vector.broadcast %57 : vector<1x32xf32> to vector<8x32xf32>
    %79 = arith.addf %77, %78 : vector<8x32xf32>
    %80 = arith.truncf %79 : vector<8x32xf32> to vector<8x32xbf16>
    %c0_37 = arith.constant 0 : index
    %c0_38 = arith.constant 0 : index
    %81 = vector.load %arg14[%c0_37, %c0_38] : memref<32x128xbf16, #tpu.memory_space<vmem>>, vector<32x128xbf16>
    %cst_39 = arith.constant dense<0.000000e+00> : vector<8x128xf32>
    %82 = tpu.matmul %80, %81, %cst_39 {dimension_numbers = #tpu.dot_dimension_numbers<[1], [0], [0], [1], [0, 0, 1, 1], [], []>} : vector<8x32xbf16>, vector<32x128xbf16>, vector<8x128xf32> -> vector<8x128xf32>
    %c0_40 = arith.constant 0 : index
    %c0_41 = arith.constant 0 : index
    %83 = vector.load %arg15[%c0_40, %c0_41] : memref<1x128xf32, #tpu.memory_space<vmem>>, vector<1x128xf32>
    %84 = vector.broadcast %83 : vector<1x128xf32> to vector<8x128xf32>
    %85 = arith.addf %82, %84 : vector<8x128xf32>
    %cst_42 = arith.constant 0.000000e+00 : f32
    %86 = vector.broadcast %cst_42 : f32 to vector<8x128xf32>
    %87 = arith.maximumf %85, %86 : vector<8x128xf32>
    %88 = arith.truncf %87 : vector<8x128xf32> to vector<8x128xbf16>
    %c0_43 = arith.constant 0 : index
    %c0_44 = arith.constant 0 : index
    %89 = vector.load %arg16[%c0_43, %c0_44] : memref<128x32xbf16, #tpu.memory_space<vmem>>, vector<128x32xbf16>
    %cst_45 = arith.constant dense<0.000000e+00> : vector<8x32xf32>
    %90 = tpu.matmul %88, %89, %cst_45 {dimension_numbers = #tpu.dot_dimension_numbers<[1], [0], [0], [1], [0, 0, 1, 1], [], []>} : vector<8x128xbf16>, vector<128x32xbf16>, vector<8x32xf32> -> vector<8x32xf32>
    %c0_46 = arith.constant 0 : index
    %c0_47 = arith.constant 0 : index
    %91 = vector.load %arg17[%c0_46, %c0_47] : memref<1x32xf32, #tpu.memory_space<vmem>>, vector<1x32xf32>
    %92 = vector.broadcast %91 : vector<1x32xf32> to vector<8x32xf32>
    %93 = arith.addf %90, %92 : vector<8x32xf32>
    %94 = arith.addf %93, %79 : vector<8x32xf32>
    %c0_48 = arith.constant 0 : index
    %c0_49 = arith.constant 0 : index
    %95 = vector.load %arg12[%c0_48, %c0_49] : memref<1x32xf32, #tpu.memory_space<vmem>>, vector<1x32xf32>
    %c0_50 = arith.constant 0 : index
    %c0_51 = arith.constant 0 : index
    %96 = vector.load %arg13[%c0_50, %c0_51] : memref<1x32xf32, #tpu.memory_space<vmem>>, vector<1x32xf32>
    %cst_52 = arith.constant dense<0.000000e+00> : vector<8xf32>
    %97 = vector.multi_reduction <add>, %94, %cst_52 [1] : vector<8x32xf32> to vector<8xf32>
    %98 = vector.shape_cast %97 : vector<8xf32> to vector<8x1xf32>
    %cst_53 = arith.constant 3.200000e+01 : f32
    %99 = vector.broadcast %cst_53 : f32 to vector<8x1xf32>
    %100 = arith.divf %98, %99 : vector<8x1xf32>
    %101 = vector.broadcast %100 : vector<8x1xf32> to vector<8x32xf32>
    %102 = arith.subf %94, %101 : vector<8x32xf32>
    %103 = arith.mulf %102, %102 : vector<8x32xf32>
    %cst_54 = arith.constant dense<0.000000e+00> : vector<8xf32>
    %104 = vector.multi_reduction <add>, %103, %cst_54 [1] : vector<8x32xf32> to vector<8xf32>
    %105 = vector.shape_cast %104 : vector<8xf32> to vector<8x1xf32>
    %cst_55 = arith.constant 3.200000e+01 : f32
    %106 = vector.broadcast %cst_55 : f32 to vector<8x1xf32>
    %107 = arith.divf %105, %106 : vector<8x1xf32>
    %108 = vector.broadcast %100 : vector<8x1xf32> to vector<8x32xf32>
    %109 = arith.subf %94, %108 : vector<8x32xf32>
    %cst_56 = arith.constant 9.99999974E-6 : f32
    %110 = vector.broadcast %cst_56 : f32 to vector<8x1xf32>
    %111 = arith.addf %107, %110 : vector<8x1xf32>
    %112 = math.rsqrt %111 : vector<8x1xf32>
    %113 = vector.broadcast %112 : vector<8x1xf32> to vector<8x32xf32>
    %114 = arith.mulf %109, %113 : vector<8x32xf32>
    %115 = vector.broadcast %95 : vector<1x32xf32> to vector<8x32xf32>
    %116 = arith.mulf %114, %115 : vector<8x32xf32>
    %117 = vector.broadcast %96 : vector<1x32xf32> to vector<8x32xf32>
    %118 = arith.addf %116, %117 : vector<8x32xf32>
    %c0_57 = arith.constant 0 : index
    %c0_58 = arith.constant 0 : index
    %c0_59 = arith.constant 0 : index
    %119 = vector.load %arg18[%c0_57, %c0_58, %c0_59] : memref<1x8x32xf32, #tpu.memory_space<vmem>>, vector<1x8x32xf32>
    %120 = vector.shape_cast %119 : vector<1x8x32xf32> to vector<8x32xf32>
    %121 = vector.shape_cast %118 : vector<8x32xf32> to vector<1x8x32xf32>
    tpu.vector_store %arg18[%c0_57, %c0_58, %c0_59], %121 {strides = array<i32>} : memref<1x8x32xf32, #tpu.memory_space<vmem>>, vector<1x8x32xf32>,
    return
  }
  func.func @transform_0(%arg0: i32, %arg1: i32) -> (i32, i32, i32) {
    %c0_i32 = arith.constant 0 : i32
    %c0_i32_0 = arith.constant 0 : i32
    return %arg0, %arg1, %c0_i32 : i32, i32, i32
  }
  func.func @transform_1(%arg0: i32, %arg1: i32) -> (i32, i32, i32) {
    %c0_i32 = arith.constant 0 : i32
    %c0_i32_0 = arith.constant 0 : i32
    %c0_i32_1 = arith.constant 0 : i32
    return %arg0, %c0_i32, %c0_i32_0 : i32, i32, i32
  }
  func.func @transform_2(%arg0: i32, %arg1: i32) -> (i32, i32, i32) {
    %c0_i32 = arith.constant 0 : i32
    %c0_i32_0 = arith.constant 0 : i32
    return %arg0, %arg1, %c0_i32 : i32, i32, i32
  }
  func.func @transform_3(%arg0: i32, %arg1: i32) -> (i32, i32, i32) {
    %c0_i32 = arith.constant 0 : i32
    %c0_i32_0 = arith.constant 0 : i32
    %c0_i32_1 = arith.constant 0 : i32
    return %arg0, %c0_i32, %c0_i32_0 : i32, i32, i32
  }
  func.func @transform_4(%arg0: i32, %arg1: i32) -> (i32, i32) {
    %c0_i32 = arith.constant 0 : i32
    %c0_i32_0 = arith.constant 0 : i32
    %c0_i32_1 = arith.constant 0 : i32
    return %c0_i32, %c0_i32_0 : i32, i32
  }
  func.func @transform_5(%arg0: i32, %arg1: i32) -> (i32, i32) {
    %c0_i32 = arith.constant 0 : i32
    %c0_i32_0 = arith.constant 0 : i32
    %c0_i32_1 = arith.constant 0 : i32
    return %c0_i32, %c0_i32_0 : i32, i32
  }
  func.func @transform_6(%arg0: i32, %arg1: i32) -> (i32, i32) {
    %c0_i32 = arith.constant 0 : i32
    %c0_i32_0 = arith.constant 0 : i32
    %c0_i32_1 = arith.constant 0 : i32
    return %c0_i32, %c0_i32_0 : i32, i32
  }
  func.func @transform_7(%arg0: i32, %arg1: i32) -> (i32, i32) {
    %c0_i32 = arith.constant 0 : i32
    %c0_i32_0 = arith.constant 0 : i32
    %c0_i32_1 = arith.constant 0 : i32
    return %c0_i32, %c0_i32_0 : i32, i32
  }
  func.func @transform_8(%arg0: i32, %arg1: i32) -> (i32, i32) {
    %c0_i32 = arith.constant 0 : i32
    %c0_i32_0 = arith.constant 0 : i32
    %c0_i32_1 = arith.constant 0 : i32
    return %c0_i32, %c0_i32_0 : i32, i32
  }
  func.func @transform_9(%arg0: i32, %arg1: i32) -> (i32, i32) {
    %c0_i32 = arith.constant 0 : i32
    %c0_i32_0 = arith.constant 0 : i32
    %c0_i32_1 = arith.constant 0 : i32
    return %c0_i32, %c0_i32_0 : i32, i32
  }
  func.func @transform_10(%arg0: i32, %arg1: i32) -> (i32, i32) {
    %c0_i32 = arith.constant 0 : i32
    %c0_i32_0 = arith.constant 0 : i32
    %c0_i32_1 = arith.constant 0 : i32
    return %c0_i32, %c0_i32_0 : i32, i32
  }
  func.func @transform_11(%arg0: i32, %arg1: i32) -> (i32, i32) {
    %c0_i32 = arith.constant 0 : i32
    %c0_i32_0 = arith.constant 0 : i32
    %c0_i32_1 = arith.constant 0 : i32
    return %c0_i32, %c0_i32_0 : i32, i32
  }
  func.func @transform_12(%arg0: i32, %arg1: i32) -> (i32, i32) {
    %c0_i32 = arith.constant 0 : i32
    %c0_i32_0 = arith.constant 0 : i32
    %c0_i32_1 = arith.constant 0 : i32
    return %c0_i32, %c0_i32_0 : i32, i32
  }
  func.func @transform_13(%arg0: i32, %arg1: i32) -> (i32, i32) {
    %c0_i32 = arith.constant 0 : i32
    %c0_i32_0 = arith.constant 0 : i32
    %c0_i32_1 = arith.constant 0 : i32
    return %c0_i32, %c0_i32_0 : i32, i32
  }
  func.func @transform_14(%arg0: i32, %arg1: i32) -> (i32, i32) {
    %c0_i32 = arith.constant 0 : i32
    %c0_i32_0 = arith.constant 0 : i32
    %c0_i32_1 = arith.constant 0 : i32
    return %c0_i32, %c0_i32_0 : i32, i32
  }
  func.func @transform_15(%arg0: i32, %arg1: i32) -> (i32, i32) {
    %c0_i32 = arith.constant 0 : i32
    %c0_i32_0 = arith.constant 0 : i32
    %c0_i32_1 = arith.constant 0 : i32
    return %c0_i32, %c0_i32_0 : i32, i32
  }
  func.func @transform_16(%arg0: i32, %arg1: i32) -> (i32, i32, i32) {
    %c0_i32 = arith.constant 0 : i32
    %c0_i32_0 = arith.constant 0 : i32
    return %arg0, %arg1, %c0_i32 : i32, i32, i32
  }
}

</mosaic_0001>

<llo_original>
// kernel: tpu_custom_call.1
$region0: #{tpu_custom_call.1}
  #allocation0 [shape = 'u32[]', space=smem, size = 0x4, offset = 0x4, fixed_abs, tag = 'smem constant byte address 0x4 - core index']
  #allocation1 [shape = 'u32[144,128]{1,0:T(1,128)}', space=vmem, size = 0x12000, scoped, tag = 'internal scratch']
  %s0 = inlined_call_operand.vmem [shape: f32[2,8,32], index: 0, kind: input, shape index: {}]
  %s1 = inlined_call_operand.vmem [shape: f32[2,8,32], index: 1, kind: input, shape index: {}]
  %s2 = inlined_call_operand.vmem [shape: f32[2,8,1], index: 2, kind: input, shape index: {}]
  %s3 = inlined_call_operand.vmem [shape: f32[2,1,8], index: 3, kind: input, shape index: {}]
  %s4 = inlined_call_operand.vmem [shape: bf16[32,256], index: 4, kind: input, shape index: {}]
  %s5 = inlined_call_operand.vmem [shape: bf16[32,512], index: 5, kind: input, shape index: {}]
  %s6 = inlined_call_operand.vmem [shape: bf16[256,32], index: 6, kind: input, shape index: {}]
  %s7 = inlined_call_operand.vmem [shape: f32[1,32], index: 7, kind: input, shape index: {}]
  %s8 = inlined_call_operand.vmem [shape: f32[1,32], index: 8, kind: input, shape index: {}]
  %s9 = inlined_call_operand.vmem [shape: f32[1,32], index: 9, kind: input, shape index: {}]
  %s10 = inlined_call_operand.vmem [shape: f32[1,32], index: 10, kind: input, shape index: {}]
  %s11 = inlined_call_operand.vmem [shape: f32[1,32], index: 11, kind: input, shape index: {}]
  %s12 = inlined_call_operand.vmem [shape: bf16[32,128], index: 12, kind: input, shape index: {}]
  %s13 = inlined_call_operand.vmem [shape: f32[1,128], index: 13, kind: input, shape index: {}]
  %s14 = inlined_call_operand.vmem [shape: bf16[128,32], index: 14, kind: input, shape index: {}]
  %s15 = inlined_call_operand.vmem [shape: f32[1,32], index: 15, kind: input, shape index: {}]
  %s16 = inlined_call_operand.hbm [shape: f32[2,8,32], index: 16, kind: output, shape index: {}]
  %s17 = sld [smem:[#allocation0]]
  $region97: #{tpu_custom_call.1} parent=0
    _
  %s19 = ssub.s32 1, %s17
  %s20 = scalar_select 0, %s19, %s17
  $region1: #{tpu_custom_call.1} parent=0
    #allocation2 [shape = 'u8[8192]{0}', space=vmem, size = 0x2000, scoped, tag = 'output window, operand 0']
    #allocation3 [shape = 's32[2]{0}', space=sflag, size = 0x8, scoped, tag = 'scoped memory for tpu_custom_call.1']
    %21 = vsyncpa [#allocation3], 0
    %s22 = scalar_lea.sflag [#allocation3], 1
    %23 = vsyncpa %s22, 0
    loop: start=0, step=1, limit=4
    $region2: #{tpu_custom_call.1} parent=1 // loop_pre_header
      _
    $region3: #{tpu_custom_call.1} parent=1 // loop_header
      %s25 = sphi 0, %s29
      %p26 = scmp.ge.s32.totalorder %s25, 4
      %s32 = sphi 0, %s44
      %s33 = sphi 0, %s40
      %s34 = sphi 0, %s32
      %s35 = sphi 0, %s33
      %s36 = sphi 0, %s34
      %s37 = sphi 0, %s35
      %s49 = sphi 0, %s51
      %s52 = sphi 0, %s49
      %s53 = sphi 0, %s52
      %s69 = sphi 0, %s53
      %s75 = sphi 0, %s77
      %s78 = sphi 0, %s75
      %s79 = sphi 0, %s78
      %s95 = sphi 0, %s79
      %s103 = sphi 0, %s105
      %s106 = sphi 0, %s103
      %s107 = sphi 0, %s106
      %s123 = sphi 0, %s107
      %s129 = sphi 0, %s131
      %s132 = sphi 0, %s129
      %s133 = sphi 0, %s132
      %s149 = sphi 0, %s133
      %s153 = sphi 0, %s153
      %s155 = sphi 0, %s153
      %s156 = sphi 0, %s155
      %s170 = sphi 0, %s156
      %s174 = sphi 0, %s174
      %s176 = sphi 0, %s174
      %s177 = sphi 0, %s176
      %s191 = sphi 0, %s177
      %s195 = sphi 0, %s195
      %s197 = sphi 0, %s195
      %s198 = sphi 0, %s197
      %s212 = sphi 0, %s198
      %s216 = sphi 0, %s216
      %s218 = sphi 0, %s216
      %s219 = sphi 0, %s218
      %s233 = sphi 0, %s219
      %s237 = sphi 0, %s237
      %s239 = sphi 0, %s237
      %s240 = sphi 0, %s239
      %s254 = sphi 0, %s240
      %s258 = sphi 0, %s258
      %s260 = sphi 0, %s258
      %s261 = sphi 0, %s260
      %s275 = sphi 0, %s261
      %s279 = sphi 0, %s279
      %s281 = sphi 0, %s279
      %s282 = sphi 0, %s281
      %s296 = sphi 0, %s282
      %s300 = sphi 0, %s300
      %s302 = sphi 0, %s300
      %s303 = sphi 0, %s302
      %s317 = sphi 0, %s303
      %s321 = sphi 0, %s321
      %s323 = sphi 0, %s321
      %s324 = sphi 0, %s323
      %s338 = sphi 0, %s324
      %s342 = sphi 0, %s342
      %s344 = sphi 0, %s342
      %s345 = sphi 0, %s344
      %s359 = sphi 0, %s345
      %s363 = sphi 0, %s363
      %s365 = sphi 0, %s363
      %s366 = sphi 0, %s365
      %s380 = sphi 0, %s366
      %s384 = sphi 0, %s384
      %s386 = sphi 0, %s384
      %s387 = sphi 0, %s386
      %s401 = sphi 0, %s387
      %s409 = sphi 0, %s411
      %s412 = sphi 0, %s409
      %s413 = sphi 0, %s412
      %s429 = sphi 0, %s413
    $region4: #{tpu_custom_call.1} parent=1 // loop_header_branch
      %28 = sbr.rel (%p26) target = $region8
    $region5: #{tpu_custom_call.1} parent=1 // loop_body
      %s30 = ssub.s32 %s25, 1
      %s31 = ssub.s32 %s25, 2
      %s38 = sadd.s32 1, %s33
      %p39 = scmp.ge.s32.totalorder %s38, 1
      %s40 = scalar_select %p39, 0, %s38
      %s41 = sadd.s32 1, %s32
      %s42 = scalar_select %p39, %s41, %s32
      %p43 = scmp.ge.s32.totalorder %s42, 2
      %s44 = scalar_select %p43, 0, %s42
      %s45 = ssub.s32 %s32, %s44
      %s46 = ssub.s32 %s33, %s40
      %s47 = sor.u32 %s45, %s46
      %p48 = scmp.eq.s32.totalorder %s47, 0
      %s50 = sadd.s32 %s49, 1
      %s51 = scalar_select %p48, %s49, %s50
      %p54 = pneg %p48
      %p55 = scmp.eq.s32.totalorder %s25, 1
      %p56 = por %p54, %p55
      %p57 = scmp.ne.s32.totalorder %s49, %s52
      %p58 = scmp.eq.s32.totalorder %s25, 0
      %p59 = por %p57, %p58
      %p60 = scmp.ne.s32.totalorder %s49, %s52
      %p61 = scmp.eq.s32.totalorder %s30, 1
      %p62 = por %p60, %p61
      %p63 = scmp.ne.s32.totalorder %s52, %s53
      %p64 = scmp.eq.s32.totalorder %s30, 0
      %p65 = por %p63, %p64
      %p66 = scmp.ne.s32.totalorder %s52, %s53
      %p67 = scmp.eq.s32.totalorder %s31, 1
      %p68 = por %p66, %p67
      %p70 = scmp.ne.s32.totalorder %s53, %s69
      %p71 = scmp.eq.s32.totalorder %s31, 0
      %p72 = por %p70, %p71
      %s73 = ssub.s32 %s32, %s44
      %p74 = scmp.eq.s32.totalorder %s73, 0
      %s76 = sadd.s32 %s75, 1
      %s77 = scalar_select %p74, %s75, %s76
      %p80 = pneg %p74
      %p81 = scmp.eq.s32.totalorder %s25, 1
      %p82 = por %p80, %p81
      %p83 = scmp.ne.s32.totalorder %s75, %s78
      %p84 = scmp.eq.s32.totalorder %s25, 0
      %p85 = por %p83, %p84
      %p86 = scmp.ne.s32.totalorder %s75, %s78
      %p87 = scmp.eq.s32.totalorder %s30, 1
      %p88 = por %p86, %p87
      %p89 = scmp.ne.s32.totalorder %s78, %s79
      %p90 = scmp.eq.s32.totalorder %s30, 0
      %p91 = por %p89, %p90
      %p92 = scmp.ne.s32.totalorder %s78, %s79
      %p93 = scmp.eq.s32.totalorder %s31, 1
      %p94 = por %p92, %p93
      %p96 = scmp.ne.s32.totalorder %s79, %s95
      %p97 = scmp.eq.s32.totalorder %s31, 0
      %p98 = por %p96, %p97
      %s99 = ssub.s32 %s32, %s44
      %s100 = ssub.s32 %s33, %s40
      %s101 = sor.u32 %s99, %s100
      %p102 = scmp.eq.s32.totalorder %s101, 0
      %s104 = sadd.s32 %s103, 1
      %s105 = scalar_select %p102, %s103, %s104
      %p108 = pneg %p102
      %p109 = scmp.eq.s32.totalorder %s25, 1
      %p110 = por %p108, %p109
      %p111 = scmp.ne.s32.totalorder %s103, %s106
      %p112 = scmp.eq.s32.totalorder %s25, 0
      %p113 = por %p111, %p112
      %p114 = scmp.ne.s32.totalorder %s103, %s106
      %p115 = scmp.eq.s32.totalorder %s30, 1
      %p116 = por %p114, %p115
      %p117 = scmp.ne.s32.totalorder %s106, %s107
      %p118 = scmp.eq.s32.totalorder %s30, 0
      %p119 = por %p117, %p118
      %p120 = scmp.ne.s32.totalorder %s106, %s107
      %p121 = scmp.eq.s32.totalorder %s31, 1
      %p122 = por %p120, %p121
      %p124 = scmp.ne.s32.totalorder %s107, %s123
      %p125 = scmp.eq.s32.totalorder %s31, 0
      %p126 = por %p124, %p125
      %s127 = ssub.s32 %s32, %s44
      %p128 = scmp.eq.s32.totalorder %s127, 0
      %s130 = sadd.s32 %s129, 1
      %s131 = scalar_select %p128, %s129, %s130
      %p134 = pneg %p128
      %p135 = scmp.eq.s32.totalorder %s25, 1
      %p136 = por %p134, %p135
      %p137 = scmp.ne.s32.totalorder %s129, %s132
      %p138 = scmp.eq.s32.totalorder %s25, 0
      %p139 = por %p137, %p138
      %p140 = scmp.ne.s32.totalorder %s129, %s132
      %p141 = scmp.eq.s32.totalorder %s30, 1
      %p142 = por %p140, %p141
      %p143 = scmp.ne.s32.totalorder %s132, %s133
      %p144 = scmp.eq.s32.totalorder %s30, 0
      %p145 = por %p143, %p144
      %p146 = scmp.ne.s32.totalorder %s132, %s133
      %p147 = scmp.eq.s32.totalorder %s31, 1
      %p148 = por %p146, %p147
      %p150 = scmp.ne.s32.totalorder %s133, %s149
      %p151 = scmp.eq.s32.totalorder %s31, 0
      %p152 = por %p150, %p151
      %s154 = sadd.s32 %s153, 1
      %p157 = scmp.eq.s32.totalorder %s25, 1
      %p158 = scmp.ne.s32.totalorder %s153, %s155
      %p159 = scmp.eq.s32.totalorder %s25, 0
      %p160 = por %p158, %p159
      %p161 = scmp.ne.s32.totalorder %s153, %s155
      %p162 = scmp.eq.s32.totalorder %s30, 1
      %p163 = por %p161, %p162
      %p164 = scmp.ne.s32.totalorder %s155, %s156
      %p165 = scmp.eq.s32.totalorder %s30, 0
      %p166 = por %p164, %p165
      %p167 = scmp.ne.s32.totalorder %s155, %s156
      %p168 = scmp.eq.s32.totalorder %s31, 1
      %p169 = por %p167, %p168
      %p171 = scmp.ne.s32.totalorder %s156, %s170
      %p172 = scmp.eq.s32.totalorder %s31, 0
      %p173 = por %p171, %p172
      %s175 = sadd.s32 %s174, 1
      %p178 = scmp.eq.s32.totalorder %s25, 1
      %p179 = scmp.ne.s32.totalorder %s174, %s176
      %p180 = scmp.eq.s32.totalorder %s25, 0
      %p181 = por %p179, %p180
      %p182 = scmp.ne.s32.totalorder %s174, %s176
      %p183 = scmp.eq.s32.totalorder %s30, 1
      %p184 = por %p182, %p183
      %p185 = scmp.ne.s32.totalorder %s176, %s177
      %p186 = scmp.eq.s32.totalorder %s30, 0
      %p187 = por %p185, %p186
      %p188 = scmp.ne.s32.totalorder %s176, %s177
      %p189 = scmp.eq.s32.totalorder %s31, 1
      %p190 = por %p188, %p189
      %p192 = scmp.ne.s32.totalorder %s177, %s191
      %p193 = scmp.eq.s32.totalorder %s31, 0
      %p194 = por %p192, %p193
      %s196 = sadd.s32 %s195, 1
      %p199 = scmp.eq.s32.totalorder %s25, 1
      %p200 = scmp.ne.s32.totalorder %s195, %s197
      %p201 = scmp.eq.s32.totalorder %s25, 0
      %p202 = por %p200, %p201
      %p203 = scmp.ne.s32.totalorder %s195, %s197
      %p204 = scmp.eq.s32.totalorder %s30, 1
      %p205 = por %p203, %p204
      %p206 = scmp.ne.s32.totalorder %s197, %s198
      %p207 = scmp.eq.s32.totalorder %s30, 0
      %p208 = por %p206, %p207
      %p209 = scmp.ne.s32.totalorder %s197, %s198
      %p210 = scmp.eq.s32.totalorder %s31, 1
      %p211 = por %p209, %p210
      %p213 = scmp.ne.s32.totalorder %s198, %s212
      %p214 = scmp.eq.s32.totalorder %s31, 0
      %p215 = por %p213, %p214
      %s217 = sadd.s32 %s216, 1
      %p220 = scmp.eq.s32.totalorder %s25, 1
      %p221 = scmp.ne.s32.totalorder %s216, %s218
      %p222 = scmp.eq.s32.totalorder %s25, 0
      %p223 = por %p221, %p222
      %p224 = scmp.ne.s32.totalorder %s216, %s218
      %p225 = scmp.eq.s32.totalorder %s30, 1
      %p226 = por %p224, %p225
      %p227 = scmp.ne.s32.totalorder %s218, %s219
      %p228 = scmp.eq.s32.totalorder %s30, 0
      %p229 = por %p227, %p228
      %p230 = scmp.ne.s32.totalorder %s218, %s219
      %p231 = scmp.eq.s32.totalorder %s31, 1
      %p232 = por %p230, %p231
      %p234 = scmp.ne.s32.totalorder %s219, %s233
      %p235 = scmp.eq.s32.totalorder %s31, 0
      %p236 = por %p234, %p235
      %s238 = sadd.s32 %s237, 1
      %p241 = scmp.eq.s32.totalorder %s25, 1
      %p242 = scmp.ne.s32.totalorder %s237, %s239
      %p243 = scmp.eq.s32.totalorder %s25, 0
      %p244 = por %p242, %p243
      %p245 = scmp.ne.s32.totalorder %s237, %s239
      %p246 = scmp.eq.s32.totalorder %s30, 1
      %p247 = por %p245, %p246
      %p248 = scmp.ne.s32.totalorder %s239, %s240
      %p249 = scmp.eq.s32.totalorder %s30, 0
      %p250 = por %p248, %p249
      %p251 = scmp.ne.s32.totalorder %s239, %s240
      %p252 = scmp.eq.s32.totalorder %s31, 1
      %p253 = por %p251, %p252
      %p255 = scmp.ne.s32.totalorder %s240, %s254
      %p256 = scmp.eq.s32.totalorder %s31, 0
      %p257 = por %p255, %p256
      %s259 = sadd.s32 %s258, 1
      %p262 = scmp.eq.s32.totalorder %s25, 1
      %p263 = scmp.ne.s32.totalorder %s258, %s260
      %p264 = scmp.eq.s32.totalorder %s25, 0
      %p265 = por %p263, %p264
      %p266 = scmp.ne.s32.totalorder %s258, %s260
      %p267 = scmp.eq.s32.totalorder %s30, 1
      %p268 = por %p266, %p267
      %p269 = scmp.ne.s32.totalorder %s260, %s261
      %p270 = scmp.eq.s32.totalorder %s30, 0
      %p271 = por %p269, %p270
      %p272 = scmp.ne.s32.totalorder %s260, %s261
      %p273 = scmp.eq.s32.totalorder %s31, 1
      %p274 = por %p272, %p273
      %p276 = scmp.ne.s32.totalorder %s261, %s275
      %p277 = scmp.eq.s32.totalorder %s31, 0
      %p278 = por %p276, %p277
      %s280 = sadd.s32 %s279, 1
      %p283 = scmp.eq.s32.totalorder %s25, 1
      %p284 = scmp.ne.s32.totalorder %s279, %s281
      %p285 = scmp.eq.s32.totalorder %s25, 0
      %p286 = por %p284, %p285
      %p287 = scmp.ne.s32.totalorder %s279, %s281
      %p288 = scmp.eq.s32.totalorder %s30, 1
      %p289 = por %p287, %p288
      %p290 = scmp.ne.s32.totalorder %s281, %s282
      %p291 = scmp.eq.s32.totalorder %s30, 0
      %p292 = por %p290, %p291
      %p293 = scmp.ne.s32.totalorder %s281, %s282
      %p294 = scmp.eq.s32.totalorder %s31, 1
      %p295 = por %p293, %p294
      %p297 = scmp.ne.s32.totalorder %s282, %s296
      %p298 = scmp.eq.s32.totalorder %s31, 0
      %p299 = por %p297, %p298
      %s301 = sadd.s32 %s300, 1
      %p304 = scmp.eq.s32.totalorder %s25, 1
      %p305 = scmp.ne.s32.totalorder %s300, %s302
      %p306 = scmp.eq.s32.totalorder %s25, 0
      %p307 = por %p305, %p306
      %p308 = scmp.ne.s32.totalorder %s300, %s302
      %p309 = scmp.eq.s32.totalorder %s30, 1
      %p310 = por %p308, %p309
      %p311 = scmp.ne.s32.totalorder %s302, %s303
      %p312 = scmp.eq.s32.totalorder %s30, 0
      %p313 = por %p311, %p312
      %p314 = scmp.ne.s32.totalorder %s302, %s303
      %p315 = scmp.eq.s32.totalorder %s31, 1
      %p316 = por %p314, %p315
      %p318 = scmp.ne.s32.totalorder %s303, %s317
      %p319 = scmp.eq.s32.totalorder %s31, 0
      %p320 = por %p318, %p319
      %s322 = sadd.s32 %s321, 1
      %p325 = scmp.eq.s32.totalorder %s25, 1
      %p326 = scmp.ne.s32.totalorder %s321, %s323
      %p327 = scmp.eq.s32.totalorder %s25, 0
      %p328 = por %p326, %p327
      %p329 = scmp.ne.s32.totalorder %s321, %s323
      %p330 = scmp.eq.s32.totalorder %s30, 1
      %p331 = por %p329, %p330
      %p332 = scmp.ne.s32.totalorder %s323, %s324
      %p333 = scmp.eq.s32.totalorder %s30, 0
      %p334 = por %p332, %p333
      %p335 = scmp.ne.s32.totalorder %s323, %s324
      %p336 = scmp.eq.s32.totalorder %s31, 1
      %p337 = por %p335, %p336
      %p339 = scmp.ne.s32.totalorder %s324, %s338
      %p340 = scmp.eq.s32.totalorder %s31, 0
      %p341 = por %p339, %p340
      %s343 = sadd.s32 %s342, 1
      %p346 = scmp.eq.s32.totalorder %s25, 1
      %p347 = scmp.ne.s32.totalorder %s342, %s344
      %p348 = scmp.eq.s32.totalorder %s25, 0
      %p349 = por %p347, %p348
      %p350 = scmp.ne.s32.totalorder %s342, %s344
      %p351 = scmp.eq.s32.totalorder %s30, 1
      %p352 = por %p350, %p351
      %p353 = scmp.ne.s32.totalorder %s344, %s345
      %p354 = scmp.eq.s32.totalorder %s30, 0
      %p355 = por %p353, %p354
      %p356 = scmp.ne.s32.totalorder %s344, %s345
      %p357 = scmp.eq.s32.totalorder %s31, 1
      %p358 = por %p356, %p357
      %p360 = scmp.ne.s32.totalorder %s345, %s359
      %p361 = scmp.eq.s32.totalorder %s31, 0
      %p362 = por %p360, %p361
      %s364 = sadd.s32 %s363, 1
      %p367 = scmp.eq.s32.totalorder %s25, 1
      %p368 = scmp.ne.s32.totalorder %s363, %s365
      %p369 = scmp.eq.s32.totalorder %s25, 0
      %p370 = por %p368, %p369
      %p371 = scmp.ne.s32.totalorder %s363, %s365
      %p372 = scmp.eq.s32.totalorder %s30, 1
      %p373 = por %p371, %p372
      %p374 = scmp.ne.s32.totalorder %s365, %s366
      %p375 = scmp.eq.s32.totalorder %s30, 0
      %p376 = por %p374, %p375
      %p377 = scmp.ne.s32.totalorder %s365, %s366
      %p378 = scmp.eq.s32.totalorder %s31, 1
      %p379 = por %p377, %p378
      %p381 = scmp.ne.s32.totalorder %s366, %s380
      %p382 = scmp.eq.s32.totalorder %s31, 0
      %p383 = por %p381, %p382
      %s385 = sadd.s32 %s384, 1
      %p388 = scmp.eq.s32.totalorder %s25, 1
      %p389 = scmp.ne.s32.totalorder %s384, %s386
      %p390 = scmp.eq.s32.totalorder %s25, 0
      %p391 = por %p389, %p390
      %p392 = scmp.ne.s32.totalorder %s384, %s386
      %p393 = scmp.eq.s32.totalorder %s30, 1
      %p394 = por %p392, %p393
      %p395 = scmp.ne.s32.totalorder %s386, %s387
      %p396 = scmp.eq.s32.totalorder %s30, 0
      %p397 = por %p395, %p396
      %p398 = scmp.ne.s32.totalorder %s386, %s387
      %p399 = scmp.eq.s32.totalorder %s31, 1
      %p400 = por %p398, %p399
      %p402 = scmp.ne.s32.totalorder %s387, %s401
      %p403 = scmp.eq.s32.totalorder %s31, 0
      %p404 = por %p402, %p403
      %s405 = ssub.s32 %s32, %s44
      %s406 = ssub.s32 %s33, %s40
      %s407 = sor.u32 %s405, %s406
      %p408 = scmp.eq.s32.totalorder %s407, 0
      %s410 = sadd.s32 %s409, 1
      %s411 = scalar_select %p408, %s409, %s410
      %p414 = pneg %p408
      %p415 = scmp.eq.s32.totalorder %s25, 1
      %p416 = por %p414, %p415
      %p417 = scmp.ne.s32.totalorder %s409, %s412
      %p418 = scmp.eq.s32.totalorder %s25, 0
      %p419 = por %p417, %p418
      %p420 = scmp.ne.s32.totalorder %s409, %s412
      %p421 = scmp.eq.s32.totalorder %s30, 1
      %p422 = por %p420, %p421
      %p423 = scmp.ne.s32.totalorder %s412, %s413
      %p424 = scmp.eq.s32.totalorder %s30, 0
      %p425 = por %p423, %p424
      %p426 = scmp.ne.s32.totalorder %s412, %s413
      %p427 = scmp.eq.s32.totalorder %s31, 1
      %p428 = por %p426, %p427
      %p430 = scmp.ne.s32.totalorder %s413, %s429
      %p431 = scmp.eq.s32.totalorder %s31, 0
      %p432 = por %p430, %p431
      %p433 = scmp.le.s32.totalorder 1, %s25
      %p434 = scmp.lt.s32.totalorder %s25, 3
      %p435 = pnand %p433, %p434
      %p436 = pneg %p435
      // Predicated region
      $region9: #{tpu_custom_call.1} parent=5 // pred_check
        _
      $region10: #{tpu_custom_call.1} parent=5 // pred_check_branch
        %438 = sbr.rel (%p435) target = $region12
      $region11: #{tpu_custom_call.1} parent=5 // pred_region
        %s439 = ssub.s32 %s25, 1
        // Predicated region
        $region13: #{tpu_custom_call.1} parent=11 // pred_check
          %p440 = pneg %p166
        $region14: #{tpu_custom_call.1} parent=11 // pred_check_branch
          %442 = sbr.rel (%p440) target = $region16
        $region15: #{tpu_custom_call.1} parent=11 // pred_region
          _
        $region16: #{tpu_custom_call.1} parent=11 // pred_fallthru
          _
        // Predicated region
        $region17: #{tpu_custom_call.1} parent=11 // pred_check
          %p443 = pneg %p187
        $region18: #{tpu_custom_call.1} parent=11 // pred_check_branch
          %445 = sbr.rel (%p443) target = $region20
        $region19: #{tpu_custom_call.1} parent=11 // pred_region
          _
        $region20: #{tpu_custom_call.1} parent=11 // pred_fallthru
          _
        // Predicated region
        $region21: #{tpu_custom_call.1} parent=11 // pred_check
          %p446 = pneg %p208
        $region22: #{tpu_custom_call.1} parent=11 // pred_check_branch
          %448 = sbr.rel (%p446) target = $region24
        $region23: #{tpu_custom_call.1} parent=11 // pred_region
          _
        $region24: #{tpu_custom_call.1} parent=11 // pred_fallthru
          _
        // Predicated region
        $region25: #{tpu_custom_call.1} parent=11 // pred_check
          %p449 = pneg %p229
        $region26: #{tpu_custom_call.1} parent=11 // pred_check_branch
          %451 = sbr.rel (%p449) target = $region28
        $region27: #{tpu_custom_call.1} parent=11 // pred_region
          _
        $region28: #{tpu_custom_call.1} parent=11 // pred_fallthru
          _
        // Predicated region
        $region29: #{tpu_custom_call.1} parent=11 // pred_check
          %p452 = pneg %p250
        $region30: #{tpu_custom_call.1} parent=11 // pred_check_branch
          %454 = sbr.rel (%p452) target = $region32
        $region31: #{tpu_custom_call.1} parent=11 // pred_region
          _
        $region32: #{tpu_custom_call.1} parent=11 // pred_fallthru
          _
        // Predicated region
        $region33: #{tpu_custom_call.1} parent=11 // pred_check
          %p455 = pneg %p271
        $region34: #{tpu_custom_call.1} parent=11 // pred_check_branch
          %457 = sbr.rel (%p455) target = $region36
        $region35: #{tpu_custom_call.1} parent=11 // pred_region
          _
        $region36: #{tpu_custom_call.1} parent=11 // pred_fallthru
          _
        // Predicated region
        $region37: #{tpu_custom_call.1} parent=11 // pred_check
          %p458 = pneg %p292
        $region38: #{tpu_custom_call.1} parent=11 // pred_check_branch
          %460 = sbr.rel (%p458) target = $region40
        $region39: #{tpu_custom_call.1} parent=11 // pred_region
          _
        $region40: #{tpu_custom_call.1} parent=11 // pred_fallthru
          _
        // Predicated region
        $region41: #{tpu_custom_call.1} parent=11 // pred_check
          %p461 = pneg %p313
        $region42: #{tpu_custom_call.1} parent=11 // pred_check_branch
          %463 = sbr.rel (%p461) target = $region44
        $region43: #{tpu_custom_call.1} parent=11 // pred_region
          _
        $region44: #{tpu_custom_call.1} parent=11 // pred_fallthru
          _
        // Predicated region
        $region45: #{tpu_custom_call.1} parent=11 // pred_check
          %p464 = pneg %p334
        $region46: #{tpu_custom_call.1} parent=11 // pred_check_branch
          %466 = sbr.rel (%p464) target = $region48
        $region47: #{tpu_custom_call.1} parent=11 // pred_region
          _
        $region48: #{tpu_custom_call.1} parent=11 // pred_fallthru
          _
        // Predicated region
        $region49: #{tpu_custom_call.1} parent=11 // pred_check
          %p467 = pneg %p355
        $region50: #{tpu_custom_call.1} parent=11 // pred_check_branch
          %469 = sbr.rel (%p467) target = $region52
        $region51: #{tpu_custom_call.1} parent=11 // pred_region
          _
        $region52: #{tpu_custom_call.1} parent=11 // pred_fallthru
          _
        // Predicated region
        $region53: #{tpu_custom_call.1} parent=11 // pred_check
          %p470 = pneg %p376
        $region54: #{tpu_custom_call.1} parent=11 // pred_check_branch
          %472 = sbr.rel (%p470) target = $region56
        $region55: #{tpu_custom_call.1} parent=11 // pred_region
          _
        $region56: #{tpu_custom_call.1} parent=11 // pred_fallthru
          _
        // Predicated region
        $region57: #{tpu_custom_call.1} parent=11 // pred_check
          %p473 = pneg %p397
        $region58: #{tpu_custom_call.1} parent=11 // pred_check_branch
          %475 = sbr.rel (%p473) target = $region60
        $region59: #{tpu_custom_call.1} parent=11 // pred_region
          _
        $region60: #{tpu_custom_call.1} parent=11 // pred_fallthru
          _
      $region12: #{tpu_custom_call.1} parent=5 // pred_fallthru
        _
      %p476 = scmp.lt.s32.totalorder %s25, 2
      // Predicated region
      $region61: #{tpu_custom_call.1} parent=5 // pred_check
        %p477 = pneg %p476
      $region62: #{tpu_custom_call.1} parent=5 // pred_check_branch
        %479 = sbr.rel (%p477) target = $region64
      $region63: #{tpu_custom_call.1} parent=5 // pred_region
        // Predicated region
        $region65: #{tpu_custom_call.1} parent=63 // pred_check
          %p480 = pneg %p59
        $region66: #{tpu_custom_call.1} parent=63 // pred_check_branch
          %482 = sbr.rel (%p480) target = $region68
        $region67: #{tpu_custom_call.1} parent=63 // pred_region
          %p483 = scmp.lt.s32.totalorder %s32, 1
          %s484 = scalar_select %p483, %s32, 1
          %p485 = scmp.lt.s32.totalorder %s33, 0
          %s486 = scalar_select %p485, %s33, 0
          %s487 = sadd.s32 %s486, %s484
          %s488 = smul.addr %s487, 8
          %s489 = scalar_lea.vmem %s0, %s488
        $region68: #{tpu_custom_call.1} parent=63 // pred_fallthru
          _
        // Predicated region
        $region69: #{tpu_custom_call.1} parent=63 // pred_check
          %p490 = pneg %p85
        $region70: #{tpu_custom_call.1} parent=63 // pred_check_branch
          %492 = sbr.rel (%p490) target = $region72
        $region71: #{tpu_custom_call.1} parent=63 // pred_region
          %p493 = scmp.lt.s32.totalorder %s32, 1
          %s494 = scalar_select %p493, %s32, 1
          %s495 = smul.addr %s494, 8
          %s496 = scalar_lea.vmem %s1, %s495
        $region72: #{tpu_custom_call.1} parent=63 // pred_fallthru
          _
        // Predicated region
        $region73: #{tpu_custom_call.1} parent=63 // pred_check
          %p497 = pneg %p113
        $region74: #{tpu_custom_call.1} parent=63 // pred_check_branch
          %499 = sbr.rel (%p497) target = $region76
        $region75: #{tpu_custom_call.1} parent=63 // pred_region
          %p500 = scmp.lt.s32.totalorder %s32, 1
          %s501 = scalar_select %p500, %s32, 1
          %p502 = scmp.lt.s32.totalorder %s33, 0
          %s503 = scalar_select %p502, %s33, 0
          %s504 = sadd.s32 %s503, %s501
          %s505 = smul.addr %s504, 8
          %s506 = scalar_lea.vmem %s2, %s505
        $region76: #{tpu_custom_call.1} parent=63 // pred_fallthru
          _
        // Predicated region
        $region77: #{tpu_custom_call.1} parent=63 // pred_check
          %p507 = pneg %p139
        $region78: #{tpu_custom_call.1} parent=63 // pred_check_branch
          %509 = sbr.rel (%p507) target = $region80
        $region79: #{tpu_custom_call.1} parent=63 // pred_region
          %p510 = scmp.lt.s32.totalorder %s32, 1
          %s511 = scalar_select %p510, %s32, 1
          %s512 = scalar_lea.vmem %s3, %s511
        $region80: #{tpu_custom_call.1} parent=63 // pred_fallthru
          _
      $region64: #{tpu_custom_call.1} parent=5 // pred_fallthru
        _
      %p513 = scmp.le.s32.totalorder 1, %s25
      %p514 = scmp.lt.s32.totalorder %s25, 3
      %p515 = pnand %p513, %p514
      %p516 = pneg %p515
      // Predicated region
      $region81: #{tpu_custom_call.1} parent=5 // pred_check
        _
      $region82: #{tpu_custom_call.1} parent=5 // pred_check_branch
        %518 = sbr.rel (%p515) target = $region84
      $region83: #{tpu_custom_call.1} parent=5 // pred_region
        %s519 = ssub.s32 %s25, 1
        %p520 = scmp.lt.s32.totalorder %s34, 1
        %s521 = scalar_select %p520, %s34, 1
        %p522 = scmp.lt.s32.totalorder %s35, 0
        %s523 = scalar_select %p522, %s35, 0
        %s524 = sadd.s32 %s523, %s521
        %s525 = smul.addr %s524, 8
        %s526 = scalar_lea.vmem %s0, %s525
        %p527 = pneg %p65
        %p528 = pneg %p62
        %p529 = scmp.lt.s32.totalorder %s34, 1
        %s530 = scalar_select %p529, %s34, 1
        %s531 = smul.addr %s530, 8
        %s532 = scalar_lea.vmem %s1, %s531
        %p533 = pneg %p91
        %p534 = pneg %p88
        %p535 = scmp.lt.s32.totalorder %s34, 1
        %s536 = scalar_select %p535, %s34, 1
        %p537 = scmp.lt.s32.totalorder %s35, 0
        %s538 = scalar_select %p537, %s35, 0
        %s539 = sadd.s32 %s538, %s536
        %s540 = smul.addr %s539, 8
        %s541 = scalar_lea.vmem %s2, %s540
        %p542 = pneg %p119
        %p543 = pneg %p116
        %p544 = scmp.lt.s32.totalorder %s34, 1
        %s545 = scalar_select %p544, %s34, 1
        %s546 = scalar_lea.vmem %s3, %s545
        %p547 = pneg %p145
        %p548 = pneg %p142
        %p549 = pneg %p166
        %p550 = pneg %p163
        %p551 = pneg %p187
        %p552 = pneg %p184
        %p553 = pneg %p208
        %p554 = pneg %p205
        %p555 = pneg %p229
        %p556 = pneg %p226
        %p557 = pneg %p250
        %p558 = pneg %p247
        %p559 = pneg %p271
        %p560 = pneg %p268
        %p561 = pneg %p292
        %p562 = pneg %p289
        %p563 = pneg %p313
        %p564 = pneg %p310
        %p565 = pneg %p334
        %p566 = pneg %p331
        %p567 = pneg %p355
        %p568 = pneg %p352
        %p569 = pneg %p376
        %p570 = pneg %p373
        %p571 = pneg %p397
        %p572 = pneg %p394
        %p573 = pneg %p425
        %p574 = pneg %p422
        %s575 = sand.u32 %s412, 1
        %s576 = scalar_lea.sflag [#allocation3], %s575
        %s577 = sand.u32 %s412, 1
        %s578 = smul.addr %s577, 8
        %s579 = scalar_lea.vmem [#allocation2], %s578
        %p580 = scmp.lt.s32.totalorder %s34, 1
        %s581 = scalar_select %p580, %s34, 1
        %p582 = scmp.lt.s32.totalorder %s35, 0
        %s583 = scalar_select %p582, %s35, 0
        %s584 = sadd.s32 %s583, %s581
        %s585 = smul.addr %s584, 8
        %s586 = scalar_lea.vmem %s0, %s585
        %p587 = scmp.lt.s32.totalorder %s34, 1
        %s588 = scalar_select %p587, %s34, 1
        %s589 = smul.addr %s588, 8
        %s590 = scalar_lea.vmem %s1, %s589
        %p591 = scmp.lt.s32.totalorder %s34, 1
        %s592 = scalar_select %p591, %s34, 1
        %p593 = scmp.lt.s32.totalorder %s35, 0
        %s594 = scalar_select %p593, %s35, 0
        %s595 = sadd.s32 %s594, %s592
        %s596 = smul.addr %s595, 8
        %s597 = scalar_lea.vmem %s2, %s596
        %p598 = scmp.lt.s32.totalorder %s34, 1
        %s599 = scalar_select %p598, %s34, 1
        %s600 = scalar_lea.vmem %s3, %s599
        %v602 = vld [vmem:[%s586] sm:$0xff]
        %v603 = vmul.f32 %v602, 0.17677669
        %v604 = vpack.c.bf16 %v603, %v603
        %v605 = vld [vmem:[%s590] sm:$0xff]
        %v606 = vpack.c.bf16 %v605, %v605
        %v607 = vld [vmem:[%s4] sm:$0xff]
        %v608 = vld [vmem:[%s4 + $0x8] sm:$0xff]
        %v609 = vld [vmem:[%s4 + $0x10] sm:$0xff]
        %v610 = vld [vmem:[%s4 + $0x18] sm:$0xff]
        %v615 = vunpack.c.l.b16 %v607
        %v616 = vunpack.c.h.b16 %v607
        %v617 = vunpack.c.l.b16 %v608
        %v618 = vunpack.c.h.b16 %v608
        %v619 = vunpack.c.l.b16 %v609
        %v620 = vunpack.c.h.b16 %v609
        %v621 = vunpack.c.l.b16 %v610
        %v622 = vunpack.c.h.b16 %v610
        %v623 = vpack.c.b16 %v617, %v615
        %v624 = vpack.c.b16 %v618, %v616
        %v625 = vpack.c.b16 %v621, %v619
        %v626 = vpack.c.b16 %v622, %v620
        %vm631 = vcmask 261120
        %v633 = vsel %vm631, %v604, 0
        %635 = vmatprep.subr.bf16.mxu0 %v624
        %636 = vmatpush1.bf16.msra.mxu0 %v623
        %637 = vmatprep.subr.bf16.mxu0 %v626
        %638 = vmatpush1.bf16.msra.mxu0 %v625
        %639 = vmatprep.subr.bf16.mxu0 0
        %640 = vmatpush1.bf16.msra.mxu0 0
        %641 = vmatprep.subr.bf16.mxu0 0
        %642 = vmatpush1.bf16.msra.mxu0 0
        %643 = vmatprep.subr.bf16.mxu0 0
        %644 = vmatpush1.bf16.msra.mxu0 0
        %645 = vmatprep.subr.bf16.mxu0 0
        %646 = vmatpush1.bf16.msra.mxu0 0
        %647 = vmatprep.subr.bf16.mxu0 0
        %648 = vmatpush1.bf16.msra.mxu0 0
        %649 = vmatprep.subr.bf16.mxu0 0
        %650 = vmatpush1.bf16.msra.mxu0 0
        %651 = vmatprep.subr.bf16.mxu0 0
        %652 = vmatpush1.bf16.msra.mxu0 0
        %653 = vmatprep.subr.bf16.mxu0 0
        %654 = vmatpush1.bf16.msra.mxu0 0
        %655 = vmatprep.subr.bf16.mxu0 0
        %656 = vmatpush1.bf16.msra.mxu0 0
        %657 = vmatprep.subr.bf16.mxu0 0
        %658 = vmatpush1.bf16.msra.mxu0 0
        %659 = vmatprep.subr.bf16.mxu0 0
        %660 = vmatpush1.bf16.msra.mxu0 0
        %661 = vmatprep.subr.bf16.mxu0 0
        %662 = vmatpush1.bf16.msra.mxu0 0
        %663 = vmatprep.subr.bf16.mxu0 0
        %664 = vmatpush1.bf16.msra.mxu0 0
        %665 = vmatprep.subr.bf16.mxu0 0
        %666 = vmatpush1.bf16.msra.mxu0 0
        %667 = vmatprep.mubr.bf16.mxu0 0
        %668 = vmatmul.mubr.bf16.gmra.mrb[0].mxu0 %v633
        %v669 = vpop.f32.mrb[0].mxu0
        %v670 = vadd.f32 0.0, %v669
        %v671 = vpop.f32.mrb[0].mxu0
        %v672 = vadd.f32 0.0, %v671
        %v673 = vpop.f32.mrb[0].mxu0
        %v674 = vpop.f32.mrb[0].mxu0
        %675 = vdwg.mxu0
        %v676 = vld [vmem:[%s5] sm:$0xff]
        %v677 = vld [vmem:[%s5 + $0x8] sm:$0xff]
        %v678 = vld [vmem:[%s5 + $0x10] sm:$0xff]
        %v679 = vld [vmem:[%s5 + $0x18] sm:$0xff]
        %v680 = vld [vmem:[%s5 + $0x20] sm:$0xff]
        %v681 = vld [vmem:[%s5 + $0x28] sm:$0xff]
        %v682 = vld [vmem:[%s5 + $0x30] sm:$0xff]
        %v683 = vld [vmem:[%s5 + $0x38] sm:$0xff]
        %v692 = vunpack.c.l.b16 %v676
        %v693 = vunpack.c.h.b16 %v676
        %v694 = vunpack.c.l.b16 %v677
        %v695 = vunpack.c.h.b16 %v677
        %v696 = vunpack.c.l.b16 %v678
        %v697 = vunpack.c.h.b16 %v678
        %v698 = vunpack.c.l.b16 %v679
        %v699 = vunpack.c.h.b16 %v679
        %v700 = vunpack.c.l.b16 %v680
        %v701 = vunpack.c.h.b16 %v680
        %v702 = vunpack.c.l.b16 %v681
        %v703 = vunpack.c.h.b16 %v681
        %v704 = vunpack.c.l.b16 %v682
        %v705 = vunpack.c.h.b16 %v682
        %v706 = vunpack.c.l.b16 %v683
        %v707 = vunpack.c.h.b16 %v683
        %v708 = vpack.c.b16 %v696, %v692
        %v709 = vpack.c.b16 %v697, %v693
        %v710 = vpack.c.b16 %v698, %v694
        %v711 = vpack.c.b16 %v699, %v695
        %v712 = vpack.c.b16 %v704, %v700
        %v713 = vpack.c.b16 %v705, %v701
        %v714 = vpack.c.b16 %v706, %v702
        %v715 = vpack.c.b16 %v707, %v703
        %v725 = vsel %vm631, %v606, 0
        %727 = vmatprep.subr.bf16.mxu0 %v709
        %728 = vmatpush1.bf16.msra.mxu0 %v708
        %729 = vmatprep.subr.bf16.mxu0 %v713
        %730 = vmatpush1.bf16.msra.mxu0 %v712
        %731 = vmatprep.subr.bf16.mxu0 0
        %732 = vmatpush1.bf16.msra.mxu0 0
        %733 = vmatprep.subr.bf16.mxu0 0
        %734 = vmatpush1.bf16.msra.mxu0 0
        %735 = vmatprep.subr.bf16.mxu0 0
        %736 = vmatpush1.bf16.msra.mxu0 0
        %737 = vmatprep.subr.bf16.mxu0 0
        %738 = vmatpush1.bf16.msra.mxu0 0
        %739 = vmatprep.subr.bf16.mxu0 0
        %740 = vmatpush1.bf16.msra.mxu0 0
        %741 = vmatprep.subr.bf16.mxu0 0
        %742 = vmatpush1.bf16.msra.mxu0 0
        %743 = vmatprep.subr.bf16.mxu0 0
        %744 = vmatpush1.bf16.msra.mxu0 0
        %745 = vmatprep.subr.bf16.mxu0 0
        %746 = vmatpush1.bf16.msra.mxu0 0
        %747 = vmatprep.subr.bf16.mxu0 0
        %748 = vmatpush1.bf16.msra.mxu0 0
        %749 = vmatprep.subr.bf16.mxu0 0
        %750 = vmatpush1.bf16.msra.mxu0 0
        %751 = vmatprep.subr.bf16.mxu0 0
        %752 = vmatpush1.bf16.msra.mxu0 0
        %753 = vmatprep.subr.bf16.mxu0 0
        %754 = vmatpush1.bf16.msra.mxu0 0
        %755 = vmatprep.subr.bf16.mxu0 0
        %756 = vmatpush1.bf16.msra.mxu0 0
        %757 = vmatprep.subr.bf16.mxu0 0
        %758 = vmatpush1.bf16.msra.mxu0 0
        %759 = vmatprep.mubr.bf16.mxu0 0
        %760 = vmatmul.mubr.bf16.gmra.mrb[0].mxu0 %v725
        %v761 = vpop.f32.mrb[0].mxu0
        %v762 = vadd.f32 0.0, %v761
        %v763 = vpop.f32.mrb[0].mxu0
        %v764 = vadd.f32 0.0, %v763
        %v765 = vpop.f32.mrb[0].mxu0
        %v766 = vpop.f32.mrb[0].mxu0
        %767 = vdwg.mxu0
        %768 = vmatprep.subr.bf16.mxu0 %v711
        %769 = vmatpush1.bf16.msra.mxu0 %v710
        %770 = vmatprep.subr.bf16.mxu0 %v715
        %771 = vmatpush1.bf16.msra.mxu0 %v714
        %772 = vmatprep.subr.bf16.mxu0 0
        %773 = vmatpush1.bf16.msra.mxu0 0
        %774 = vmatprep.subr.bf16.mxu0 0
        %775 = vmatpush1.bf16.msra.mxu0 0
        %776 = vmatprep.subr.bf16.mxu0 0
        %777 = vmatpush1.bf16.msra.mxu0 0
        %778 = vmatprep.subr.bf16.mxu0 0
        %779 = vmatpush1.bf16.msra.mxu0 0
        %780 = vmatprep.subr.bf16.mxu0 0
        %781 = vmatpush1.bf16.msra.mxu0 0
        %782 = vmatprep.subr.bf16.mxu0 0
        %783 = vmatpush1.bf16.msra.mxu0 0
        %784 = vmatprep.subr.bf16.mxu0 0
        %785 = vmatpush1.bf16.msra.mxu0 0
        %786 = vmatprep.subr.bf16.mxu0 0
        %787 = vmatpush1.bf16.msra.mxu0 0
        %788 = vmatprep.subr.bf16.mxu0 0
        %789 = vmatpush1.bf16.msra.mxu0 0
        %790 = vmatprep.subr.bf16.mxu0 0
        %791 = vmatpush1.bf16.msra.mxu0 0
        %792 = vmatprep.subr.bf16.mxu0 0
        %793 = vmatpush1.bf16.msra.mxu0 0
        %794 = vmatprep.subr.bf16.mxu0 0
        %795 = vmatpush1.bf16.msra.mxu0 0
        %796 = vmatprep.subr.bf16.mxu0 0
        %797 = vmatpush1.bf16.msra.mxu0 0
        %798 = vmatprep.subr.bf16.mxu0 0
        %799 = vmatpush1.bf16.msra.mxu0 0
        %800 = vmatprep.mubr.bf16.mxu0 0
        %801 = vmatmul.mubr.bf16.gmra.mrb[0].mxu0 %v725
        %v802 = vpop.f32.mrb[0].mxu0
        %v803 = vadd.f32 0.0, %v802
        %v804 = vpop.f32.mrb[0].mxu0
        %v805 = vadd.f32 0.0, %v804
        %v806 = vpop.f32.mrb[0].mxu0
        %v807 = vpop.f32.mrb[0].mxu0
        %808 = vdwg.mxu0
        %v809 = vpack.c.bf16 %v670, %v670
        %v810 = vpack.c.bf16 %v672, %v672
        %812 = vrot.lane.b32.xlu0 %v809, 96
        %v813 = vpop.permute.xlu0 %812
        %814 = vrot.lane.b32.xlu0 %v809, 64
        %v815 = vpop.permute.xlu0 %814
        %816 = vrot.lane.b32.xlu0 %v809, 32
        %v817 = vpop.permute.xlu0 %816
        %819 = vrot.lane.b32.xlu0 %v810, 96
        %v820 = vpop.permute.xlu0 %819
        %821 = vrot.lane.b32.xlu0 %v810, 64
        %v822 = vpop.permute.xlu0 %821
        %823 = vrot.lane.b32.xlu0 %v810, 32
        %v824 = vpop.permute.xlu0 %823
        %v825 = vpack.c.bf16 %v762, %v762
        %v826 = vpack.c.bf16 %v764, %v764
        %828 = vrot.lane.b32.xlu0 %v825, 96
        %v829 = vpop.permute.xlu0 %828
        %831 = vrot.lane.b32.xlu0 %v825, 64
        %v832 = vpop.permute.xlu0 %831
        %834 = vrot.lane.b32.xlu0 %v825, 32
        %v835 = vpop.permute.xlu0 %834
        %838 = vrot.lane.b32.xlu0 %v826, 96
        %v839 = vpop.permute.xlu0 %838
        %841 = vrot.lane.b32.xlu0 %v826, 64
        %v842 = vpop.permute.xlu0 %841
        %844 = vrot.lane.b32.xlu0 %v826, 32
        %v845 = vpop.permute.xlu0 %844
        %v847 = vpack.c.bf16 %v803, %v803
        %v848 = vpack.c.bf16 %v805, %v805
        %850 = vrot.lane.b32.xlu0 %v847, 96
        %v851 = vpop.permute.xlu0 %850
        %853 = vrot.lane.b32.xlu0 %v847, 64
        %v854 = vpop.permute.xlu0 %853
        %856 = vrot.lane.b32.xlu0 %v847, 32
        %v857 = vpop.permute.xlu0 %856
        %860 = vrot.lane.b32.xlu0 %v848, 96
        %v861 = vpop.permute.xlu0 %860
        %863 = vrot.lane.b32.xlu0 %v848, 64
        %v864 = vpop.permute.xlu0 %863
        %866 = vrot.lane.b32.xlu0 %v848, 32
        %v867 = vpop.permute.xlu0 %866
        %869 = vxpose.xlu0.c.b16.start [1/8] %v825, 128
        %870 = vxpose.xlu0.c.b16.cont [2/8] 0, 128
        %871 = vxpose.xlu0.c.b16.cont [3/8] 0, 128
        %872 = vxpose.xlu0.c.b16.cont [4/8] 0, 128
        %873 = vxpose.xlu0.c.b16.cont [5/8] 0, 128
        %874 = vxpose.xlu0.c.b16.cont [6/8] 0, 128
        %875 = vxpose.xlu0.c.b16.cont [7/8] 0, 128
        %876 = vxpose.xlu0.c.b16.end [8/8] 0, 128
        %v877 = vpop.trf.xlu0
        %v878 = vpop.trf.xlu0
        %v879 = vpop.trf.xlu0
        %v880 = vpop.trf.xlu0
        %v881 = vpop.trf.xlu0
        %v882 = vpop.trf.xlu0
        %v883 = vpop.trf.xlu0
        %v884 = vpop.trf.xlu0
        %885 = vxpose.xlu0.c.b16.start [1/8] %v829, 128
        %886 = vxpose.xlu0.c.b16.cont [2/8] 0, 128
        %887 = vxpose.xlu0.c.b16.cont [3/8] 0, 128
        %888 = vxpose.xlu0.c.b16.cont [4/8] 0, 128
        %889 = vxpose.xlu0.c.b16.cont [5/8] 0, 128
        %890 = vxpose.xlu0.c.b16.cont [6/8] 0, 128
        %891 = vxpose.xlu0.c.b16.cont [7/8] 0, 128
        %892 = vxpose.xlu0.c.b16.end [8/8] 0, 128
        %v893 = vpop.trf.xlu0
        %v894 = vpop.trf.xlu0
        %v895 = vpop.trf.xlu0
        %v896 = vpop.trf.xlu0
        %v897 = vpop.trf.xlu0
        %v898 = vpop.trf.xlu0
        %v899 = vpop.trf.xlu0
        %v900 = vpop.trf.xlu0
        %901 = vxpose.xlu0.c.b16.start [1/8] %v832, 128
        %902 = vxpose.xlu0.c.b16.cont [2/8] 0, 128
        %903 = vxpose.xlu0.c.b16.cont [3/8] 0, 128
        %904 = vxpose.xlu0.c.b16.cont [4/8] 0, 128
        %905 = vxpose.xlu0.c.b16.cont [5/8] 0, 128
        %906 = vxpose.xlu0.c.b16.cont [6/8] 0, 128
        %907 = vxpose.xlu0.c.b16.cont [7/8] 0, 128
        %908 = vxpose.xlu0.c.b16.end [8/8] 0, 128
        %v909 = vpop.trf.xlu0
        %v910 = vpop.trf.xlu0
        %v911 = vpop.trf.xlu0
        %v912 = vpop.trf.xlu0
        %v913 = vpop.trf.xlu0
        %v914 = vpop.trf.xlu0
        %v915 = vpop.trf.xlu0
        %v916 = vpop.trf.xlu0
        %917 = vxpose.xlu0.c.b16.start [1/8] %v835, 128
        %918 = vxpose.xlu0.c.b16.cont [2/8] 0, 128
        %919 = vxpose.xlu0.c.b16.cont [3/8] 0, 128
        %920 = vxpose.xlu0.c.b16.cont [4/8] 0, 128
        %921 = vxpose.xlu0.c.b16.cont [5/8] 0, 128
        %922 = vxpose.xlu0.c.b16.cont [6/8] 0, 128
        %923 = vxpose.xlu0.c.b16.cont [7/8] 0, 128
        %924 = vxpose.xlu0.c.b16.end [8/8] 0, 128
        %v925 = vpop.trf.xlu0
        %v926 = vpop.trf.xlu0
        %v927 = vpop.trf.xlu0
        %v928 = vpop.trf.xlu0
        %v929 = vpop.trf.xlu0
        %v930 = vpop.trf.xlu0
        %v931 = vpop.trf.xlu0
        %v932 = vpop.trf.xlu0
        %933 = vxpose.xlu0.c.b16.start [1/8] %v826, 128
        %934 = vxpose.xlu0.c.b16.cont [2/8] 0, 128
        %935 = vxpose.xlu0.c.b16.cont [3/8] 0, 128
        %936 = vxpose.xlu0.c.b16.cont [4/8] 0, 128
        %937 = vxpose.xlu0.c.b16.cont [5/8] 0, 128
        %938 = vxpose.xlu0.c.b16.cont [6/8] 0, 128
        %939 = vxpose.xlu0.c.b16.cont [7/8] 0, 128
        %940 = vxpose.xlu0.c.b16.end [8/8] 0, 128
        %v941 = vpop.trf.xlu0
        %v942 = vpop.trf.xlu0
        %v943 = vpop.trf.xlu0
        %v944 = vpop.trf.xlu0
        %v945 = vpop.trf.xlu0
        %v946 = vpop.trf.xlu0
        %v947 = vpop.trf.xlu0
        %v948 = vpop.trf.xlu0
        %949 = vxpose.xlu0.c.b16.start [1/8] %v839, 128
        %950 = vxpose.xlu0.c.b16.cont [2/8] 0, 128
        %951 = vxpose.xlu0.c.b16.cont [3/8] 0, 128
        %952 = vxpose.xlu0.c.b16.cont [4/8] 0, 128
        %953 = vxpose.xlu0.c.b16.cont [5/8] 0, 128
        %954 = vxpose.xlu0.c.b16.cont [6/8] 0, 128
        %955 = vxpose.xlu0.c.b16.cont [7/8] 0, 128
        %956 = vxpose.xlu0.c.b16.end [8/8] 0, 128
        %v957 = vpop.trf.xlu0
        %v958 = vpop.trf.xlu0
        %v959 = vpop.trf.xlu0
        %v960 = vpop.trf.xlu0
        %v961 = vpop.trf.xlu0
        %v962 = vpop.trf.xlu0
        %v963 = vpop.trf.xlu0
        %v964 = vpop.trf.xlu0
        %965 = vxpose.xlu0.c.b16.start [1/8] %v842, 128
        %966 = vxpose.xlu0.c.b16.cont [2/8] 0, 128
        %967 = vxpose.xlu0.c.b16.cont [3/8] 0, 128
        %968 = vxpose.xlu0.c.b16.cont [4/8] 0, 128
        %969 = vxpose.xlu0.c.b16.cont [5/8] 0, 128
        %970 = vxpose.xlu0.c.b16.cont [6/8] 0, 128
        %971 = vxpose.xlu0.c.b16.cont [7/8] 0, 128
        %972 = vxpose.xlu0.c.b16.end [8/8] 0, 128
        %v973 = vpop.trf.xlu0
        %v974 = vpop.trf.xlu0
        %v975 = vpop.trf.xlu0
        %v976 = vpop.trf.xlu0
        %v977 = vpop.trf.xlu0
        %v978 = vpop.trf.xlu0
        %v979 = vpop.trf.xlu0
        %v980 = vpop.trf.xlu0
        %981 = vxpose.xlu0.c.b16.start [1/8] %v845, 128
        %982 = vxpose.xlu0.c.b16.cont [2/8] 0, 128
        %983 = vxpose.xlu0.c.b16.cont [3/8] 0, 128
        %984 = vxpose.xlu0.c.b16.cont [4/8] 0, 128
        %985 = vxpose.xlu0.c.b16.cont [5/8] 0, 128
        %986 = vxpose.xlu0.c.b16.cont [6/8] 0, 128
        %987 = vxpose.xlu0.c.b16.cont [7/8] 0, 128
        %988 = vxpose.xlu0.c.b16.end [8/8] 0, 128
        %v989 = vpop.trf.xlu0
        %v990 = vpop.trf.xlu0
        %v991 = vpop.trf.xlu0
        %v992 = vpop.trf.xlu0
        %v993 = vpop.trf.xlu0
        %v994 = vpop.trf.xlu0
        %v995 = vpop.trf.xlu0
        %v996 = vpop.trf.xlu0
        %v998 = vsel %vm631, %v809, 0
        %1000 = vmatprep.subr.bf16.mxu0 0
        %1001 = vmatpush1.bf16.msra.mxu0 %v877
        %1002 = vmatprep.subr.bf16.mxu0 0
        %1003 = vmatpush1.bf16.msra.mxu0 %v878
        %1004 = vmatprep.subr.bf16.mxu0 0
        %1005 = vmatpush1.bf16.msra.mxu0 0
        %1006 = vmatprep.subr.bf16.mxu0 0
        %1007 = vmatpush1.bf16.msra.mxu0 0
        %1008 = vmatprep.subr.bf16.mxu0 0
        %1009 = vmatpush1.bf16.msra.mxu0 0
        %1010 = vmatprep.subr.bf16.mxu0 0
        %1011 = vmatpush1.bf16.msra.mxu0 0
        %1012 = vmatprep.subr.bf16.mxu0 0
        %1013 = vmatpush1.bf16.msra.mxu0 0
        %1014 = vmatprep.subr.bf16.mxu0 0
        %1015 = vmatpush1.bf16.msra.mxu0 0
        %1016 = vmatprep.subr.bf16.mxu0 0
        %1017 = vmatpush1.bf16.msra.mxu0 0
        %1018 = vmatprep.subr.bf16.mxu0 0
        %1019 = vmatpush1.bf16.msra.mxu0 0
        %1020 = vmatprep.subr.bf16.mxu0 0
        %1021 = vmatpush1.bf16.msra.mxu0 0
        %1022 = vmatprep.subr.bf16.mxu0 0
        %1023 = vmatpush1.bf16.msra.mxu0 0
        %1024 = vmatprep.subr.bf16.mxu0 0
        %1025 = vmatpush1.bf16.msra.mxu0 0
        %1026 = vmatprep.subr.bf16.mxu0 0
        %1027 = vmatpush1.bf16.msra.mxu0 0
        %1028 = vmatprep.subr.bf16.mxu0 0
        %1029 = vmatpush1.bf16.msra.mxu0 0
        %1030 = vmatprep.subr.bf16.mxu0 0
        %1031 = vmatpush1.bf16.msra.mxu0 0
        %1032 = vmatprep.mubr.bf16.mxu0 0
        %1033 = vmatmul.mubr.bf16.gmra.mrb[0].mxu0 %v998
        %v1034 = vpop.f32.mrb[0].mxu0
        %v1035 = vadd.f32 0.0, %v1034
        %v1036 = vpop.f32.mrb[0].mxu0
        %v1037 = vpop.f32.mrb[0].mxu0
        %v1038 = vpop.f32.mrb[0].mxu0
        %1039 = vdwg.mxu0
        %v1041 = vsel %vm631, %v813, 0
        %1043 = vmatprep.subr.bf16.mxu0 0
        %1044 = vmatpush1.bf16.msra.mxu0 %v893
        %1045 = vmatprep.subr.bf16.mxu0 0
        %1046 = vmatpush1.bf16.msra.mxu0 %v894
        %1047 = vmatprep.subr.bf16.mxu0 0
        %1048 = vmatpush1.bf16.msra.mxu0 0
        %1049 = vmatprep.subr.bf16.mxu0 0
        %1050 = vmatpush1.bf16.msra.mxu0 0
        %1051 = vmatprep.subr.bf16.mxu0 0
        %1052 = vmatpush1.bf16.msra.mxu0 0
        %1053 = vmatprep.subr.bf16.mxu0 0
        %1054 = vmatpush1.bf16.msra.mxu0 0
        %1055 = vmatprep.subr.bf16.mxu0 0
        %1056 = vmatpush1.bf16.msra.mxu0 0
        %1057 = vmatprep.subr.bf16.mxu0 0
        %1058 = vmatpush1.bf16.msra.mxu0 0
        %1059 = vmatprep.subr.bf16.mxu0 0
        %1060 = vmatpush1.bf16.msra.mxu0 0
        %1061 = vmatprep.subr.bf16.mxu0 0
        %1062 = vmatpush1.bf16.msra.mxu0 0
        %1063 = vmatprep.subr.bf16.mxu0 0
        %1064 = vmatpush1.bf16.msra.mxu0 0
        %1065 = vmatprep.subr.bf16.mxu0 0
        %1066 = vmatpush1.bf16.msra.mxu0 0
        %1067 = vmatprep.subr.bf16.mxu0 0
        %1068 = vmatpush1.bf16.msra.mxu0 0
        %1069 = vmatprep.subr.bf16.mxu0 0
        %1070 = vmatpush1.bf16.msra.mxu0 0
        %1071 = vmatprep.subr.bf16.mxu0 0
        %1072 = vmatpush1.bf16.msra.mxu0 0
        %1073 = vmatprep.subr.bf16.mxu0 0
        %1074 = vmatpush1.bf16.msra.mxu0 0
        %1075 = vmatprep.mubr.bf16.mxu0 0
        %1076 = vmatmul.mubr.bf16.gmra.mrb[0].mxu0 %v1041
        %v1077 = vpop.f32.mrb[0].mxu0
        %v1078 = vadd.f32 0.0, %v1077
        %v1079 = vpop.f32.mrb[0].mxu0
        %v1080 = vpop.f32.mrb[0].mxu0
        %v1081 = vpop.f32.mrb[0].mxu0
        %1082 = vdwg.mxu0
        %v1084 = vsel %vm631, %v815, 0
        %1086 = vmatprep.subr.bf16.mxu0 0
        %1087 = vmatpush1.bf16.msra.mxu0 %v909
        %1088 = vmatprep.subr.bf16.mxu0 0
        %1089 = vmatpush1.bf16.msra.mxu0 %v910
        %1090 = vmatprep.subr.bf16.mxu0 0
        %1091 = vmatpush1.bf16.msra.mxu0 0
        %1092 = vmatprep.subr.bf16.mxu0 0
        %1093 = vmatpush1.bf16.msra.mxu0 0
        %1094 = vmatprep.subr.bf16.mxu0 0
        %1095 = vmatpush1.bf16.msra.mxu0 0
        %1096 = vmatprep.subr.bf16.mxu0 0
        %1097 = vmatpush1.bf16.msra.mxu0 0
        %1098 = vmatprep.subr.bf16.mxu0 0
        %1099 = vmatpush1.bf16.msra.mxu0 0
        %1100 = vmatprep.subr.bf16.mxu0 0
        %1101 = vmatpush1.bf16.msra.mxu0 0
        %1102 = vmatprep.subr.bf16.mxu0 0
        %1103 = vmatpush1.bf16.msra.mxu0 0
        %1104 = vmatprep.subr.bf16.mxu0 0
        %1105 = vmatpush1.bf16.msra.mxu0 0
        %1106 = vmatprep.subr.bf16.mxu0 0
        %1107 = vmatpush1.bf16.msra.mxu0 0
        %1108 = vmatprep.subr.bf16.mxu0 0
        %1109 = vmatpush1.bf16.msra.mxu0 0
        %1110 = vmatprep.subr.bf16.mxu0 0
        %1111 = vmatpush1.bf16.msra.mxu0 0
        %1112 = vmatprep.subr.bf16.mxu0 0
        %1113 = vmatpush1.bf16.msra.mxu0 0
        %1114 = vmatprep.subr.bf16.mxu0 0
        %1115 = vmatpush1.bf16.msra.mxu0 0
        %1116 = vmatprep.subr.bf16.mxu0 0
        %1117 = vmatpush1.bf16.msra.mxu0 0
        %1118 = vmatprep.mubr.bf16.mxu0 0
        %1119 = vmatmul.mubr.bf16.gmra.mrb[0].mxu0 %v1084
        %v1120 = vpop.f32.mrb[0].mxu0
        %v1121 = vadd.f32 0.0, %v1120
        %v1122 = vpop.f32.mrb[0].mxu0
        %v1123 = vpop.f32.mrb[0].mxu0
        %v1124 = vpop.f32.mrb[0].mxu0
        %1125 = vdwg.mxu0
        %v1127 = vsel %vm631, %v817, 0
        %1129 = vmatprep.subr.bf16.mxu0 0
        %1130 = vmatpush1.bf16.msra.mxu0 %v925
        %1131 = vmatprep.subr.bf16.mxu0 0
        %1132 = vmatpush1.bf16.msra.mxu0 %v926
        %1133 = vmatprep.subr.bf16.mxu0 0
        %1134 = vmatpush1.bf16.msra.mxu0 0
        %1135 = vmatprep.subr.bf16.mxu0 0
        %1136 = vmatpush1.bf16.msra.mxu0 0
        %1137 = vmatprep.subr.bf16.mxu0 0
        %1138 = vmatpush1.bf16.msra.mxu0 0
        %1139 = vmatprep.subr.bf16.mxu0 0
        %1140 = vmatpush1.bf16.msra.mxu0 0
        %1141 = vmatprep.subr.bf16.mxu0 0
        %1142 = vmatpush1.bf16.msra.mxu0 0
        %1143 = vmatprep.subr.bf16.mxu0 0
        %1144 = vmatpush1.bf16.msra.mxu0 0
        %1145 = vmatprep.subr.bf16.mxu0 0
        %1146 = vmatpush1.bf16.msra.mxu0 0
        %1147 = vmatprep.subr.bf16.mxu0 0
        %1148 = vmatpush1.bf16.msra.mxu0 0
        %1149 = vmatprep.subr.bf16.mxu0 0
        %1150 = vmatpush1.bf16.msra.mxu0 0
        %1151 = vmatprep.subr.bf16.mxu0 0
        %1152 = vmatpush1.bf16.msra.mxu0 0
        %1153 = vmatprep.subr.bf16.mxu0 0
        %1154 = vmatpush1.bf16.msra.mxu0 0
        %1155 = vmatprep.subr.bf16.mxu0 0
        %1156 = vmatpush1.bf16.msra.mxu0 0
        %1157 = vmatprep.subr.bf16.mxu0 0
        %1158 = vmatpush1.bf16.msra.mxu0 0
        %1159 = vmatprep.subr.bf16.mxu0 0
        %1160 = vmatpush1.bf16.msra.mxu0 0
        %1161 = vmatprep.mubr.bf16.mxu0 0
        %1162 = vmatmul.mubr.bf16.gmra.mrb[0].mxu0 %v1127
        %v1163 = vpop.f32.mrb[0].mxu0
        %v1164 = vadd.f32 0.0, %v1163
        %v1165 = vpop.f32.mrb[0].mxu0
        %v1166 = vpop.f32.mrb[0].mxu0
        %v1167 = vpop.f32.mrb[0].mxu0
        %1168 = vdwg.mxu0
        %v1170 = vsel %vm631, %v810, 0
        %1172 = vmatprep.subr.bf16.mxu0 0
        %1173 = vmatpush1.bf16.msra.mxu0 %v941
        %1174 = vmatprep.subr.bf16.mxu0 0
        %1175 = vmatpush1.bf16.msra.mxu0 %v942
        %1176 = vmatprep.subr.bf16.mxu0 0
        %1177 = vmatpush1.bf16.msra.mxu0 0
        %1178 = vmatprep.subr.bf16.mxu0 0
        %1179 = vmatpush1.bf16.msra.mxu0 0
        %1180 = vmatprep.subr.bf16.mxu0 0
        %1181 = vmatpush1.bf16.msra.mxu0 0
        %1182 = vmatprep.subr.bf16.mxu0 0
        %1183 = vmatpush1.bf16.msra.mxu0 0
        %1184 = vmatprep.subr.bf16.mxu0 0
        %1185 = vmatpush1.bf16.msra.mxu0 0
        %1186 = vmatprep.subr.bf16.mxu0 0
        %1187 = vmatpush1.bf16.msra.mxu0 0
        %1188 = vmatprep.subr.bf16.mxu0 0
        %1189 = vmatpush1.bf16.msra.mxu0 0
        %1190 = vmatprep.subr.bf16.mxu0 0
        %1191 = vmatpush1.bf16.msra.mxu0 0
        %1192 = vmatprep.subr.bf16.mxu0 0
        %1193 = vmatpush1.bf16.msra.mxu0 0
        %1194 = vmatprep.subr.bf16.mxu0 0
        %1195 = vmatpush1.bf16.msra.mxu0 0
        %1196 = vmatprep.subr.bf16.mxu0 0
        %1197 = vmatpush1.bf16.msra.mxu0 0
        %1198 = vmatprep.subr.bf16.mxu0 0
        %1199 = vmatpush1.bf16.msra.mxu0 0
        %1200 = vmatprep.subr.bf16.mxu0 0
        %1201 = vmatpush1.bf16.msra.mxu0 0
        %1202 = vmatprep.subr.bf16.mxu0 0
        %1203 = vmatpush1.bf16.msra.mxu0 0
        %1204 = vmatprep.mubr.bf16.mxu0 0
        %1205 = vmatmul.mubr.bf16.gmra.mrb[0].mxu0 %v1170
        %v1206 = vpop.f32.mrb[0].mxu0
        %v1207 = vadd.f32 0.0, %v1206
        %v1208 = vpop.f32.mrb[0].mxu0
        %v1209 = vpop.f32.mrb[0].mxu0
        %v1210 = vpop.f32.mrb[0].mxu0
        %1211 = vdwg.mxu0
        %v1213 = vsel %vm631, %v820, 0
        %1215 = vmatprep.subr.bf16.mxu0 0
        %1216 = vmatpush1.bf16.msra.mxu0 %v957
        %1217 = vmatprep.subr.bf16.mxu0 0
        %1218 = vmatpush1.bf16.msra.mxu0 %v958
        %1219 = vmatprep.subr.bf16.mxu0 0
        %1220 = vmatpush1.bf16.msra.mxu0 0
        %1221 = vmatprep.subr.bf16.mxu0 0
        %1222 = vmatpush1.bf16.msra.mxu0 0
        %1223 = vmatprep.subr.bf16.mxu0 0
        %1224 = vmatpush1.bf16.msra.mxu0 0
        %1225 = vmatprep.subr.bf16.mxu0 0
        %1226 = vmatpush1.bf16.msra.mxu0 0
        %1227 = vmatprep.subr.bf16.mxu0 0
        %1228 = vmatpush1.bf16.msra.mxu0 0
        %1229 = vmatprep.subr.bf16.mxu0 0
        %1230 = vmatpush1.bf16.msra.mxu0 0
        %1231 = vmatprep.subr.bf16.mxu0 0
        %1232 = vmatpush1.bf16.msra.mxu0 0
        %1233 = vmatprep.subr.bf16.mxu0 0
        %1234 = vmatpush1.bf16.msra.mxu0 0
        %1235 = vmatprep.subr.bf16.mxu0 0
        %1236 = vmatpush1.bf16.msra.mxu0 0
        %1237 = vmatprep.subr.bf16.mxu0 0
        %1238 = vmatpush1.bf16.msra.mxu0 0
        %1239 = vmatprep.subr.bf16.mxu0 0
        %1240 = vmatpush1.bf16.msra.mxu0 0
        %1241 = vmatprep.subr.bf16.mxu0 0
        %1242 = vmatpush1.bf16.msra.mxu0 0
        %1243 = vmatprep.subr.bf16.mxu0 0
        %1244 = vmatpush1.bf16.msra.mxu0 0
        %1245 = vmatprep.subr.bf16.mxu0 0
        %1246 = vmatpush1.bf16.msra.mxu0 0
        %1247 = vmatprep.mubr.bf16.mxu0 0
        %1248 = vmatmul.mubr.bf16.gmra.mrb[0].mxu0 %v1213
        %v1249 = vpop.f32.mrb[0].mxu0
        %v1250 = vadd.f32 0.0, %v1249
        %v1251 = vpop.f32.mrb[0].mxu0
        %v1252 = vpop.f32.mrb[0].mxu0
        %v1253 = vpop.f32.mrb[0].mxu0
        %1254 = vdwg.mxu0
        %v1256 = vsel %vm631, %v822, 0
        %1258 = vmatprep.subr.bf16.mxu0 0
        %1259 = vmatpush1.bf16.msra.mxu0 %v973
        %1260 = vmatprep.subr.bf16.mxu0 0
        %1261 = vmatpush1.bf16.msra.mxu0 %v974
        %1262 = vmatprep.subr.bf16.mxu0 0
        %1263 = vmatpush1.bf16.msra.mxu0 0
        %1264 = vmatprep.subr.bf16.mxu0 0
        %1265 = vmatpush1.bf16.msra.mxu0 0
        %1266 = vmatprep.subr.bf16.mxu0 0
        %1267 = vmatpush1.bf16.msra.mxu0 0
        %1268 = vmatprep.subr.bf16.mxu0 0
        %1269 = vmatpush1.bf16.msra.mxu0 0
        %1270 = vmatprep.subr.bf16.mxu0 0
        %1271 = vmatpush1.bf16.msra.mxu0 0
        %1272 = vmatprep.subr.bf16.mxu0 0
        %1273 = vmatpush1.bf16.msra.mxu0 0
        %1274 = vmatprep.subr.bf16.mxu0 0
        %1275 = vmatpush1.bf16.msra.mxu0 0
        %1276 = vmatprep.subr.bf16.mxu0 0
        %1277 = vmatpush1.bf16.msra.mxu0 0
        %1278 = vmatprep.subr.bf16.mxu0 0
        %1279 = vmatpush1.bf16.msra.mxu0 0
        %1280 = vmatprep.subr.bf16.mxu0 0
        %1281 = vmatpush1.bf16.msra.mxu0 0
        %1282 = vmatprep.subr.bf16.mxu0 0
        %1283 = vmatpush1.bf16.msra.mxu0 0
        %1284 = vmatprep.subr.bf16.mxu0 0
        %1285 = vmatpush1.bf16.msra.mxu0 0
        %1286 = vmatprep.subr.bf16.mxu0 0
        %1287 = vmatpush1.bf16.msra.mxu0 0
        %1288 = vmatprep.subr.bf16.mxu0 0
        %1289 = vmatpush1.bf16.msra.mxu0 0
        %1290 = vmatprep.mubr.bf16.mxu0 0
        %1291 = vmatmul.mubr.bf16.gmra.mrb[0].mxu0 %v1256
        %v1292 = vpop.f32.mrb[0].mxu0
        %v1293 = vadd.f32 0.0, %v1292
        %v1294 = vpop.f32.mrb[0].mxu0
        %v1295 = vpop.f32.mrb[0].mxu0
        %v1296 = vpop.f32.mrb[0].mxu0
        %1297 = vdwg.mxu0
        %v1299 = vsel %vm631, %v824, 0
        %1301 = vmatprep.subr.bf16.mxu0 0
        %1302 = vmatpush1.bf16.msra.mxu0 %v989
        %1303 = vmatprep.subr.bf16.mxu0 0
        %1304 = vmatpush1.bf16.msra.mxu0 %v990
        %1305 = vmatprep.subr.bf16.mxu0 0
        %1306 = vmatpush1.bf16.msra.mxu0 0
        %1307 = vmatprep.subr.bf16.mxu0 0
        %1308 = vmatpush1.bf16.msra.mxu0 0
        %1309 = vmatprep.subr.bf16.mxu0 0
        %1310 = vmatpush1.bf16.msra.mxu0 0
        %1311 = vmatprep.subr.bf16.mxu0 0
        %1312 = vmatpush1.bf16.msra.mxu0 0
        %1313 = vmatprep.subr.bf16.mxu0 0
        %1314 = vmatpush1.bf16.msra.mxu0 0
        %1315 = vmatprep.subr.bf16.mxu0 0
        %1316 = vmatpush1.bf16.msra.mxu0 0
        %1317 = vmatprep.subr.bf16.mxu0 0
        %1318 = vmatpush1.bf16.msra.mxu0 0
        %1319 = vmatprep.subr.bf16.mxu0 0
        %1320 = vmatpush1.bf16.msra.mxu0 0
        %1321 = vmatprep.subr.bf16.mxu0 0
        %1322 = vmatpush1.bf16.msra.mxu0 0
        %1323 = vmatprep.subr.bf16.mxu0 0
        %1324 = vmatpush1.bf16.msra.mxu0 0
        %1325 = vmatprep.subr.bf16.mxu0 0
        %1326 = vmatpush1.bf16.msra.mxu0 0
        %1327 = vmatprep.subr.bf16.mxu0 0
        %1328 = vmatpush1.bf16.msra.mxu0 0
        %1329 = vmatprep.subr.bf16.mxu0 0
        %1330 = vmatpush1.bf16.msra.mxu0 0
        %1331 = vmatprep.subr.bf16.mxu0 0
        %1332 = vmatpush1.bf16.msra.mxu0 0
        %1333 = vmatprep.mubr.bf16.mxu0 0
        %1334 = vmatmul.mubr.bf16.gmra.mrb[0].mxu0 %v1299
        %v1335 = vpop.f32.mrb[0].mxu0
        %v1336 = vadd.f32 0.0, %v1335
        %v1337 = vpop.f32.mrb[0].mxu0
        %v1338 = vpop.f32.mrb[0].mxu0
        %v1339 = vpop.f32.mrb[0].mxu0
        %1340 = vdwg.mxu0
        %v1341 = vld [vmem:[%s597] sm:$0xff]
        %v1342 = vld [vmem:[%s600] sm:$0x1]
        %1344 = vset.pattern.permute.xlu0 0
        %1345 = vperm.xlu0 %1344, %v1341
        %v1346 = vpop.permute.xlu0 %1345
        %v1349 = vlaneseq
        %v1350 = vshrl.u32 %v1349, 7
        %v1351 = vsub.s32 0, %v1350
        %v1352 = vrot.slane %v1342, %v1351
        %v1354 = vmul.f32 %v1346, %v1352
        %vm1355 = vcmp.eq.f32.partialorder %v1354, 0.0
        %v1356 = vsel %vm1355, 1, 0
        %vm1357 = vcmp.eq.s32.totalorder %v1356, 1
        %v1358 = vsel %vm1357, -1e+09, %v1035
        %v1359 = vsel %vm1357, -1e+09, %v1078
        %v1360 = vsel %vm1357, -1e+09, %v1121
        %v1361 = vsel %vm1357, -1e+09, %v1164
        %v1362 = vsel %vm1357, -1e+09, %v1207
        %v1363 = vsel %vm1357, -1e+09, %v1250
        %v1364 = vsel %vm1357, -1e+09, %v1293
        %v1365 = vsel %vm1357, -1e+09, %v1336
        %vm1366 = vcmask 64512
        %v1367 = vsel %vm1366, %v1358, -inf
        %1368 = vmax.xlane.f32.xlu0 %v1367
        %v1369 = vpop.xlane.xlu0 %1368
        %v1370 = vsel %vm1366, %v1359, -inf
        %1371 = vmax.xlane.f32.xlu0 %v1370
        %v1372 = vpop.xlane.xlu0 %1371
        %v1373 = vsel %vm1366, %v1360, -inf
        %1374 = vmax.xlane.f32.xlu0 %v1373
        %v1375 = vpop.xlane.xlu0 %1374
        %v1376 = vsel %vm1366, %v1361, -inf
        %1377 = vmax.xlane.f32.xlu0 %v1376
        %v1378 = vpop.xlane.xlu0 %1377
        %v1379 = vsel %vm1366, %v1362, -inf
        %1380 = vmax.xlane.f32.xlu0 %v1379
        %v1381 = vpop.xlane.xlu0 %1380
        %v1382 = vsel %vm1366, %v1363, -inf
        %1383 = vmax.xlane.f32.xlu0 %v1382
        %v1384 = vpop.xlane.xlu0 %1383
        %v1385 = vsel %vm1366, %v1364, -inf
        %1386 = vmax.xlane.f32.xlu0 %v1385
        %v1387 = vpop.xlane.xlu0 %1386
        %v1388 = vsel %vm1366, %v1365, -inf
        %1389 = vmax.xlane.f32.xlu0 %v1388
        %v1390 = vpop.xlane.xlu0 %1389
        %v1391 = vsub.f32 %v1358, %v1369
        %v1392 = vsub.f32 %v1359, %v1372
        %v1393 = vsub.f32 %v1360, %v1375
        %v1394 = vsub.f32 %v1361, %v1378
        %v1395 = vsub.f32 %v1362, %v1381
        %v1396 = vsub.f32 %v1363, %v1384
        %v1397 = vsub.f32 %v1364, %v1387
        %v1398 = vsub.f32 %v1365, %v1390
        %v1399 = vmul.f32 %v1391, 1.442695
        %v1400 = vpow.pop %v1399
        %v1401 = vmul.f32 %v1392, 1.442695
        %v1402 = vpow.pop %v1401
        %v1403 = vmul.f32 %v1393, 1.442695
        %v1404 = vpow.pop %v1403
        %v1405 = vmul.f32 %v1394, 1.442695
        %v1406 = vpow.pop %v1405
        %v1407 = vmul.f32 %v1395, 1.442695
        %v1408 = vpow.pop %v1407
        %v1409 = vmul.f32 %v1396, 1.442695
        %v1410 = vpow.pop %v1409
        %v1411 = vmul.f32 %v1397, 1.442695
        %v1412 = vpow.pop %v1411
        %v1413 = vmul.f32 %v1398, 1.442695
        %v1414 = vpow.pop %v1413
        %v1415 = vsel %vm1366, %v1400, 0.0
        %1416 = vadd.xlane.f32.xlu0 %v1415
        %v1417 = vpop.xlane.xlu0 %1416
        %v1418 = vsel %vm1366, %v1402, 0.0
        %1419 = vadd.xlane.f32.xlu0 %v1418
        %v1420 = vpop.xlane.xlu0 %1419
        %v1421 = vsel %vm1366, %v1404, 0.0
        %1422 = vadd.xlane.f32.xlu0 %v1421
        %v1423 = vpop.xlane.xlu0 %1422
        %v1424 = vsel %vm1366, %v1406, 0.0
        %1425 = vadd.xlane.f32.xlu0 %v1424
        %v1426 = vpop.xlane.xlu0 %1425
        %v1427 = vsel %vm1366, %v1408, 0.0
        %1428 = vadd.xlane.f32.xlu0 %v1427
        %v1429 = vpop.xlane.xlu0 %1428
        %v1430 = vsel %vm1366, %v1410, 0.0
        %1431 = vadd.xlane.f32.xlu0 %v1430
        %v1432 = vpop.xlane.xlu0 %1431
        %v1433 = vsel %vm1366, %v1412, 0.0
        %1434 = vadd.xlane.f32.xlu0 %v1433
        %v1435 = vpop.xlane.xlu0 %1434
        %v1436 = vsel %vm1366, %v1414, 0.0
        %1437 = vadd.xlane.f32.xlu0 %v1436
        %v1438 = vpop.xlane.xlu0 %1437
        %v1439 = vrcp.pop %v1417
        %v1440 = vrcp.pop %v1420
        %v1441 = vrcp.pop %v1423
        %v1442 = vrcp.pop %v1426
        %v1443 = vrcp.pop %v1429
        %v1444 = vrcp.pop %v1432
        %v1445 = vrcp.pop %v1435
        %v1446 = vrcp.pop %v1438
        %v1447 = vmul.f32 %v1400, %v1439
        %v1448 = vmul.f32 %v1402, %v1440
        %v1449 = vmul.f32 %v1404, %v1441
        %v1450 = vmul.f32 %v1406, %v1442
        %v1451 = vmul.f32 %v1408, %v1443
        %v1452 = vmul.f32 %v1410, %v1444
        %v1453 = vmul.f32 %v1412, %v1445
        %v1454 = vmul.f32 %v1414, %v1446
        %v1455 = vpack.c.bf16 %v1447, %v1447
        %v1456 = vpack.c.bf16 %v1448, %v1448
        %v1457 = vpack.c.bf16 %v1449, %v1449
        %v1458 = vpack.c.bf16 %v1450, %v1450
        %v1459 = vpack.c.bf16 %v1451, %v1451
        %v1460 = vpack.c.bf16 %v1452, %v1452
        %v1461 = vpack.c.bf16 %v1453, %v1453
        %v1462 = vpack.c.bf16 %v1454, %v1454
        %1463 = vxpose.xlu0.c.b16.start [1/8] %v847, 128
        %1464 = vxpose.xlu0.c.b16.cont [2/8] 0, 128
        %1465 = vxpose.xlu0.c.b16.cont [3/8] 0, 128
        %1466 = vxpose.xlu0.c.b16.cont [4/8] 0, 128
        %1467 = vxpose.xlu0.c.b16.cont [5/8] 0, 128
        %1468 = vxpose.xlu0.c.b16.cont [6/8] 0, 128
        %1469 = vxpose.xlu0.c.b16.cont [7/8] 0, 128
        %1470 = vxpose.xlu0.c.b16.end [8/8] 0, 128
        %v1471 = vpop.trf.xlu0
        %v1472 = vpop.trf.xlu0
        %v1473 = vpop.trf.xlu0
        %v1474 = vpop.trf.xlu0
        %v1475 = vpop.trf.xlu0
        %v1476 = vpop.trf.xlu0
        %v1477 = vpop.trf.xlu0
        %v1478 = vpop.trf.xlu0
        %1479 = vxpose.xlu0.c.b16.start [1/8] %v851, 128
        %1480 = vxpose.xlu0.c.b16.cont [2/8] 0, 128
        %1481 = vxpose.xlu0.c.b16.cont [3/8] 0, 128
        %1482 = vxpose.xlu0.c.b16.cont [4/8] 0, 128
        %1483 = vxpose.xlu0.c.b16.cont [5/8] 0, 128
        %1484 = vxpose.xlu0.c.b16.cont [6/8] 0, 128
        %1485 = vxpose.xlu0.c.b16.cont [7/8] 0, 128
        %1486 = vxpose.xlu0.c.b16.end [8/8] 0, 128
        %v1487 = vpop.trf.xlu0
        %v1488 = vpop.trf.xlu0
        %v1489 = vpop.trf.xlu0
        %v1490 = vpop.trf.xlu0
        %v1491 = vpop.trf.xlu0
        %v1492 = vpop.trf.xlu0
        %v1493 = vpop.trf.xlu0
        %v1494 = vpop.trf.xlu0
        %1495 = vxpose.xlu0.c.b16.start [1/8] %v854, 128
        %1496 = vxpose.xlu0.c.b16.cont [2/8] 0, 128
        %1497 = vxpose.xlu0.c.b16.cont [3/8] 0, 128
        %1498 = vxpose.xlu0.c.b16.cont [4/8] 0, 128
        %1499 = vxpose.xlu0.c.b16.cont [5/8] 0, 128
        %1500 = vxpose.xlu0.c.b16.cont [6/8] 0, 128
        %1501 = vxpose.xlu0.c.b16.cont [7/8] 0, 128
        %1502 = vxpose.xlu0.c.b16.end [8/8] 0, 128
        %v1503 = vpop.trf.xlu0
        %v1504 = vpop.trf.xlu0
        %v1505 = vpop.trf.xlu0
        %v1506 = vpop.trf.xlu0
        %v1507 = vpop.trf.xlu0
        %v1508 = vpop.trf.xlu0
        %v1509 = vpop.trf.xlu0
        %v1510 = vpop.trf.xlu0
        %1511 = vxpose.xlu0.c.b16.start [1/8] %v857, 128
        %1512 = vxpose.xlu0.c.b16.cont [2/8] 0, 128
        %1513 = vxpose.xlu0.c.b16.cont [3/8] 0, 128
        %1514 = vxpose.xlu0.c.b16.cont [4/8] 0, 128
        %1515 = vxpose.xlu0.c.b16.cont [5/8] 0, 128
        %1516 = vxpose.xlu0.c.b16.cont [6/8] 0, 128
        %1517 = vxpose.xlu0.c.b16.cont [7/8] 0, 128
        %1518 = vxpose.xlu0.c.b16.end [8/8] 0, 128
        %v1519 = vpop.trf.xlu0
        %v1520 = vpop.trf.xlu0
        %v1521 = vpop.trf.xlu0
        %v1522 = vpop.trf.xlu0
        %v1523 = vpop.trf.xlu0
        %v1524 = vpop.trf.xlu0
        %v1525 = vpop.trf.xlu0
        %v1526 = vpop.trf.xlu0
        %1527 = vxpose.xlu0.c.b16.start [1/8] %v848, 128
        %1528 = vxpose.xlu0.c.b16.cont [2/8] 0, 128
        %1529 = vxpose.xlu0.c.b16.cont [3/8] 0, 128
        %1530 = vxpose.xlu0.c.b16.cont [4/8] 0, 128
        %1531 = vxpose.xlu0.c.b16.cont [5/8] 0, 128
        %1532 = vxpose.xlu0.c.b16.cont [6/8] 0, 128
        %1533 = vxpose.xlu0.c.b16.cont [7/8] 0, 128
        %1534 = vxpose.xlu0.c.b16.end [8/8] 0, 128
        %v1535 = vpop.trf.xlu0
        %v1536 = vpop.trf.xlu0
        %v1537 = vpop.trf.xlu0
        %v1538 = vpop.trf.xlu0
        %v1539 = vpop.trf.xlu0
        %v1540 = vpop.trf.xlu0
        %v1541 = vpop.trf.xlu0
        %v1542 = vpop.trf.xlu0
        %1543 = vxpose.xlu0.c.b16.start [1/8] %v861, 128
        %1544 = vxpose.xlu0.c.b16.cont [2/8] 0, 128
        %1545 = vxpose.xlu0.c.b16.cont [3/8] 0, 128
        %1546 = vxpose.xlu0.c.b16.cont [4/8] 0, 128
        %1547 = vxpose.xlu0.c.b16.cont [5/8] 0, 128
        %1548 = vxpose.xlu0.c.b16.cont [6/8] 0, 128
        %1549 = vxpose.xlu0.c.b16.cont [7/8] 0, 128
        %1550 = vxpose.xlu0.c.b16.end [8/8] 0, 128
        %v1551 = vpop.trf.xlu0
        %v1552 = vpop.trf.xlu0
        %v1553 = vpop.trf.xlu0
        %v1554 = vpop.trf.xlu0
        %v1555 = vpop.trf.xlu0
        %v1556 = vpop.trf.xlu0
        %v1557 = vpop.trf.xlu0
        %v1558 = vpop.trf.xlu0
        %1559 = vxpose.xlu0.c.b16.start [1/8] %v864, 128
        %1560 = vxpose.xlu0.c.b16.cont [2/8] 0, 128
        %1561 = vxpose.xlu0.c.b16.cont [3/8] 0, 128
        %1562 = vxpose.xlu0.c.b16.cont [4/8] 0, 128
        %1563 = vxpose.xlu0.c.b16.cont [5/8] 0, 128
        %1564 = vxpose.xlu0.c.b16.cont [6/8] 0, 128
        %1565 = vxpose.xlu0.c.b16.cont [7/8] 0, 128
        %1566 = vxpose.xlu0.c.b16.end [8/8] 0, 128
        %v1567 = vpop.trf.xlu0
        %v1568 = vpop.trf.xlu0
        %v1569 = vpop.trf.xlu0
        %v1570 = vpop.trf.xlu0
        %v1571 = vpop.trf.xlu0
        %v1572 = vpop.trf.xlu0
        %v1573 = vpop.trf.xlu0
        %v1574 = vpop.trf.xlu0
        %1575 = vxpose.xlu0.c.b16.start [1/8] %v867, 128
        %1576 = vxpose.xlu0.c.b16.cont [2/8] 0, 128
        %1577 = vxpose.xlu0.c.b16.cont [3/8] 0, 128
        %1578 = vxpose.xlu0.c.b16.cont [4/8] 0, 128
        %1579 = vxpose.xlu0.c.b16.cont [5/8] 0, 128
        %1580 = vxpose.xlu0.c.b16.cont [6/8] 0, 128
        %1581 = vxpose.xlu0.c.b16.cont [7/8] 0, 128
        %1582 = vxpose.xlu0.c.b16.end [8/8] 0, 128
        %v1583 = vpop.trf.xlu0
        %v1584 = vpop.trf.xlu0
        %v1585 = vpop.trf.xlu0
        %v1586 = vpop.trf.xlu0
        %v1587 = vpop.trf.xlu0
        %v1588 = vpop.trf.xlu0
        %v1589 = vpop.trf.xlu0
        %v1590 = vpop.trf.xlu0
        %v1592 = vsel %vm1366, %v1471, 0
        %v1595 = vsel %vm1366, %v1472, 0
        %v1598 = vsel %vm1366, %v1455, 0
        %1600 = vmatprep.subr.bf16.mxu0 0
        %1601 = vmatpush1.bf16.xpose.msra.mxu0 %v1598
        %1602 = vmatprep.subr.bf16.mxu0 0
        %1603 = vmatpush1.bf16.xpose.msra.mxu0 0
        %1604 = vmatprep.subr.bf16.mxu0 0
        %1605 = vmatpush1.bf16.xpose.msra.mxu0 0
        %1606 = vmatprep.subr.bf16.mxu0 0
        %1607 = vmatpush1.bf16.xpose.msra.mxu0 0
        %1608 = vmatprep.subr.bf16.mxu0 0
        %1609 = vmatpush1.bf16.xpose.msra.mxu0 0
        %1610 = vmatprep.subr.bf16.mxu0 0
        %1611 = vmatpush1.bf16.xpose.msra.mxu0 0
        %1612 = vmatprep.subr.bf16.mxu0 0
        %1613 = vmatpush1.bf16.xpose.msra.mxu0 0
        %1614 = vmatprep.subr.bf16.mxu0 0
        %1615 = vmatpush1.bf16.xpose.msra.mxu0 0
        %1616 = vmatprep.subr.bf16.mxu0 0
        %1617 = vmatpush1.bf16.xpose.msra.mxu0 0
        %1618 = vmatprep.subr.bf16.mxu0 0
        %1619 = vmatpush1.bf16.xpose.msra.mxu0 0
        %1620 = vmatprep.subr.bf16.mxu0 0
        %1621 = vmatpush1.bf16.xpose.msra.mxu0 0
        %1622 = vmatprep.subr.bf16.mxu0 0
        %1623 = vmatpush1.bf16.xpose.msra.mxu0 0
        %1624 = vmatprep.subr.bf16.mxu0 0
        %1625 = vmatpush1.bf16.xpose.msra.mxu0 0
        %1626 = vmatprep.subr.bf16.mxu0 0
        %1627 = vmatpush1.bf16.xpose.msra.mxu0 0
        %1628 = vmatprep.subr.bf16.mxu0 0
        %1629 = vmatpush1.bf16.xpose.msra.mxu0 0
        %1630 = vmatprep.subr.bf16.mxu0 0
        %1631 = vmatpush1.bf16.xpose.msra.mxu0 0
        %1632 = vmatprep.mubr.bf16.mxu0 0
        %1633 = vmatmul.mubr.bf16.gmra.mrb[0].mxu0 %v1592
        %v1634 = vpop.f32.mrb[0].mxu0
        %v1635 = vadd.f32 0.0, %v1634
        %v1636 = vpop.f32.mrb[0].mxu0
        %v1637 = vpop.f32.mrb[0].mxu0
        %v1638 = vadd.f32 0.0, %v1637
        %v1639 = vpop.f32.mrb[0].mxu0
        %1640 = vmatprep.mubr.bf16.mxu0 0
        %1641 = vmatmul.mubr.bf16.gmra.mrb[0].mxu0 %v1595
        %v1642 = vpop.f32.mrb[0].mxu0
        %v1643 = vadd.f32 0.0, %v1642
        %v1644 = vpop.f32.mrb[0].mxu0
        %v1645 = vpop.f32.mrb[0].mxu0
        %v1646 = vadd.f32 0.0, %v1645
        %v1647 = vpop.f32.mrb[0].mxu0
        %1648 = vdwg.mxu0
        %v1650 = vsel %vm1366, %v1487, 0
        %v1653 = vsel %vm1366, %v1488, 0
        %v1656 = vsel %vm1366, %v1456, 0
        %1658 = vmatprep.subr.bf16.mxu0 0
        %1659 = vmatpush1.bf16.xpose.msra.mxu0 %v1656
        %1660 = vmatprep.subr.bf16.mxu0 0
        %1661 = vmatpush1.bf16.xpose.msra.mxu0 0
        %1662 = vmatprep.subr.bf16.mxu0 0
        %1663 = vmatpush1.bf16.xpose.msra.mxu0 0
        %1664 = vmatprep.subr.bf16.mxu0 0
        %1665 = vmatpush1.bf16.xpose.msra.mxu0 0
        %1666 = vmatprep.subr.bf16.mxu0 0
        %1667 = vmatpush1.bf16.xpose.msra.mxu0 0
        %1668 = vmatprep.subr.bf16.mxu0 0
        %1669 = vmatpush1.bf16.xpose.msra.mxu0 0
        %1670 = vmatprep.subr.bf16.mxu0 0
        %1671 = vmatpush1.bf16.xpose.msra.mxu0 0
        %1672 = vmatprep.subr.bf16.mxu0 0
        %1673 = vmatpush1.bf16.xpose.msra.mxu0 0
        %1674 = vmatprep.subr.bf16.mxu0 0
        %1675 = vmatpush1.bf16.xpose.msra.mxu0 0
        %1676 = vmatprep.subr.bf16.mxu0 0
        %1677 = vmatpush1.bf16.xpose.msra.mxu0 0
        %1678 = vmatprep.subr.bf16.mxu0 0
        %1679 = vmatpush1.bf16.xpose.msra.mxu0 0
        %1680 = vmatprep.subr.bf16.mxu0 0
        %1681 = vmatpush1.bf16.xpose.msra.mxu0 0
        %1682 = vmatprep.subr.bf16.mxu0 0
        %1683 = vmatpush1.bf16.xpose.msra.mxu0 0
        %1684 = vmatprep.subr.bf16.mxu0 0
        %1685 = vmatpush1.bf16.xpose.msra.mxu0 0
        %1686 = vmatprep.subr.bf16.mxu0 0
        %1687 = vmatpush1.bf16.xpose.msra.mxu0 0
        %1688 = vmatprep.subr.bf16.mxu0 0
        %1689 = vmatpush1.bf16.xpose.msra.mxu0 0
        %1690 = vmatprep.mubr.bf16.mxu0 0
        %1691 = vmatmul.mubr.bf16.gmra.mrb[0].mxu0 %v1650
        %v1692 = vpop.f32.mrb[0].mxu0
        %v1693 = vadd.f32 0.0, %v1692
        %v1694 = vpop.f32.mrb[0].mxu0
        %v1695 = vpop.f32.mrb[0].mxu0
        %v1696 = vadd.f32 0.0, %v1695
        %v1697 = vpop.f32.mrb[0].mxu0
        %1698 = vmatprep.mubr.bf16.mxu0 0
        %1699 = vmatmul.mubr.bf16.gmra.mrb[0].mxu0 %v1653
        %v1700 = vpop.f32.mrb[0].mxu0
        %v1701 = vadd.f32 0.0, %v1700
        %v1702 = vpop.f32.mrb[0].mxu0
        %v1703 = vpop.f32.mrb[0].mxu0
        %v1704 = vadd.f32 0.0, %v1703
        %v1705 = vpop.f32.mrb[0].mxu0
        %1706 = vdwg.mxu0
        %v1708 = vsel %vm1366, %v1503, 0
        %v1711 = vsel %vm1366, %v1504, 0
        %v1714 = vsel %vm1366, %v1457, 0
        %1716 = vmatprep.subr.bf16.mxu0 0
        %1717 = vmatpush1.bf16.xpose.msra.mxu0 %v1714
        %1718 = vmatprep.subr.bf16.mxu0 0
        %1719 = vmatpush1.bf16.xpose.msra.mxu0 0
        %1720 = vmatprep.subr.bf16.mxu0 0
        %1721 = vmatpush1.bf16.xpose.msra.mxu0 0
        %1722 = vmatprep.subr.bf16.mxu0 0
        %1723 = vmatpush1.bf16.xpose.msra.mxu0 0
        %1724 = vmatprep.subr.bf16.mxu0 0
        %1725 = vmatpush1.bf16.xpose.msra.mxu0 0
        %1726 = vmatprep.subr.bf16.mxu0 0
        %1727 = vmatpush1.bf16.xpose.msra.mxu0 0
        %1728 = vmatprep.subr.bf16.mxu0 0
        %1729 = vmatpush1.bf16.xpose.msra.mxu0 0
        %1730 = vmatprep.subr.bf16.mxu0 0
        %1731 = vmatpush1.bf16.xpose.msra.mxu0 0
        %1732 = vmatprep.subr.bf16.mxu0 0
        %1733 = vmatpush1.bf16.xpose.msra.mxu0 0
        %1734 = vmatprep.subr.bf16.mxu0 0
        %1735 = vmatpush1.bf16.xpose.msra.mxu0 0
        %1736 = vmatprep.subr.bf16.mxu0 0
        %1737 = vmatpush1.bf16.xpose.msra.mxu0 0
        %1738 = vmatprep.subr.bf16.mxu0 0
        %1739 = vmatpush1.bf16.xpose.msra.mxu0 0
        %1740 = vmatprep.subr.bf16.mxu0 0
        %1741 = vmatpush1.bf16.xpose.msra.mxu0 0
        %1742 = vmatprep.subr.bf16.mxu0 0
        %1743 = vmatpush1.bf16.xpose.msra.mxu0 0
        %1744 = vmatprep.subr.bf16.mxu0 0
        %1745 = vmatpush1.bf16.xpose.msra.mxu0 0
        %1746 = vmatprep.subr.bf16.mxu0 0
        %1747 = vmatpush1.bf16.xpose.msra.mxu0 0
        %1748 = vmatprep.mubr.bf16.mxu0 0
        %1749 = vmatmul.mubr.bf16.gmra.mrb[0].mxu0 %v1708
        %v1750 = vpop.f32.mrb[0].mxu0
        %v1751 = vadd.f32 0.0, %v1750
        %v1752 = vpop.f32.mrb[0].mxu0
        %v1753 = vpop.f32.mrb[0].mxu0
        %v1754 = vadd.f32 0.0, %v1753
        %v1755 = vpop.f32.mrb[0].mxu0
        %1756 = vmatprep.mubr.bf16.mxu0 0
        %1757 = vmatmul.mubr.bf16.gmra.mrb[0].mxu0 %v1711
        %v1758 = vpop.f32.mrb[0].mxu0
        %v1759 = vadd.f32 0.0, %v1758
        %v1760 = vpop.f32.mrb[0].mxu0
        %v1761 = vpop.f32.mrb[0].mxu0
        %v1762 = vadd.f32 0.0, %v1761
        %v1763 = vpop.f32.mrb[0].mxu0
        %1764 = vdwg.mxu0
        %v1766 = vsel %vm1366, %v1519, 0
        %v1769 = vsel %vm1366, %v1520, 0
        %v1772 = vsel %vm1366, %v1458, 0
        %1774 = vmatprep.subr.bf16.mxu0 0
        %1775 = vmatpush1.bf16.xpose.msra.mxu0 %v1772
        %1776 = vmatprep.subr.bf16.mxu0 0
        %1777 = vmatpush1.bf16.xpose.msra.mxu0 0
        %1778 = vmatprep.subr.bf16.mxu0 0
        %1779 = vmatpush1.bf16.xpose.msra.mxu0 0
        %1780 = vmatprep.subr.bf16.mxu0 0
        %1781 = vmatpush1.bf16.xpose.msra.mxu0 0
        %1782 = vmatprep.subr.bf16.mxu0 0
        %1783 = vmatpush1.bf16.xpose.msra.mxu0 0
        %1784 = vmatprep.subr.bf16.mxu0 0
        %1785 = vmatpush1.bf16.xpose.msra.mxu0 0
        %1786 = vmatprep.subr.bf16.mxu0 0
        %1787 = vmatpush1.bf16.xpose.msra.mxu0 0
        %1788 = vmatprep.subr.bf16.mxu0 0
        %1789 = vmatpush1.bf16.xpose.msra.mxu0 0
        %1790 = vmatprep.subr.bf16.mxu0 0
        %1791 = vmatpush1.bf16.xpose.msra.mxu0 0
        %1792 = vmatprep.subr.bf16.mxu0 0
        %1793 = vmatpush1.bf16.xpose.msra.mxu0 0
        %1794 = vmatprep.subr.bf16.mxu0 0
        %1795 = vmatpush1.bf16.xpose.msra.mxu0 0
        %1796 = vmatprep.subr.bf16.mxu0 0
        %1797 = vmatpush1.bf16.xpose.msra.mxu0 0
        %1798 = vmatprep.subr.bf16.mxu0 0
        %1799 = vmatpush1.bf16.xpose.msra.mxu0 0
        %1800 = vmatprep.subr.bf16.mxu0 0
        %1801 = vmatpush1.bf16.xpose.msra.mxu0 0
        %1802 = vmatprep.subr.bf16.mxu0 0
        %1803 = vmatpush1.bf16.xpose.msra.mxu0 0
        %1804 = vmatprep.subr.bf16.mxu0 0
        %1805 = vmatpush1.bf16.xpose.msra.mxu0 0
        %1806 = vmatprep.mubr.bf16.mxu0 0
        %1807 = vmatmul.mubr.bf16.gmra.mrb[0].mxu0 %v1766
        %v1808 = vpop.f32.mrb[0].mxu0
        %v1809 = vadd.f32 0.0, %v1808
        %v1810 = vpop.f32.mrb[0].mxu0
        %v1811 = vpop.f32.mrb[0].mxu0
        %v1812 = vadd.f32 0.0, %v1811
        %v1813 = vpop.f32.mrb[0].mxu0
        %1814 = vmatprep.mubr.bf16.mxu0 0
        %1815 = vmatmul.mubr.bf16.gmra.mrb[0].mxu0 %v1769
        %v1816 = vpop.f32.mrb[0].mxu0
        %v1817 = vadd.f32 0.0, %v1816
        %v1818 = vpop.f32.mrb[0].mxu0
        %v1819 = vpop.f32.mrb[0].mxu0
        %v1820 = vadd.f32 0.0, %v1819
        %v1821 = vpop.f32.mrb[0].mxu0
        %1822 = vdwg.mxu0
        %v1824 = vsel %vm1366, %v1535, 0
        %v1827 = vsel %vm1366, %v1536, 0
        %v1830 = vsel %vm1366, %v1459, 0
        %1832 = vmatprep.subr.bf16.mxu0 0
        %1833 = vmatpush1.bf16.xpose.msra.mxu0 %v1830
        %1834 = vmatprep.subr.bf16.mxu0 0
        %1835 = vmatpush1.bf16.xpose.msra.mxu0 0
        %1836 = vmatprep.subr.bf16.mxu0 0
        %1837 = vmatpush1.bf16.xpose.msra.mxu0 0
        %1838 = vmatprep.subr.bf16.mxu0 0
        %1839 = vmatpush1.bf16.xpose.msra.mxu0 0
        %1840 = vmatprep.subr.bf16.mxu0 0
        %1841 = vmatpush1.bf16.xpose.msra.mxu0 0
        %1842 = vmatprep.subr.bf16.mxu0 0
        %1843 = vmatpush1.bf16.xpose.msra.mxu0 0
        %1844 = vmatprep.subr.bf16.mxu0 0
        %1845 = vmatpush1.bf16.xpose.msra.mxu0 0
        %1846 = vmatprep.subr.bf16.mxu0 0
        %1847 = vmatpush1.bf16.xpose.msra.mxu0 0
        %1848 = vmatprep.subr.bf16.mxu0 0
        %1849 = vmatpush1.bf16.xpose.msra.mxu0 0
        %1850 = vmatprep.subr.bf16.mxu0 0
        %1851 = vmatpush1.bf16.xpose.msra.mxu0 0
        %1852 = vmatprep.subr.bf16.mxu0 0
        %1853 = vmatpush1.bf16.xpose.msra.mxu0 0
        %1854 = vmatprep.subr.bf16.mxu0 0
        %1855 = vmatpush1.bf16.xpose.msra.mxu0 0
        %1856 = vmatprep.subr.bf16.mxu0 0
        %1857 = vmatpush1.bf16.xpose.msra.mxu0 0
        %1858 = vmatprep.subr.bf16.mxu0 0
        %1859 = vmatpush1.bf16.xpose.msra.mxu0 0
        %1860 = vmatprep.subr.bf16.mxu0 0
        %1861 = vmatpush1.bf16.xpose.msra.mxu0 0
        %1862 = vmatprep.subr.bf16.mxu0 0
        %1863 = vmatpush1.bf16.xpose.msra.mxu0 0
        %1864 = vmatprep.mubr.bf16.mxu0 0
        %1865 = vmatmul.mubr.bf16.gmra.mrb[0].mxu0 %v1824
        %v1866 = vpop.f32.mrb[0].mxu0
        %v1867 = vadd.f32 0.0, %v1866
        %v1868 = vpop.f32.mrb[0].mxu0
        %v1869 = vpop.f32.mrb[0].mxu0
        %v1870 = vadd.f32 0.0, %v1869
        %v1871 = vpop.f32.mrb[0].mxu0
        %1872 = vmatprep.mubr.bf16.mxu0 0
        %1873 = vmatmul.mubr.bf16.gmra.mrb[0].mxu0 %v1827
        %v1874 = vpop.f32.mrb[0].mxu0
        %v1875 = vadd.f32 0.0, %v1874
        %v1876 = vpop.f32.mrb[0].mxu0
        %v1877 = vpop.f32.mrb[0].mxu0
        %v1878 = vadd.f32 0.0, %v1877
        %v1879 = vpop.f32.mrb[0].mxu0
        %1880 = vdwg.mxu0
        %v1882 = vsel %vm1366, %v1551, 0
        %v1885 = vsel %vm1366, %v1552, 0
        %v1888 = vsel %vm1366, %v1460, 0
        %1890 = vmatprep.subr.bf16.mxu0 0
        %1891 = vmatpush1.bf16.xpose.msra.mxu0 %v1888
        %1892 = vmatprep.subr.bf16.mxu0 0
        %1893 = vmatpush1.bf16.xpose.msra.mxu0 0
        %1894 = vmatprep.subr.bf16.mxu0 0
        %1895 = vmatpush1.bf16.xpose.msra.mxu0 0
        %1896 = vmatprep.subr.bf16.mxu0 0
        %1897 = vmatpush1.bf16.xpose.msra.mxu0 0
        %1898 = vmatprep.subr.bf16.mxu0 0
        %1899 = vmatpush1.bf16.xpose.msra.mxu0 0
        %1900 = vmatprep.subr.bf16.mxu0 0
        %1901 = vmatpush1.bf16.xpose.msra.mxu0 0
        %1902 = vmatprep.subr.bf16.mxu0 0
        %1903 = vmatpush1.bf16.xpose.msra.mxu0 0
        %1904 = vmatprep.subr.bf16.mxu0 0
        %1905 = vmatpush1.bf16.xpose.msra.mxu0 0
        %1906 = vmatprep.subr.bf16.mxu0 0
        %1907 = vmatpush1.bf16.xpose.msra.mxu0 0
        %1908 = vmatprep.subr.bf16.mxu0 0
        %1909 = vmatpush1.bf16.xpose.msra.mxu0 0
        %1910 = vmatprep.subr.bf16.mxu0 0
        %1911 = vmatpush1.bf16.xpose.msra.mxu0 0
        %1912 = vmatprep.subr.bf16.mxu0 0
        %1913 = vmatpush1.bf16.xpose.msra.mxu0 0
        %1914 = vmatprep.subr.bf16.mxu0 0
        %1915 = vmatpush1.bf16.xpose.msra.mxu0 0
        %1916 = vmatprep.subr.bf16.mxu0 0
        %1917 = vmatpush1.bf16.xpose.msra.mxu0 0
        %1918 = vmatprep.subr.bf16.mxu0 0
        %1919 = vmatpush1.bf16.xpose.msra.mxu0 0
        %1920 = vmatprep.subr.bf16.mxu0 0
        %1921 = vmatpush1.bf16.xpose.msra.mxu0 0
        %1922 = vmatprep.mubr.bf16.mxu0 0
        %1923 = vmatmul.mubr.bf16.gmra.mrb[0].mxu0 %v1882
        %v1924 = vpop.f32.mrb[0].mxu0
        %v1925 = vadd.f32 0.0, %v1924
        %v1926 = vpop.f32.mrb[0].mxu0
        %v1927 = vpop.f32.mrb[0].mxu0
        %v1928 = vadd.f32 0.0, %v1927
        %v1929 = vpop.f32.mrb[0].mxu0
        %1930 = vmatprep.mubr.bf16.mxu0 0
        %1931 = vmatmul.mubr.bf16.gmra.mrb[0].mxu0 %v1885
        %v1932 = vpop.f32.mrb[0].mxu0
        %v1933 = vadd.f32 0.0, %v1932
        %v1934 = vpop.f32.mrb[0].mxu0
        %v1935 = vpop.f32.mrb[0].mxu0
        %v1936 = vadd.f32 0.0, %v1935
        %v1937 = vpop.f32.mrb[0].mxu0
        %1938 = vdwg.mxu0
        %v1940 = vsel %vm1366, %v1567, 0
        %v1943 = vsel %vm1366, %v1568, 0
        %v1946 = vsel %vm1366, %v1461, 0
        %1948 = vmatprep.subr.bf16.mxu0 0
        %1949 = vmatpush1.bf16.xpose.msra.mxu0 %v1946
        %1950 = vmatprep.subr.bf16.mxu0 0
        %1951 = vmatpush1.bf16.xpose.msra.mxu0 0
        %1952 = vmatprep.subr.bf16.mxu0 0
        %1953 = vmatpush1.bf16.xpose.msra.mxu0 0
        %1954 = vmatprep.subr.bf16.mxu0 0
        %1955 = vmatpush1.bf16.xpose.msra.mxu0 0
        %1956 = vmatprep.subr.bf16.mxu0 0
        %1957 = vmatpush1.bf16.xpose.msra.mxu0 0
        %1958 = vmatprep.subr.bf16.mxu0 0
        %1959 = vmatpush1.bf16.xpose.msra.mxu0 0
        %1960 = vmatprep.subr.bf16.mxu0 0
        %1961 = vmatpush1.bf16.xpose.msra.mxu0 0
        %1962 = vmatprep.subr.bf16.mxu0 0
        %1963 = vmatpush1.bf16.xpose.msra.mxu0 0
        %1964 = vmatprep.subr.bf16.mxu0 0
        %1965 = vmatpush1.bf16.xpose.msra.mxu0 0
        %1966 = vmatprep.subr.bf16.mxu0 0
        %1967 = vmatpush1.bf16.xpose.msra.mxu0 0
        %1968 = vmatprep.subr.bf16.mxu0 0
        %1969 = vmatpush1.bf16.xpose.msra.mxu0 0
        %1970 = vmatprep.subr.bf16.mxu0 0
        %1971 = vmatpush1.bf16.xpose.msra.mxu0 0
        %1972 = vmatprep.subr.bf16.mxu0 0
        %1973 = vmatpush1.bf16.xpose.msra.mxu0 0
        %1974 = vmatprep.subr.bf16.mxu0 0
        %1975 = vmatpush1.bf16.xpose.msra.mxu0 0
        %1976 = vmatprep.subr.bf16.mxu0 0
        %1977 = vmatpush1.bf16.xpose.msra.mxu0 0
        %1978 = vmatprep.subr.bf16.mxu0 0
        %1979 = vmatpush1.bf16.xpose.msra.mxu0 0
        %1980 = vmatprep.mubr.bf16.mxu0 0
        %1981 = vmatmul.mubr.bf16.gmra.mrb[0].mxu0 %v1940
        %v1982 = vpop.f32.mrb[0].mxu0
        %v1983 = vadd.f32 0.0, %v1982
        %v1984 = vpop.f32.mrb[0].mxu0
        %v1985 = vpop.f32.mrb[0].mxu0
        %v1986 = vadd.f32 0.0, %v1985
        %v1987 = vpop.f32.mrb[0].mxu0
        %1988 = vmatprep.mubr.bf16.mxu0 0
        %1989 = vmatmul.mubr.bf16.gmra.mrb[0].mxu0 %v1943
        %v1990 = vpop.f32.mrb[0].mxu0
        %v1991 = vadd.f32 0.0, %v1990
        %v1992 = vpop.f32.mrb[0].mxu0
        %v1993 = vpop.f32.mrb[0].mxu0
        %v1994 = vadd.f32 0.0, %v1993
        %v1995 = vpop.f32.mrb[0].mxu0
        %1996 = vdwg.mxu0
        %v1998 = vsel %vm1366, %v1583, 0
        %v2001 = vsel %vm1366, %v1584, 0
        %v2004 = vsel %vm1366, %v1462, 0
        %2006 = vmatprep.subr.bf16.mxu0 0
        %2007 = vmatpush1.bf16.xpose.msra.mxu0 %v2004
        %2008 = vmatprep.subr.bf16.mxu0 0
        %2009 = vmatpush1.bf16.xpose.msra.mxu0 0
        %2010 = vmatprep.subr.bf16.mxu0 0
        %2011 = vmatpush1.bf16.xpose.msra.mxu0 0
        %2012 = vmatprep.subr.bf16.mxu0 0
        %2013 = vmatpush1.bf16.xpose.msra.mxu0 0
        %2014 = vmatprep.subr.bf16.mxu0 0
        %2015 = vmatpush1.bf16.xpose.msra.mxu0 0
        %2016 = vmatprep.subr.bf16.mxu0 0
        %2017 = vmatpush1.bf16.xpose.msra.mxu0 0
        %2018 = vmatprep.subr.bf16.mxu0 0
        %2019 = vmatpush1.bf16.xpose.msra.mxu0 0
        %2020 = vmatprep.subr.bf16.mxu0 0
        %2021 = vmatpush1.bf16.xpose.msra.mxu0 0
        %2022 = vmatprep.subr.bf16.mxu0 0
        %2023 = vmatpush1.bf16.xpose.msra.mxu0 0
        %2024 = vmatprep.subr.bf16.mxu0 0
        %2025 = vmatpush1.bf16.xpose.msra.mxu0 0
        %2026 = vmatprep.subr.bf16.mxu0 0
        %2027 = vmatpush1.bf16.xpose.msra.mxu0 0
        %2028 = vmatprep.subr.bf16.mxu0 0
        %2029 = vmatpush1.bf16.xpose.msra.mxu0 0
        %2030 = vmatprep.subr.bf16.mxu0 0
        %2031 = vmatpush1.bf16.xpose.msra.mxu0 0
        %2032 = vmatprep.subr.bf16.mxu0 0
        %2033 = vmatpush1.bf16.xpose.msra.mxu0 0
        %2034 = vmatprep.subr.bf16.mxu0 0
        %2035 = vmatpush1.bf16.xpose.msra.mxu0 0
        %2036 = vmatprep.subr.bf16.mxu0 0
        %2037 = vmatpush1.bf16.xpose.msra.mxu0 0
        %2038 = vmatprep.mubr.bf16.mxu0 0
        %2039 = vmatmul.mubr.bf16.gmra.mrb[0].mxu0 %v1998
        %v2040 = vpop.f32.mrb[0].mxu0
        %v2041 = vadd.f32 0.0, %v2040
        %v2042 = vpop.f32.mrb[0].mxu0
        %v2043 = vpop.f32.mrb[0].mxu0
        %v2044 = vadd.f32 0.0, %v2043
        %v2045 = vpop.f32.mrb[0].mxu0
        %2046 = vmatprep.mubr.bf16.mxu0 0
        %2047 = vmatmul.mubr.bf16.gmra.mrb[0].mxu0 %v2001
        %v2048 = vpop.f32.mrb[0].mxu0
        %v2049 = vadd.f32 0.0, %v2048
        %v2050 = vpop.f32.mrb[0].mxu0
        %v2051 = vpop.f32.mrb[0].mxu0
        %v2052 = vadd.f32 0.0, %v2051
        %v2053 = vpop.f32.mrb[0].mxu0
        %2054 = vdwg.mxu0
        %2055 = vxpose.xlu0.b32.start [1/16] %v1635, 128
        %2056 = vxpose.xlu0.b32.cont [2/16] %v1638, 128
        %2057 = vxpose.xlu0.b32.cont [3/16] %v1643, 128
        %2058 = vxpose.xlu0.b32.cont [4/16] %v1646, 128
        %2059 = vxpose.xlu0.b32.cont [5/16] 0.0, 128
        %2060 = vxpose.xlu0.b32.cont [6/16] 0.0, 128
        %2061 = vxpose.xlu0.b32.cont [7/16] 0.0, 128
        %2062 = vxpose.xlu0.b32.cont [8/16] 0.0, 128
        %2063 = vxpose.xlu0.b32.cont [9/16] 0.0, 128
        %2064 = vxpose.xlu0.b32.cont [10/16] 0.0, 128
        %2065 = vxpose.xlu0.b32.cont [11/16] 0.0, 128
        %2066 = vxpose.xlu0.b32.cont [12/16] 0.0, 128
        %2067 = vxpose.xlu0.b32.cont [13/16] 0.0, 128
        %2068 = vxpose.xlu0.b32.cont [14/16] 0.0, 128
        %2069 = vxpose.xlu0.b32.cont [15/16] 0.0, 128
        %2070 = vxpose.xlu0.b32.end [16/16] 0.0, 128
        %v2071 = vpop.trf.xlu0
        %v2072 = vpop.trf.xlu0
        %v2073 = vpop.trf.xlu0
        %v2074 = vpop.trf.xlu0
        %v2075 = vpop.trf.xlu0
        %v2076 = vpop.trf.xlu0
        %v2077 = vpop.trf.xlu0
        %v2078 = vpop.trf.xlu0
        %v2079 = vpop.trf.xlu0
        %v2080 = vpop.trf.xlu0
        %v2081 = vpop.trf.xlu0
        %v2082 = vpop.trf.xlu0
        %v2083 = vpop.trf.xlu0
        %v2084 = vpop.trf.xlu0
        %v2085 = vpop.trf.xlu0
        %v2086 = vpop.trf.xlu0
        %2087 = vxpose.xlu0.b32.start [1/16] %v1693, 128
        %2088 = vxpose.xlu0.b32.cont [2/16] %v1696, 128
        %2089 = vxpose.xlu0.b32.cont [3/16] %v1701, 128
        %2090 = vxpose.xlu0.b32.cont [4/16] %v1704, 128
        %2091 = vxpose.xlu0.b32.cont [5/16] 0.0, 128
        %2092 = vxpose.xlu0.b32.cont [6/16] 0.0, 128
        %2093 = vxpose.xlu0.b32.cont [7/16] 0.0, 128
        %2094 = vxpose.xlu0.b32.cont [8/16] 0.0, 128
        %2095 = vxpose.xlu0.b32.cont [9/16] 0.0, 128
        %2096 = vxpose.xlu0.b32.cont [10/16] 0.0, 128
        %2097 = vxpose.xlu0.b32.cont [11/16] 0.0, 128
        %2098 = vxpose.xlu0.b32.cont [12/16] 0.0, 128
        %2099 = vxpose.xlu0.b32.cont [13/16] 0.0, 128
        %2100 = vxpose.xlu0.b32.cont [14/16] 0.0, 128
        %2101 = vxpose.xlu0.b32.cont [15/16] 0.0, 128
        %2102 = vxpose.xlu0.b32.end [16/16] 0.0, 128
        %v2103 = vpop.trf.xlu0
        %v2104 = vpop.trf.xlu0
        %v2105 = vpop.trf.xlu0
        %v2106 = vpop.trf.xlu0
        %v2107 = vpop.trf.xlu0
        %v2108 = vpop.trf.xlu0
        %v2109 = vpop.trf.xlu0
        %v2110 = vpop.trf.xlu0
        %v2111 = vpop.trf.xlu0
        %v2112 = vpop.trf.xlu0
        %v2113 = vpop.trf.xlu0
        %v2114 = vpop.trf.xlu0
        %v2115 = vpop.trf.xlu0
        %v2116 = vpop.trf.xlu0
        %v2117 = vpop.trf.xlu0
        %v2118 = vpop.trf.xlu0
        %2119 = vxpose.xlu0.b32.start [1/16] %v1751, 128
        %2120 = vxpose.xlu0.b32.cont [2/16] %v1754, 128
        %2121 = vxpose.xlu0.b32.cont [3/16] %v1759, 128
        %2122 = vxpose.xlu0.b32.cont [4/16] %v1762, 128
        %2123 = vxpose.xlu0.b32.cont [5/16] 0.0, 128
        %2124 = vxpose.xlu0.b32.cont [6/16] 0.0, 128
        %2125 = vxpose.xlu0.b32.cont [7/16] 0.0, 128
        %2126 = vxpose.xlu0.b32.cont [8/16] 0.0, 128
        %2127 = vxpose.xlu0.b32.cont [9/16] 0.0, 128
        %2128 = vxpose.xlu0.b32.cont [10/16] 0.0, 128
        %2129 = vxpose.xlu0.b32.cont [11/16] 0.0, 128
        %2130 = vxpose.xlu0.b32.cont [12/16] 0.0, 128
        %2131 = vxpose.xlu0.b32.cont [13/16] 0.0, 128
        %2132 = vxpose.xlu0.b32.cont [14/16] 0.0, 128
        %2133 = vxpose.xlu0.b32.cont [15/16] 0.0, 128
        %2134 = vxpose.xlu0.b32.end [16/16] 0.0, 128
        %v2135 = vpop.trf.xlu0
        %v2136 = vpop.trf.xlu0
        %v2137 = vpop.trf.xlu0
        %v2138 = vpop.trf.xlu0
        %v2139 = vpop.trf.xlu0
        %v2140 = vpop.trf.xlu0
        %v2141 = vpop.trf.xlu0
        %v2142 = vpop.trf.xlu0
        %v2143 = vpop.trf.xlu0
        %v2144 = vpop.trf.xlu0
        %v2145 = vpop.trf.xlu0
        %v2146 = vpop.trf.xlu0
        %v2147 = vpop.trf.xlu0
        %v2148 = vpop.trf.xlu0
        %v2149 = vpop.trf.xlu0
        %v2150 = vpop.trf.xlu0
        %2151 = vxpose.xlu0.b32.start [1/16] %v1809, 128
        %2152 = vxpose.xlu0.b32.cont [2/16] %v1812, 128
        %2153 = vxpose.xlu0.b32.cont [3/16] %v1817, 128
        %2154 = vxpose.xlu0.b32.cont [4/16] %v1820, 128
        %2155 = vxpose.xlu0.b32.cont [5/16] 0.0, 128
        %2156 = vxpose.xlu0.b32.cont [6/16] 0.0, 128
        %2157 = vxpose.xlu0.b32.cont [7/16] 0.0, 128
        %2158 = vxpose.xlu0.b32.cont [8/16] 0.0, 128
        %2159 = vxpose.xlu0.b32.cont [9/16] 0.0, 128
        %2160 = vxpose.xlu0.b32.cont [10/16] 0.0, 128
        %2161 = vxpose.xlu0.b32.cont [11/16] 0.0, 128
        %2162 = vxpose.xlu0.b32.cont [12/16] 0.0, 128
        %2163 = vxpose.xlu0.b32.cont [13/16] 0.0, 128
        %2164 = vxpose.xlu0.b32.cont [14/16] 0.0, 128
        %2165 = vxpose.xlu0.b32.cont [15/16] 0.0, 128
        %2166 = vxpose.xlu0.b32.end [16/16] 0.0, 128
        %v2167 = vpop.trf.xlu0
        %v2168 = vpop.trf.xlu0
        %v2169 = vpop.trf.xlu0
        %v2170 = vpop.trf.xlu0
        %v2171 = vpop.trf.xlu0
        %v2172 = vpop.trf.xlu0
        %v2173 = vpop.trf.xlu0
        %v2174 = vpop.trf.xlu0
        %v2175 = vpop.trf.xlu0
        %v2176 = vpop.trf.xlu0
        %v2177 = vpop.trf.xlu0
        %v2178 = vpop.trf.xlu0
        %v2179 = vpop.trf.xlu0
        %v2180 = vpop.trf.xlu0
        %v2181 = vpop.trf.xlu0
        %v2182 = vpop.trf.xlu0
        %2183 = vxpose.xlu0.b32.start [1/16] %v1867, 128
        %2184 = vxpose.xlu0.b32.cont [2/16] %v1870, 128
        %2185 = vxpose.xlu0.b32.cont [3/16] %v1875, 128
        %2186 = vxpose.xlu0.b32.cont [4/16] %v1878, 128
        %2187 = vxpose.xlu0.b32.cont [5/16] 0.0, 128
        %2188 = vxpose.xlu0.b32.cont [6/16] 0.0, 128
        %2189 = vxpose.xlu0.b32.cont [7/16] 0.0, 128
        %2190 = vxpose.xlu0.b32.cont [8/16] 0.0, 128
        %2191 = vxpose.xlu0.b32.cont [9/16] 0.0, 128
        %2192 = vxpose.xlu0.b32.cont [10/16] 0.0, 128
        %2193 = vxpose.xlu0.b32.cont [11/16] 0.0, 128
        %2194 = vxpose.xlu0.b32.cont [12/16] 0.0, 128
        %2195 = vxpose.xlu0.b32.cont [13/16] 0.0, 128
        %2196 = vxpose.xlu0.b32.cont [14/16] 0.0, 128
        %2197 = vxpose.xlu0.b32.cont [15/16] 0.0, 128
        %2198 = vxpose.xlu0.b32.end [16/16] 0.0, 128
        %v2199 = vpop.trf.xlu0
        %v2200 = vpop.trf.xlu0
        %v2201 = vpop.trf.xlu0
        %v2202 = vpop.trf.xlu0
        %v2203 = vpop.trf.xlu0
        %v2204 = vpop.trf.xlu0
        %v2205 = vpop.trf.xlu0
        %v2206 = vpop.trf.xlu0
        %v2207 = vpop.trf.xlu0
        %v2208 = vpop.trf.xlu0
        %v2209 = vpop.trf.xlu0
        %v2210 = vpop.trf.xlu0
        %v2211 = vpop.trf.xlu0
        %v2212 = vpop.trf.xlu0
        %v2213 = vpop.trf.xlu0
        %v2214 = vpop.trf.xlu0
        %2215 = vxpose.xlu0.b32.start [1/16] %v1925, 128
        %2216 = vxpose.xlu0.b32.cont [2/16] %v1928, 128
        %2217 = vxpose.xlu0.b32.cont [3/16] %v1933, 128
        %2218 = vxpose.xlu0.b32.cont [4/16] %v1936, 128
        %2219 = vxpose.xlu0.b32.cont [5/16] 0.0, 128
        %2220 = vxpose.xlu0.b32.cont [6/16] 0.0, 128
        %2221 = vxpose.xlu0.b32.cont [7/16] 0.0, 128
        %2222 = vxpose.xlu0.b32.cont [8/16] 0.0, 128
        %2223 = vxpose.xlu0.b32.cont [9/16] 0.0, 128
        %2224 = vxpose.xlu0.b32.cont [10/16] 0.0, 128
        %2225 = vxpose.xlu0.b32.cont [11/16] 0.0, 128
        %2226 = vxpose.xlu0.b32.cont [12/16] 0.0, 128
        %2227 = vxpose.xlu0.b32.cont [13/16] 0.0, 128
        %2228 = vxpose.xlu0.b32.cont [14/16] 0.0, 128
        %2229 = vxpose.xlu0.b32.cont [15/16] 0.0, 128
        %2230 = vxpose.xlu0.b32.end [16/16] 0.0, 128
        %v2231 = vpop.trf.xlu0
        %v2232 = vpop.trf.xlu0
        %v2233 = vpop.trf.xlu0
        %v2234 = vpop.trf.xlu0
        %v2235 = vpop.trf.xlu0
        %v2236 = vpop.trf.xlu0
        %v2237 = vpop.trf.xlu0
        %v2238 = vpop.trf.xlu0
        %v2239 = vpop.trf.xlu0
        %v2240 = vpop.trf.xlu0
        %v2241 = vpop.trf.xlu0
        %v2242 = vpop.trf.xlu0
        %v2243 = vpop.trf.xlu0
        %v2244 = vpop.trf.xlu0
        %v2245 = vpop.trf.xlu0
        %v2246 = vpop.trf.xlu0
        %2247 = vxpose.xlu0.b32.start [1/16] %v1983, 128
        %2248 = vxpose.xlu0.b32.cont [2/16] %v1986, 128
        %2249 = vxpose.xlu0.b32.cont [3/16] %v1991, 128
        %2250 = vxpose.xlu0.b32.cont [4/16] %v1994, 128
        %2251 = vxpose.xlu0.b32.cont [5/16] 0.0, 128
        %2252 = vxpose.xlu0.b32.cont [6/16] 0.0, 128
        %2253 = vxpose.xlu0.b32.cont [7/16] 0.0, 128
        %2254 = vxpose.xlu0.b32.cont [8/16] 0.0, 128
        %2255 = vxpose.xlu0.b32.cont [9/16] 0.0, 128
        %2256 = vxpose.xlu0.b32.cont [10/16] 0.0, 128
        %2257 = vxpose.xlu0.b32.cont [11/16] 0.0, 128
        %2258 = vxpose.xlu0.b32.cont [12/16] 0.0, 128
        %2259 = vxpose.xlu0.b32.cont [13/16] 0.0, 128
        %2260 = vxpose.xlu0.b32.cont [14/16] 0.0, 128
        %2261 = vxpose.xlu0.b32.cont [15/16] 0.0, 128
        %2262 = vxpose.xlu0.b32.end [16/16] 0.0, 128
        %v2263 = vpop.trf.xlu0
        %v2264 = vpop.trf.xlu0
        %v2265 = vpop.trf.xlu0
        %v2266 = vpop.trf.xlu0
        %v2267 = vpop.trf.xlu0
        %v2268 = vpop.trf.xlu0
        %v2269 = vpop.trf.xlu0
        %v2270 = vpop.trf.xlu0
        %v2271 = vpop.trf.xlu0
        %v2272 = vpop.trf.xlu0
        %v2273 = vpop.trf.xlu0
        %v2274 = vpop.trf.xlu0
        %v2275 = vpop.trf.xlu0
        %v2276 = vpop.trf.xlu0
        %v2277 = vpop.trf.xlu0
        %v2278 = vpop.trf.xlu0
        %2279 = vxpose.xlu0.b32.start [1/16] %v2041, 128
        %2280 = vxpose.xlu0.b32.cont [2/16] %v2044, 128
        %2281 = vxpose.xlu0.b32.cont [3/16] %v2049, 128
        %2282 = vxpose.xlu0.b32.cont [4/16] %v2052, 128
        %2283 = vxpose.xlu0.b32.cont [5/16] 0.0, 128
        %2284 = vxpose.xlu0.b32.cont [6/16] 0.0, 128
        %2285 = vxpose.xlu0.b32.cont [7/16] 0.0, 128
        %2286 = vxpose.xlu0.b32.cont [8/16] 0.0, 128
        %2287 = vxpose.xlu0.b32.cont [9/16] 0.0, 128
        %2288 = vxpose.xlu0.b32.cont [10/16] 0.0, 128
        %2289 = vxpose.xlu0.b32.cont [11/16] 0.0, 128
        %2290 = vxpose.xlu0.b32.cont [12/16] 0.0, 128
        %2291 = vxpose.xlu0.b32.cont [13/16] 0.0, 128
        %2292 = vxpose.xlu0.b32.cont [14/16] 0.0, 128
        %2293 = vxpose.xlu0.b32.cont [15/16] 0.0, 128
        %2294 = vxpose.xlu0.b32.end [16/16] 0.0, 128
        %v2295 = vpop.trf.xlu0
        %v2296 = vpop.trf.xlu0
        %v2297 = vpop.trf.xlu0
        %v2298 = vpop.trf.xlu0
        %v2299 = vpop.trf.xlu0
        %v2300 = vpop.trf.xlu0
        %v2301 = vpop.trf.xlu0
        %v2302 = vpop.trf.xlu0
        %v2303 = vpop.trf.xlu0
        %v2304 = vpop.trf.xlu0
        %v2305 = vpop.trf.xlu0
        %v2306 = vpop.trf.xlu0
        %v2307 = vpop.trf.xlu0
        %v2308 = vpop.trf.xlu0
        %v2309 = vpop.trf.xlu0
        %v2310 = vpop.trf.xlu0
        %v2311 = vcombine.low %v2071, %v2135
        %v2312 = vcombine.high %v2071, %v2135
        %v2314 = vunpack.c.l.s4 1983009808
        %v2315 = vunpack.c.0.s8 %v2314
        %v2316 = vlaneseq
        %v2317 = vshrl.u32 %v2316, 7
        %v2318 = vsub.s32 %v2315, %v2317
        %v2319 = vrot.slane %v2311, %v2318
        %v2321 = vunpack.c.l.s4 1983009808
        %v2322 = vunpack.c.0.s8 %v2321
        %v2323 = vlaneseq
        %v2324 = vshrl.u32 %v2323, 7
        %v2325 = vsub.s32 %v2322, %v2324
        %v2326 = vrot.slane %v2312, %v2325
        %v2327 = vcombine.low %v2103, %v2167
        %v2328 = vcombine.high %v2103, %v2167
        %v2330 = vunpack.c.l.s4 1983009808
        %v2331 = vunpack.c.0.s8 %v2330
        %v2332 = vlaneseq
        %v2333 = vshrl.u32 %v2332, 7
        %v2334 = vsub.s32 %v2331, %v2333
        %v2335 = vrot.slane %v2327, %v2334
        %v2337 = vunpack.c.l.s4 1983009808
        %v2338 = vunpack.c.0.s8 %v2337
        %v2339 = vlaneseq
        %v2340 = vshrl.u32 %v2339, 7
        %v2341 = vsub.s32 %v2338, %v2340
        %v2342 = vrot.slane %v2328, %v2341
        %v2343 = vcombine.low %v2199, %v2263
        %v2344 = vcombine.high %v2199, %v2263
        %v2346 = vunpack.c.l.s4 1983009808
        %v2347 = vunpack.c.0.s8 %v2346
        %v2348 = vlaneseq
        %v2349 = vshrl.u32 %v2348, 7
        %v2350 = vsub.s32 %v2347, %v2349
        %v2351 = vrot.slane %v2343, %v2350
        %v2353 = vunpack.c.l.s4 1983009808
        %v2354 = vunpack.c.0.s8 %v2353
        %v2355 = vlaneseq
        %v2356 = vshrl.u32 %v2355, 7
        %v2357 = vsub.s32 %v2354, %v2356
        %v2358 = vrot.slane %v2344, %v2357
        %v2359 = vcombine.low %v2231, %v2295
        %v2360 = vcombine.high %v2231, %v2295
        %v2362 = vunpack.c.l.s4 1983009808
        %v2363 = vunpack.c.0.s8 %v2362
        %v2364 = vlaneseq
        %v2365 = vshrl.u32 %v2364, 7
        %v2366 = vsub.s32 %v2363, %v2365
        %v2367 = vrot.slane %v2359, %v2366
        %v2369 = vunpack.c.l.s4 1983009808
        %v2370 = vunpack.c.0.s8 %v2369
        %v2371 = vlaneseq
        %v2372 = vshrl.u32 %v2371, 7
        %v2373 = vsub.s32 %v2370, %v2372
        %v2374 = vrot.slane %v2360, %v2373
        %v2375 = vcombine.low %v2319, %v2335
        %v2376 = vcombine.high %v2319, %v2335
        %v2378 = vunpack.c.l.s4 1934713408
        %v2379 = vunpack.c.0.s8 %v2378
        %v2380 = vlaneseq
        %v2381 = vshrl.u32 %v2380, 7
        %v2382 = vsub.s32 %v2379, %v2381
        %v2383 = vrot.slane %v2375, %v2382
        %v2385 = vunpack.c.l.s4 1934713408
        %v2386 = vunpack.c.0.s8 %v2385
        %v2387 = vlaneseq
        %v2388 = vshrl.u32 %v2387, 7
        %v2389 = vsub.s32 %v2386, %v2388
        %v2390 = vrot.slane %v2376, %v2389
        %v2391 = vcombine.low %v2326, %v2342
        %v2392 = vcombine.high %v2326, %v2342
        %v2394 = vunpack.c.l.s4 1934713408
        %v2395 = vunpack.c.0.s8 %v2394
        %v2396 = vlaneseq
        %v2397 = vshrl.u32 %v2396, 7
        %v2398 = vsub.s32 %v2395, %v2397
        %v2399 = vrot.slane %v2391, %v2398
        %v2401 = vunpack.c.l.s4 1934713408
        %v2402 = vunpack.c.0.s8 %v2401
        %v2403 = vlaneseq
        %v2404 = vshrl.u32 %v2403, 7
        %v2405 = vsub.s32 %v2402, %v2404
        %v2406 = vrot.slane %v2392, %v2405
        %v2407 = vcombine.low %v2351, %v2367
        %v2408 = vcombine.high %v2351, %v2367
        %v2410 = vunpack.c.l.s4 1934713408
        %v2411 = vunpack.c.0.s8 %v2410
        %v2412 = vlaneseq
        %v2413 = vshrl.u32 %v2412, 7
        %v2414 = vsub.s32 %v2411, %v2413
        %v2415 = vrot.slane %v2407, %v2414
        %v2417 = vunpack.c.l.s4 1934713408
        %v2418 = vunpack.c.0.s8 %v2417
        %v2419 = vlaneseq
        %v2420 = vshrl.u32 %v2419, 7
        %v2421 = vsub.s32 %v2418, %v2420
        %v2422 = vrot.slane %v2408, %v2421
        %v2423 = vcombine.low %v2358, %v2374
        %v2424 = vcombine.high %v2358, %v2374
        %v2426 = vunpack.c.l.s4 1934713408
        %v2427 = vunpack.c.0.s8 %v2426
        %v2428 = vlaneseq
        %v2429 = vshrl.u32 %v2428, 7
        %v2430 = vsub.s32 %v2427, %v2429
        %v2431 = vrot.slane %v2423, %v2430
        %v2433 = vunpack.c.l.s4 1934713408
        %v2434 = vunpack.c.0.s8 %v2433
        %v2435 = vlaneseq
        %v2436 = vshrl.u32 %v2435, 7
        %v2437 = vsub.s32 %v2434, %v2436
        %v2438 = vrot.slane %v2424, %v2437
        %v2439 = vcombine.low %v2383, %v2415
        %v2440 = vcombine.high %v2383, %v2415
        %v2441 = vcombine.low %v2390, %v2422
        %v2442 = vcombine.high %v2390, %v2422
        %v2443 = vcombine.low %v2399, %v2431
        %v2444 = vcombine.high %v2399, %v2431
        %v2445 = vcombine.low %v2406, %v2438
        %v2446 = vcombine.high %v2406, %v2438
        %v2447 = vcombine.low %v2439, %v2441
        %v2448 = vcombine.high %v2439, %v2441
        %v2450 = vunpack.c.l.s4 1983009808
        %v2451 = vunpack.c.0.s8 %v2450
        %v2452 = vlaneseq
        %v2453 = vshrl.u32 %v2452, 7
        %v2454 = vsub.s32 %v2451, %v2453
        %v2455 = vrot.slane %v2447, %v2454
        %v2457 = vunpack.c.l.s4 1983009808
        %v2458 = vunpack.c.0.s8 %v2457
        %v2459 = vlaneseq
        %v2460 = vshrl.u32 %v2459, 7
        %v2461 = vsub.s32 %v2458, %v2460
        %v2462 = vrot.slane %v2448, %v2461
        %v2463 = vcombine.low %v2440, %v2442
        %v2464 = vcombine.high %v2440, %v2442
        %v2466 = vunpack.c.l.s4 1983009808
        %v2467 = vunpack.c.0.s8 %v2466
        %v2468 = vlaneseq
        %v2469 = vshrl.u32 %v2468, 7
        %v2470 = vsub.s32 %v2467, %v2469
        %v2471 = vrot.slane %v2463, %v2470
        %v2473 = vunpack.c.l.s4 1983009808
        %v2474 = vunpack.c.0.s8 %v2473
        %v2475 = vlaneseq
        %v2476 = vshrl.u32 %v2475, 7
        %v2477 = vsub.s32 %v2474, %v2476
        %v2478 = vrot.slane %v2464, %v2477
        %v2479 = vcombine.low %v2443, %v2445
        %v2480 = vcombine.high %v2443, %v2445
        %v2482 = vunpack.c.l.s4 1983009808
        %v2483 = vunpack.c.0.s8 %v2482
        %v2484 = vlaneseq
        %v2485 = vshrl.u32 %v2484, 7
        %v2486 = vsub.s32 %v2483, %v2485
        %v2487 = vrot.slane %v2479, %v2486
        %v2489 = vunpack.c.l.s4 1983009808
        %v2490 = vunpack.c.0.s8 %v2489
        %v2491 = vlaneseq
        %v2492 = vshrl.u32 %v2491, 7
        %v2493 = vsub.s32 %v2490, %v2492
        %v2494 = vrot.slane %v2480, %v2493
        %v2495 = vcombine.low %v2444, %v2446
        %v2496 = vcombine.high %v2444, %v2446
        %v2498 = vunpack.c.l.s4 1983009808
        %v2499 = vunpack.c.0.s8 %v2498
        %v2500 = vlaneseq
        %v2501 = vshrl.u32 %v2500, 7
        %v2502 = vsub.s32 %v2499, %v2501
        %v2503 = vrot.slane %v2495, %v2502
        %v2505 = vunpack.c.l.s4 1983009808
        %v2506 = vunpack.c.0.s8 %v2505
        %v2507 = vlaneseq
        %v2508 = vshrl.u32 %v2507, 7
        %v2509 = vsub.s32 %v2506, %v2508
        %v2510 = vrot.slane %v2496, %v2509
        %v2511 = vcombine.low %v2455, %v2471
        %v2512 = vcombine.high %v2455, %v2471
        %v2514 = vunpack.c.l.s4 1934713408
        %v2515 = vunpack.c.0.s8 %v2514
        %v2516 = vlaneseq
        %v2517 = vshrl.u32 %v2516, 7
        %v2518 = vsub.s32 %v2515, %v2517
        %v2519 = vrot.slane %v2511, %v2518
        %v2521 = vunpack.c.l.s4 1934713408
        %v2522 = vunpack.c.0.s8 %v2521
        %v2523 = vlaneseq
        %v2524 = vshrl.u32 %v2523, 7
        %v2525 = vsub.s32 %v2522, %v2524
        %v2526 = vrot.slane %v2512, %v2525
        %v2527 = vcombine.low %v2462, %v2478
        %v2528 = vcombine.high %v2462, %v2478
        %v2530 = vunpack.c.l.s4 1934713408
        %v2531 = vunpack.c.0.s8 %v2530
        %v2532 = vlaneseq
        %v2533 = vshrl.u32 %v2532, 7
        %v2534 = vsub.s32 %v2531, %v2533
        %v2535 = vrot.slane %v2527, %v2534
        %v2537 = vunpack.c.l.s4 1934713408
        %v2538 = vunpack.c.0.s8 %v2537
        %v2539 = vlaneseq
        %v2540 = vshrl.u32 %v2539, 7
        %v2541 = vsub.s32 %v2538, %v2540
        %v2542 = vrot.slane %v2528, %v2541
        %v2543 = vcombine.low %v2487, %v2503
        %v2544 = vcombine.high %v2487, %v2503
        %v2546 = vunpack.c.l.s4 1934713408
        %v2547 = vunpack.c.0.s8 %v2546
        %v2548 = vlaneseq
        %v2549 = vshrl.u32 %v2548, 7
        %v2550 = vsub.s32 %v2547, %v2549
        %v2551 = vrot.slane %v2543, %v2550
        %v2553 = vunpack.c.l.s4 1934713408
        %v2554 = vunpack.c.0.s8 %v2553
        %v2555 = vlaneseq
        %v2556 = vshrl.u32 %v2555, 7
        %v2557 = vsub.s32 %v2554, %v2556
        %v2558 = vrot.slane %v2544, %v2557
        %v2559 = vcombine.low %v2494, %v2510
        %v2560 = vcombine.high %v2494, %v2510
        %v2562 = vunpack.c.l.s4 1934713408
        %v2563 = vunpack.c.0.s8 %v2562
        %v2564 = vlaneseq
        %v2565 = vshrl.u32 %v2564, 7
        %v2566 = vsub.s32 %v2563, %v2565
        %v2567 = vrot.slane %v2559, %v2566
        %v2569 = vunpack.c.l.s4 1934713408
        %v2570 = vunpack.c.0.s8 %v2569
        %v2571 = vlaneseq
        %v2572 = vshrl.u32 %v2571, 7
        %v2573 = vsub.s32 %v2570, %v2572
        %v2574 = vrot.slane %v2560, %v2573
        %v2575 = vcombine.low %v2519, %v2551
        %v2576 = vcombine.high %v2519, %v2551
        %v2577 = vcombine.low %v2526, %v2558
        %v2578 = vcombine.high %v2526, %v2558
        %v2579 = vcombine.low %v2535, %v2567
        %v2580 = vcombine.high %v2535, %v2567
        %v2581 = vcombine.low %v2542, %v2574
        %v2582 = vcombine.high %v2542, %v2574
        %2584 = vrot.lane.b32.xlu0 %v2576, 32
        %v2585 = vpop.permute.xlu0 %2584
        %2588 = vrot.lane.b32.xlu0 %v2577, 64
        %v2589 = vpop.permute.xlu0 %2588
        %2592 = vrot.lane.b32.xlu0 %v2578, 96
        %v2593 = vpop.permute.xlu0 %2592
        %2596 = vrot.lane.b32.xlu0 %v2580, 32
        %v2597 = vpop.permute.xlu0 %2596
        %2600 = vrot.lane.b32.xlu0 %v2581, 64
        %v2601 = vpop.permute.xlu0 %2600
        %2604 = vrot.lane.b32.xlu0 %v2582, 96
        %v2605 = vpop.permute.xlu0 %2604
        %v2607 = vsel %vm631, %v2575, %v2585
        %vm2608 = vcmask 523264
        %v2609 = vsel %vm2608, %v2607, %v2589
        %vm2610 = vcmask 785408
        %v2611 = vsel %vm2610, %v2609, %v2593
        %v2612 = vsel %vm631, %v2579, %v2597
        %v2613 = vsel %vm2608, %v2612, %v2601
        %v2614 = vsel %vm2610, %v2613, %v2605
        %v2615 = vpack.c.bf16 %v2611, %v2611
        %v2616 = vpack.c.bf16 %v2614, %v2614
        %v2617 = vld [vmem:[%s6] sm:$0xf]
        %v2618 = vld [vmem:[%s6 + $0x4] sm:$0xf]
        %v2619 = vld [vmem:[%s6 + $0x8] sm:$0xf]
        %v2620 = vld [vmem:[%s6 + $0xc] sm:$0xf]
        %v2621 = vld [vmem:[%s6 + $0x10] sm:$0xf]
        %v2622 = vld [vmem:[%s6 + $0x14] sm:$0xf]
        %v2623 = vld [vmem:[%s6 + $0x18] sm:$0xf]
        %v2624 = vld [vmem:[%s6 + $0x1c] sm:$0xf]
        %v2625 = vld [vmem:[%s6 + $0x20] sm:$0xf]
        %v2626 = vld [vmem:[%s6 + $0x24] sm:$0xf]
        %v2627 = vld [vmem:[%s6 + $0x28] sm:$0xf]
        %v2628 = vld [vmem:[%s6 + $0x2c] sm:$0xf]
        %v2629 = vld [vmem:[%s6 + $0x30] sm:$0xf]
        %v2630 = vld [vmem:[%s6 + $0x34] sm:$0xf]
        %v2631 = vld [vmem:[%s6 + $0x38] sm:$0xf]
        %v2632 = vld [vmem:[%s6 + $0x3c] sm:$0xf]
        %v2633 = vld [vmem:[%s6 + $0x40] sm:$0xf]
        %v2634 = vld [vmem:[%s6 + $0x44] sm:$0xf]
        %v2635 = vld [vmem:[%s6 + $0x48] sm:$0xf]
        %v2636 = vld [vmem:[%s6 + $0x4c] sm:$0xf]
        %v2637 = vld [vmem:[%s6 + $0x50] sm:$0xf]
        %v2638 = vld [vmem:[%s6 + $0x54] sm:$0xf]
        %v2639 = vld [vmem:[%s6 + $0x58] sm:$0xf]
        %v2640 = vld [vmem:[%s6 + $0x5c] sm:$0xf]
        %v2641 = vld [vmem:[%s6 + $0x60] sm:$0xf]
        %v2642 = vld [vmem:[%s6 + $0x64] sm:$0xf]
        %v2643 = vld [vmem:[%s6 + $0x68] sm:$0xf]
        %v2644 = vld [vmem:[%s6 + $0x6c] sm:$0xf]
        %v2645 = vld [vmem:[%s6 + $0x70] sm:$0xf]
        %v2646 = vld [vmem:[%s6 + $0x74] sm:$0xf]
        %v2647 = vld [vmem:[%s6 + $0x78] sm:$0xf]
        %v2648 = vld [vmem:[%s6 + $0x7c] sm:$0xf]
        %v2649 = vld [vmem:[%s7] sm:$0x1]
        %v2651 = vlaneseq
        %v2652 = vshrl.u32 %v2651, 7
        %v2653 = vsub.s32 0, %v2652
        %v2654 = vrot.slane %v2649, %v2653
        %v2688 = vunpack.c.l.b16 %v2617
        %v2689 = vunpack.c.l.b16 %v2618
        %v2690 = vunpack.c.l.b16 %v2619
        %v2691 = vunpack.c.l.b16 %v2620
        %v2692 = vunpack.c.l.b16 %v2621
        %v2693 = vunpack.c.l.b16 %v2622
        %v2694 = vunpack.c.l.b16 %v2623
        %v2695 = vunpack.c.l.b16 %v2624
        %v2696 = vunpack.c.l.b16 %v2625
        %v2697 = vunpack.c.l.b16 %v2626
        %v2698 = vunpack.c.l.b16 %v2627
        %v2699 = vunpack.c.l.b16 %v2628
        %v2700 = vunpack.c.l.b16 %v2629
        %v2701 = vunpack.c.l.b16 %v2630
        %v2702 = vunpack.c.l.b16 %v2631
        %v2703 = vunpack.c.l.b16 %v2632
        %v2704 = vunpack.c.l.b16 %v2633
        %v2705 = vunpack.c.l.b16 %v2634
        %v2706 = vunpack.c.l.b16 %v2635
        %v2707 = vunpack.c.l.b16 %v2636
        %v2708 = vunpack.c.l.b16 %v2637
        %v2709 = vunpack.c.l.b16 %v2638
        %v2710 = vunpack.c.l.b16 %v2639
        %v2711 = vunpack.c.l.b16 %v2640
        %v2712 = vunpack.c.l.b16 %v2641
        %v2713 = vunpack.c.l.b16 %v2642
        %v2714 = vunpack.c.l.b16 %v2643
        %v2715 = vunpack.c.l.b16 %v2644
        %v2716 = vunpack.c.l.b16 %v2645
        %v2717 = vunpack.c.l.b16 %v2646
        %v2718 = vunpack.c.l.b16 %v2647
        %v2719 = vunpack.c.l.b16 %v2648
        %v2720 = vpack.c.b16 %v2689, %v2688
        %v2721 = vpack.c.b16 %v2691, %v2690
        %v2722 = vpack.c.b16 %v2693, %v2692
        %v2723 = vpack.c.b16 %v2695, %v2694
        %v2724 = vpack.c.b16 %v2697, %v2696
        %v2725 = vpack.c.b16 %v2699, %v2698
        %v2726 = vpack.c.b16 %v2701, %v2700
        %v2727 = vpack.c.b16 %v2703, %v2702
        %v2728 = vpack.c.b16 %v2705, %v2704
        %v2729 = vpack.c.b16 %v2707, %v2706
        %v2730 = vpack.c.b16 %v2709, %v2708
        %v2731 = vpack.c.b16 %v2711, %v2710
        %v2732 = vpack.c.b16 %v2713, %v2712
        %v2733 = vpack.c.b16 %v2715, %v2714
        %v2734 = vpack.c.b16 %v2717, %v2716
        %v2735 = vpack.c.b16 %v2719, %v2718
        %2752 = vmatprep.subr.bf16.mxu0 0
        %2753 = vmatpush1.bf16.msra.mxu0 %v2720
        %2754 = vmatprep.subr.bf16.mxu0 0
        %2755 = vmatpush1.bf16.msra.mxu0 %v2721
        %2756 = vmatprep.subr.bf16.mxu0 0
        %2757 = vmatpush1.bf16.msra.mxu0 %v2722
        %2758 = vmatprep.subr.bf16.mxu0 0
        %2759 = vmatpush1.bf16.msra.mxu0 %v2723
        %2760 = vmatprep.subr.bf16.mxu0 0
        %2761 = vmatpush1.bf16.msra.mxu0 %v2724
        %2762 = vmatprep.subr.bf16.mxu0 0
        %2763 = vmatpush1.bf16.msra.mxu0 %v2725
        %2764 = vmatprep.subr.bf16.mxu0 0
        %2765 = vmatpush1.bf16.msra.mxu0 %v2726
        %2766 = vmatprep.subr.bf16.mxu0 0
        %2767 = vmatpush1.bf16.msra.mxu0 %v2727
        %2768 = vmatprep.subr.bf16.mxu0 0
        %2769 = vmatpush1.bf16.msra.mxu0 %v2728
        %2770 = vmatprep.subr.bf16.mxu0 0
        %2771 = vmatpush1.bf16.msra.mxu0 %v2729
        %2772 = vmatprep.subr.bf16.mxu0 0
        %2773 = vmatpush1.bf16.msra.mxu0 %v2730
        %2774 = vmatprep.subr.bf16.mxu0 0
        %2775 = vmatpush1.bf16.msra.mxu0 %v2731
        %2776 = vmatprep.subr.bf16.mxu0 0
        %2777 = vmatpush1.bf16.msra.mxu0 %v2732
        %2778 = vmatprep.subr.bf16.mxu0 0
        %2779 = vmatpush1.bf16.msra.mxu0 %v2733
        %2780 = vmatprep.subr.bf16.mxu0 0
        %2781 = vmatpush1.bf16.msra.mxu0 %v2734
        %2782 = vmatprep.subr.bf16.mxu0 0
        %2783 = vmatpush1.bf16.msra.mxu0 %v2735
        %2784 = vmatprep.mubr.bf16.mxu0 %v2616
        %2785 = vmatmul.mubr.bf16.gmra.mrb[0].mxu0 %v2615
        %v2786 = vpop.f32.mrb[0].mxu0
        %v2787 = vadd.f32 %v2654, %v2786
        %v2788 = vpop.f32.mrb[0].mxu0
        %v2789 = vpop.f32.mrb[0].mxu0
        %v2790 = vpop.f32.mrb[0].mxu0
        %2791 = vdwg.mxu0
        %v2792 = vadd.f32 %v2787, %v602
        %v2793 = vld [vmem:[%s8] sm:$0x1]
        %v2794 = vld [vmem:[%s9] sm:$0x1]
        %v2795 = vsel %vm631, %v2792, 0.0
        %2796 = vadd.xlane.f32.xlu0 %v2795
        %v2797 = vpop.xlane.xlu0 %2796
        %v2798 = vrcp.pop 32.0
        %v2799 = vmul.f32 %v2797, %v2798
        %v2800 = vsub.f32 %v2792, %v2799
        %v2801 = vmul.f32 %v2800, %v2800
        %v2802 = vsel %vm631, %v2801, 0.0
        %2803 = vadd.xlane.f32.xlu0 %v2802
        %v2804 = vpop.xlane.xlu0 %2803
        %v2805 = vmul.f32 %v2804, %v2798
        %v2806 = vadd.f32 %v2805, 1e-05
        %v2807 = vrsqrt.pop %v2806
        %v2808 = vmul.f32 %v2800, %v2807
        %v2810 = vlaneseq
        %v2811 = vshrl.u32 %v2810, 7
        %v2812 = vsub.s32 0, %v2811
        %v2813 = vrot.slane %v2793, %v2812
        %v2815 = vmul.f32 %v2808, %v2813
        %v2817 = vlaneseq
        %v2818 = vshrl.u32 %v2817, 7
        %v2819 = vsub.s32 0, %v2818
        %v2820 = vrot.slane %v2794, %v2819
        %v2822 = vadd.f32 %v2815, %v2820
        %v2823 = vpack.c.bf16 %v2822, %v2822
        %v2824 = vld [vmem:[%s12] sm:$0xf]
        %v2825 = vld [vmem:[%s12 + $0x4] sm:$0xf]
        %v2826 = vld [vmem:[%s12 + $0x8] sm:$0xf]
        %v2827 = vld [vmem:[%s12 + $0xc] sm:$0xf]
        %v2828 = vld [vmem:[%s13] sm:$0x1]
        %v2830 = vlaneseq
        %v2831 = vshrl.u32 %v2830, 7
        %v2832 = vsub.s32 0, %v2831
        %v2833 = vrot.slane %v2828, %v2832
        %v2839 = vunpack.c.l.b16 %v2824
        %v2840 = vunpack.c.l.b16 %v2825
        %v2841 = vunpack.c.l.b16 %v2826
        %v2842 = vunpack.c.l.b16 %v2827
        %v2843 = vpack.c.b16 %v2840, %v2839
        %v2844 = vpack.c.b16 %v2842, %v2841
        %v2848 = vsel %vm631, %v2823, 0
        %2850 = vmatprep.subr.bf16.mxu0 0
        %2851 = vmatpush1.bf16.msra.mxu0 %v2843
        %2852 = vmatprep.subr.bf16.mxu0 0
        %2853 = vmatpush1.bf16.msra.mxu0 %v2844
        %2854 = vmatprep.subr.bf16.mxu0 0
        %2855 = vmatpush1.bf16.msra.mxu0 0
        %2856 = vmatprep.subr.bf16.mxu0 0
        %2857 = vmatpush1.bf16.msra.mxu0 0
        %2858 = vmatprep.subr.bf16.mxu0 0
        %2859 = vmatpush1.bf16.msra.mxu0 0
        %2860 = vmatprep.subr.bf16.mxu0 0
        %2861 = vmatpush1.bf16.msra.mxu0 0
        %2862 = vmatprep.subr.bf16.mxu0 0
        %2863 = vmatpush1.bf16.msra.mxu0 0
        %2864 = vmatprep.subr.bf16.mxu0 0
        %2865 = vmatpush1.bf16.msra.mxu0 0
        %2866 = vmatprep.subr.bf16.mxu0 0
        %2867 = vmatpush1.bf16.msra.mxu0 0
        %2868 = vmatprep.subr.bf16.mxu0 0
        %2869 = vmatpush1.bf16.msra.mxu0 0
        %2870 = vmatprep.subr.bf16.mxu0 0
        %2871 = vmatpush1.bf16.msra.mxu0 0
        %2872 = vmatprep.subr.bf16.mxu0 0
        %2873 = vmatpush1.bf16.msra.mxu0 0
        %2874 = vmatprep.subr.bf16.mxu0 0
        %2875 = vmatpush1.bf16.msra.mxu0 0
        %2876 = vmatprep.subr.bf16.mxu0 0
        %2877 = vmatpush1.bf16.msra.mxu0 0
        %2878 = vmatprep.subr.bf16.mxu0 0
        %2879 = vmatpush1.bf16.msra.mxu0 0
        %2880 = vmatprep.subr.bf16.mxu0 0
        %2881 = vmatpush1.bf16.msra.mxu0 0
        %2882 = vmatprep.mubr.bf16.mxu0 0
        %2883 = vmatmul.mubr.bf16.gmra.mrb[0].mxu0 %v2848
        %v2884 = vpop.f32.mrb[0].mxu0
        %v2885 = vadd.f32 %v2833, %v2884
        %v2886 = vpop.f32.mrb[0].mxu0
        %v2887 = vpop.f32.mrb[0].mxu0
        %v2888 = vpop.f32.mrb[0].mxu0
        %2889 = vdwg.mxu0
        %v2890 = vmax.f32 %v2885, 0.0
        %v2891 = vpack.c.bf16 %v2890, %v2890
        %v2892 = vld [vmem:[%s14] sm:$0xf]
        %v2893 = vld [vmem:[%s14 + $0x4] sm:$0xf]
        %v2894 = vld [vmem:[%s14 + $0x8] sm:$0xf]
        %v2895 = vld [vmem:[%s14 + $0xc] sm:$0xf]
        %v2896 = vld [vmem:[%s14 + $0x10] sm:$0xf]
        %v2897 = vld [vmem:[%s14 + $0x14] sm:$0xf]
        %v2898 = vld [vmem:[%s14 + $0x18] sm:$0xf]
        %v2899 = vld [vmem:[%s14 + $0x1c] sm:$0xf]
        %v2900 = vld [vmem:[%s14 + $0x20] sm:$0xf]
        %v2901 = vld [vmem:[%s14 + $0x24] sm:$0xf]
        %v2902 = vld [vmem:[%s14 + $0x28] sm:$0xf]
        %v2903 = vld [vmem:[%s14 + $0x2c] sm:$0xf]
        %v2904 = vld [vmem:[%s14 + $0x30] sm:$0xf]
        %v2905 = vld [vmem:[%s14 + $0x34] sm:$0xf]
        %v2906 = vld [vmem:[%s14 + $0x38] sm:$0xf]
        %v2907 = vld [vmem:[%s14 + $0x3c] sm:$0xf]
        %v2908 = vld [vmem:[%s15] sm:$0x1]
        %v2910 = vlaneseq
        %v2911 = vshrl.u32 %v2910, 7
        %v2912 = vsub.s32 0, %v2911
        %v2913 = vrot.slane %v2908, %v2912
        %v2931 = vunpack.c.l.b16 %v2892
        %v2932 = vunpack.c.l.b16 %v2893
        %v2933 = vunpack.c.l.b16 %v2894
        %v2934 = vunpack.c.l.b16 %v2895
        %v2935 = vunpack.c.l.b16 %v2896
        %v2936 = vunpack.c.l.b16 %v2897
        %v2937 = vunpack.c.l.b16 %v2898
        %v2938 = vunpack.c.l.b16 %v2899
        %v2939 = vunpack.c.l.b16 %v2900
        %v2940 = vunpack.c.l.b16 %v2901
        %v2941 = vunpack.c.l.b16 %v2902
        %v2942 = vunpack.c.l.b16 %v2903
        %v2943 = vunpack.c.l.b16 %v2904
        %v2944 = vunpack.c.l.b16 %v2905
        %v2945 = vunpack.c.l.b16 %v2906
        %v2946 = vunpack.c.l.b16 %v2907
        %v2947 = vpack.c.b16 %v2932, %v2931
        %v2948 = vpack.c.b16 %v2934, %v2933
        %v2949 = vpack.c.b16 %v2936, %v2935
        %v2950 = vpack.c.b16 %v2938, %v2937
        %v2951 = vpack.c.b16 %v2940, %v2939
        %v2952 = vpack.c.b16 %v2942, %v2941
        %v2953 = vpack.c.b16 %v2944, %v2943
        %v2954 = vpack.c.b16 %v2946, %v2945
        %2963 = vmatprep.subr.bf16.mxu0 0
        %2964 = vmatpush1.bf16.msra.mxu0 %v2947
        %2965 = vmatprep.subr.bf16.mxu0 0
        %2966 = vmatpush1.bf16.msra.mxu0 %v2948
        %2967 = vmatprep.subr.bf16.mxu0 0
        %2968 = vmatpush1.bf16.msra.mxu0 %v2949
        %2969 = vmatprep.subr.bf16.mxu0 0
        %2970 = vmatpush1.bf16.msra.mxu0 %v2950
        %2971 = vmatprep.subr.bf16.mxu0 0
        %2972 = vmatpush1.bf16.msra.mxu0 %v2951
        %2973 = vmatprep.subr.bf16.mxu0 0
        %2974 = vmatpush1.bf16.msra.mxu0 %v2952
        %2975 = vmatprep.subr.bf16.mxu0 0
        %2976 = vmatpush1.bf16.msra.mxu0 %v2953
        %2977 = vmatprep.subr.bf16.mxu0 0
        %2978 = vmatpush1.bf16.msra.mxu0 %v2954
        %2979 = vmatprep.subr.bf16.mxu0 0
        %2980 = vmatpush1.bf16.msra.mxu0 0
        %2981 = vmatprep.subr.bf16.mxu0 0
        %2982 = vmatpush1.bf16.msra.mxu0 0
        %2983 = vmatprep.subr.bf16.mxu0 0
        %2984 = vmatpush1.bf16.msra.mxu0 0
        %2985 = vmatprep.subr.bf16.mxu0 0
        %2986 = vmatpush1.bf16.msra.mxu0 0
        %2987 = vmatprep.subr.bf16.mxu0 0
        %2988 = vmatpush1.bf16.msra.mxu0 0
        %2989 = vmatprep.subr.bf16.mxu0 0
        %2990 = vmatpush1.bf16.msra.mxu0 0
        %2991 = vmatprep.subr.bf16.mxu0 0
        %2992 = vmatpush1.bf16.msra.mxu0 0
        %2993 = vmatprep.subr.bf16.mxu0 0
        %2994 = vmatpush1.bf16.msra.mxu0 0
        %2995 = vmatprep.mubr.bf16.mxu0 0
        %2996 = vmatmul.mubr.bf16.gmra.mrb[0].mxu0 %v2891
        %v2997 = vpop.f32.mrb[0].mxu0
        %v2998 = vadd.f32 %v2913, %v2997
        %v2999 = vpop.f32.mrb[0].mxu0
        %v3000 = vpop.f32.mrb[0].mxu0
        %v3001 = vpop.f32.mrb[0].mxu0
        %3002 = vdwg.mxu0
        %v3003 = vadd.f32 %v2998, %v2822
        %v3004 = vld [vmem:[%s10] sm:$0x1]
        %v3005 = vld [vmem:[%s11] sm:$0x1]
        %v3006 = vsel %vm631, %v3003, 0.0
        %3007 = vadd.xlane.f32.xlu0 %v3006
        %v3008 = vpop.xlane.xlu0 %3007
        %v3009 = vmul.f32 %v3008, %v2798
        %v3010 = vsub.f32 %v3003, %v3009
        %v3011 = vmul.f32 %v3010, %v3010
        %v3012 = vsel %vm631, %v3011, 0.0
        %3013 = vadd.xlane.f32.xlu0 %v3012
        %v3014 = vpop.xlane.xlu0 %3013
        %v3015 = vmul.f32 %v3014, %v2798
        %v3016 = vadd.f32 %v3015, 1e-05
        %v3017 = vrsqrt.pop %v3016
        %v3018 = vmul.f32 %v3010, %v3017
        %v3020 = vlaneseq
        %v3021 = vshrl.u32 %v3020, 7
        %v3022 = vsub.s32 0, %v3021
        %v3023 = vrot.slane %v3004, %v3022
        %v3025 = vmul.f32 %v3018, %v3023
        %v3027 = vlaneseq
        %v3028 = vshrl.u32 %v3027, 7
        %v3029 = vsub.s32 0, %v3028
        %v3030 = vrot.slane %v3005, %v3029
        %v3032 = vadd.f32 %v3025, %v3030
        %3033 = vst.msk [vmem:[%s579] sm:$0xff] %vm631, %v3032
        %s3034 = sand.u32 %s412, 1
        %s3035 = scalar_lea.sflag [#allocation3], %s3034
        %s3036 = sand.u32 %s412, 1
        %s3037 = smul.addr %s3036, 8
        %s3038 = scalar_lea.vmem [#allocation2], %s3037
        // Predicated region
        $region85: #{tpu_custom_call.1} parent=83 // pred_check
          %p3039 = pneg %p422
        $region86: #{tpu_custom_call.1} parent=83 // pred_check_branch
          %3041 = sbr.rel (%p3039) target = $region88
        $region87: #{tpu_custom_call.1} parent=83 // pred_region
          %s3043 = ssub.s32 128, 128
          %3044 = vsyncadd %s3035, %s3043
          %s3045 = sadd.s32 %s35, %s34
          %s3046 = smul.addr %s3045, 128
          %s3047 = scalar_lea.hbm %s16, %s3046
          %s3049 = sshll.u32 %s3038, 4
          %s3050 = int_to_ptr.vmem [resolvable:$true] %s3049
          %3052 = dma.vmem_to_hbm [thread:$0]  %s3050, 128, %s3047, %s3035
        $region88: #{tpu_custom_call.1} parent=83 // pred_fallthru
          _
      $region84: #{tpu_custom_call.1} parent=5 // pred_fallthru
        _
      %p3053 = scmp.le.s32.totalorder 2, %s25
      // Predicated region
      $region89: #{tpu_custom_call.1} parent=5 // pred_check
        %p3054 = pneg %p3053
      $region90: #{tpu_custom_call.1} parent=5 // pred_check_branch
        %3056 = sbr.rel (%p3054) target = $region92
      $region91: #{tpu_custom_call.1} parent=5 // pred_region
        %s3057 = ssub.s32 %s25, 2
        // Predicated region
        $region93: #{tpu_custom_call.1} parent=91 // pred_check
          %p3058 = pneg %p428
        $region94: #{tpu_custom_call.1} parent=91 // pred_check_branch
          %3060 = sbr.rel (%p3058) target = $region96
        $region95: #{tpu_custom_call.1} parent=91 // pred_region
          %s3061 = sand.u32 %s413, 1
          %s3062 = scalar_lea.sflag [#allocation3], %s3061
          %s3063 = sand.u32 %s413, 1
          %s3064 = smul.addr %s3063, 8
          %s3065 = scalar_lea.vmem [#allocation2], %s3064
          %3066 = dma.done %s3062, 128
        $region96: #{tpu_custom_call.1} parent=91 // pred_fallthru
          _
      $region92: #{tpu_custom_call.1} parent=5 // pred_fallthru
        _
    $region6: #{tpu_custom_call.1} parent=1 // loop_footer
      %s29 = sadd.s32 1, %s25
    $region7: #{tpu_custom_call.1} parent=1 // loop_footer_branch
      %24 = sbr.rel target = $region3
    $region8: #{tpu_custom_call.1} parent=1 // loop_exit
      _
    %3067 = vsyncpa [#allocation3], 1
    %s3068 = scalar_lea.sflag [#allocation3], 1
    %3069 = vsyncpa %s3068, 1

</llo_original>
